<compile_context>
chip_gen: v6e
topology: v6e:2x2x1
jax: 0.10.0
libtpu: 0.0.40
codegen_flags: <defaults>
</compile_context>

<pallas_src>
import jax
import jax.numpy as jnp
from jax import lax
from jax.experimental import pallas as pl
from jax.experimental.pallas import tpu as pltpu


def _make_kernel(T, T_BLK, H):
    """Recurrent attention+LSTM kernel over a block of T_BLK decode steps."""

    def kernel(xih_ref,    # (T_BLK, B, 4H) precomputed x@Wih_x.T + b_ih + b_hh
               xpre_ref,   # (T_BLK, B, H)  precomputed x@Wpre_x.T
               enc_ref,    # (B, S, 2H)     encoder hidden states (values)
               pk_ref,     # (B, S, H)      proj_key = key_layer(encoder_hidden)
               srclen_ref, # (B, 1) i32     source lengths
               h0_ref, c0_ref,              # (B, H) initial LSTM state
               wq_ref,     # (H, H)   query_layer.T
               we_ref,     # (1, H)   energy_layer
               wihc_ref,   # (2H, 4H) W_ih context columns, transposed
               whh_ref,    # (H, 4H)  W_hh.T
               wpreh_ref,  # (H, H)   pre_output (output cols).T
               wprec_ref,  # (2H, H)  pre_output (context cols).T
               pre_ref,    # out (T_BLK, B, H) per-step pre_output
               hout_ref, cout_ref):         # out (B, H) final LSTM state
        blk = pl.program_id(0)

        @pl.when(blk == 0)
        def _init():
            hout_ref[...] = h0_ref[...]
            cout_ref[...] = c0_ref[...]

        # Constant loads hoisted out of the unrolled step loop.
        enc = enc_ref[...]                      # (B, S, 2H)
        pk = pk_ref[...]                        # (B, S, H)
        we_row = we_ref[0]                      # (H,)
        wq_t = wq_ref[...]
        wihc_t = wihc_ref[...]
        whh_t = whh_ref[...]
        wpreh_t = wpreh_ref[...]
        wprec_t = wprec_ref[...]
        B, S, _ = enc_ref.shape
        pos = lax.broadcasted_iota(jnp.int32, (B, S), 1)
        mask = pos < srclen_ref[...]            # (B, S)

        def step(t, carry):
            h, c = carry

            # ---- Bahdanau attention ----
            pq = jnp.dot(h, wq_t, preferred_element_type=jnp.float32)      # (B,H)
            energy = jnp.tanh(pq[:, None, :] + pk)                         # (B,S,H)
            scores = jnp.sum(energy * we_row, axis=-1)                     # (B,S)
            # Large finite mask value (instead of -inf) so a fully-masked row
            # yields a uniform distribution rather than NaN.
            scores = jnp.where(mask, scores, -1e30)
            m = jnp.max(scores, axis=-1, keepdims=True)
            e = jnp.exp(scores - m)
            alphas = e / jnp.sum(e, axis=-1, keepdims=True)                # (B,S)
            context = jnp.sum(alphas[:, :, None] * enc, axis=1)            # (B,2H)

            # ---- LSTM cell (PyTorch gate order i, f, g, o) ----
            gates = (xih_ref[t]
                     + jnp.dot(context, wihc_t, preferred_element_type=jnp.float32)
                     + jnp.dot(h, whh_t, preferred_element_type=jnp.float32))
            i_g = jax.nn.sigmoid(gates[:, 0:H])
            f_g = jax.nn.sigmoid(gates[:, H:2 * H])
            g_g = jnp.tanh(gates[:, 2 * H:3 * H])
            o_g = jax.nn.sigmoid(gates[:, 3 * H:4 * H])
            c_new = f_g * c + i_g * g_g
            h_new = o_g * jnp.tanh(c_new)                                  # (B,H)

            # ---- pre-output layer (generator softmax hoisted to wrapper) ----
            pre = (xpre_ref[t]
                   + jnp.dot(h_new, wpreh_t, preferred_element_type=jnp.float32)
                   + jnp.dot(context, wprec_t, preferred_element_type=jnp.float32))
            pre_ref[t] = pre

            # Mask state update for padded trailing steps of the last block.
            keep = ((blk * T_BLK + t) < T).astype(jnp.float32)
            h = keep * h_new + (1.0 - keep) * h
            c = keep * c_new + (1.0 - keep) * c
            return (h, c)

        h_fin, c_fin = lax.fori_loop(
            0, T_BLK, step, (hout_ref[...], cout_ref[...]), unroll=True)
        hout_ref[...] = h_fin
        cout_ref[...] = c_fin

    return kernel


def decoder_forward(trg, encoder_hidden, src_lengths, hidden, params, *, t_blk=4):
    """trg: (B, T) int32 tokens; encoder_hidden: (B, S, 2H) f32;
       src_lengths: (B,) int32; hidden: (h0, c0), each (1, B, H) f32.
       Returns (out, hidden): out is (B, V, T), hidden = (h, c) each (1, B, H).
       Teacher forcing is fixed on (deterministic)."""
    emb = params["emb"]                            # (V, E)
    B, T = trg.shape
    _, S, twoH = encoder_hidden.shape
    H = twoH // 2
    V, E = emb.shape
    f32 = jnp.float32

    enc = encoder_hidden.astype(f32)
    h0 = hidden[0][-1].astype(f32)                 # (B, H)  (num_layers = 1)
    c0 = hidden[1][-1].astype(f32)
    srclen = src_lengths.reshape(B, 1).astype(jnp.int32)

    # Split concatenation-style weights (kernel needs no lane concat).
    wih, wpre = params["wih"].astype(f32), params["wpre"].astype(f32)
    wih_x, wih_c = wih[:, :E], wih[:, E:]                       # (4H,E), (4H,2H)
    wpre_x, wpre_h, wpre_c = wpre[:, :E], wpre[:, E:E + H], wpre[:, E + H:]

    # ---- Non-recurrent work hoisted to batched XLA matmuls ----
    x_all = emb[trg].astype(f32)                   # (B, T, E) teacher-forced inputs
    x_flat = x_all.reshape(B * T, E)
    bias = (params["bih"] + params["bhh"]).astype(f32)          # (1, 4H)
    xih_all = (x_flat @ wih_x.T + bias).reshape(B, T, 4 * H)
    xpre_all = (x_flat @ wpre_x.T).reshape(B, T, H)
    xih_all = jnp.transpose(xih_all, (1, 0, 2))    # (T, B, 4H) time-major
    xpre_all = jnp.transpose(xpre_all, (1, 0, 2))  # (T, B, H)
    pk = enc @ params["wk"].T.astype(f32)          # (B, S, H) proj_key

    # Pad T to a multiple of the decode-step block size.
    t_blk = max(1, min(t_blk, T))
    n_blk = pl.cdiv(T, t_blk)
    T_pad = n_blk * t_blk
    if T_pad != T:
        pad = ((0, T_pad - T), (0, 0), (0, 0))
        xih_all = jnp.pad(xih_all, pad)
        xpre_all = jnp.pad(xpre_all, pad)

    # Pre-transposed weights: native (M,K)@(K,N) MXU feed inside the kernel.
    wq_t = params["wq"].T.astype(f32)              # (H, H)
    we = params["we"].astype(f32)                  # (1, H)
    wihc_t = wih_c.T                               # (2H, 4H)
    whh_t = params["whh"].T.astype(f32)            # (H, 4H)
    wpreh_t = wpre_h.T                             # (H, H)
    wprec_t = wpre_c.T                             # (2H, H)

    def const(shape):
        return pl.BlockSpec(shape, lambda i: (0,) * len(shape))

    grid_spec = pltpu.PrefetchScalarGridSpec(
        num_scalar_prefetch=0,
        grid=(n_blk,),
        in_specs=[
            pl.BlockSpec((t_blk, B, 4 * H), lambda i: (i, 0, 0)),  # xih
            pl.BlockSpec((t_blk, B, H), lambda i: (i, 0, 0)),      # xpre
            const((B, S, twoH)),                                   # enc
            const((B, S, H)),                                      # proj_key
            const((B, 1)),                                         # src lengths
            const((B, H)), const((B, H)),                          # h0, c0
            const((H, H)), const((1, H)),                          # wq_t, we
            const((twoH, 4 * H)), const((H, 4 * H)),               # wihc_t, whh_t
            const((H, H)), const((twoH, H)),                       # wpreh_t, wprec_t
        ],
        out_specs=[
            pl.BlockSpec((t_blk, B, H), lambda i: (i, 0, 0)),      # per-step pre
            const((B, H)), const((B, H)),                          # final h, c
        ],
        scratch_shapes=[],
    )

    kernel = _make_kernel(T, t_blk, H)
    pre_all, h_out, c_out = pl.pallas_call(
        kernel,
        out_shape=(
            jax.ShapeDtypeStruct((T_pad, B, H), f32),
            jax.ShapeDtypeStruct((B, H), f32),
            jax.ShapeDtypeStruct((B, H), f32),
        ),
        grid_spec=grid_spec,
        compiler_params=pltpu.CompilerParams(
            dimension_semantics=("arbitrary",)),   # sequential recurrence
    )(xih_all, xpre_all, enc, pk, srclen, h0, c0,
      wq_t, we, wihc_t, whh_t, wpreh_t, wprec_t)

    # ---- Generator + softmax: one big (T*B, H) @ (H, V) matmul in XLA ----
    pre_flat = pre_all[:T].reshape(T * B, H)
    logits = pre_flat @ params["wgen"].T.astype(f32)           # (T*B, V)
    probs = jax.nn.softmax(logits, axis=-1).reshape(T, B, V)
    out = jnp.transpose(probs, (1, 2, 0))                      # (B, V, T)
    return out, (h_out[None], c_out[None])


def decoder_reference(trg, encoder_hidden, src_lengths, hidden, params):
    """Pure-JAX reference mirroring the PyTorch forward (teacher forcing on)."""
    emb = params["emb"]
    B, T = trg.shape
    _, S, twoH = encoder_hidden.shape
    H = twoH // 2
    h, c = hidden[0][-1], hidden[1][-1]
    pk = encoder_hidden @ params["wk"].T
    mask = jnp.arange(S)[None, :] < src_lengths[:, None]
    outs = []
    for i in range(T):
        x = emb[trg[:, i]]
        pq = h @ params["wq"].T
        scores = jnp.sum(jnp.tanh(pq[:, None, :] + pk) * params["we"][0], axis=-1)
        scores = jnp.where(mask, scores, -jnp.inf)
        alphas = jax.nn.softmax(scores, axis=-1)
        context = jnp.einsum("bs,bsd->bd", alphas, encoder_hidden)
        rnn_in = jnp.concatenate([x, context], -1)
        gates = (rnn_in @ params["wih"].T + h @ params["whh"].T
                 + params["bih"][0] + params["bhh"][0])
        i_g = jax.nn.sigmoid(gates[:, :H]); f_g = jax.nn.sigmoid(gates[:, H:2 * H])
        g_g = jnp.tanh(gates[:, 2 * H:3 * H]); o_g = jax.nn.sigmoid(gates[:, 3 * H:])
        c = f_g * c + i_g * g_g
        h = o_g * jnp.tanh(c)
        pre = jnp.concatenate([x, h, context], -1) @ params["wpre"].T
        outs.append(jax.nn.softmax(pre @ params["wgen"].T, axis=-1))
    return jnp.stack(outs, axis=-1), (h[None], c[None])


if __name__ == "__main__":
    key = jax.random.PRNGKey(0)
    B, S, T = 2, 8, 6          # batch, src len, trg len
    E, H, V = 16, 32, 50       # emb size, hidden size, vocab size
    ks = jax.random.split(key, 16)

    def init(k, shape, scale=0.1):
        return scale * jax.random.normal(k, shape, dtype=jnp.float32)

    params = {
        "emb":  init(ks[0], (V, E), 1.0),           # trg_embed.weight
        "wk":   init(ks[1], (H, 2 * H)),            # attention.key_layer
        "wq":   init(ks[2], (H, H)),                # attention.query_layer
        "we":   init(ks[3], (1, H)),                # attention.energy_layer
        "wih":  init(ks[4], (4 * H, E + 2 * H)),    # rnn.weight_ih_l0
        "whh":  init(ks[5], (4 * H, H)),            # rnn.weight_hh_l0
        "bih":  init(ks[6], (1, 4 * H)),            # rnn.bias_ih_l0
        "bhh":  init(ks[7], (1, 4 * H)),            # rnn.bias_hh_l0
        "wpre": init(ks[8], (H, E + 3 * H)),        # pre_output_layer.weight
        "wgen": init(ks[9], (V, H)),                # generator (softmax) proj
    }
    trg = jax.random.randint(ks[10], (B, T), 0, V, dtype=jnp.int32)
    encoder_hidden = init(ks[11], (B, S, 2 * H), 1.0)
    src_lengths = jnp.array([8, 5], dtype=jnp.int32)
    h0 = init(ks[12], (1, B, H), 1.0)
    c0 = init(ks[13], (1, B, H), 1.0)

    # t_blk=4 (default) with T=6 exercises both multi-block carry and the
    # masked padded-step path.
    fwd = jax.jit(decoder_forward)
    out, hidden = fwd(trg, encoder_hidden, src_lengths, (h0, c0), params)
    out = jax.block_until_ready(out)

    ref_out, ref_hidden = decoder_reference(
        trg, encoder_hidden, src_lengths, (h0, c0), params)
    assert out.shape == (B, V, T) and hidden[0].shape == (1, B, H)
    assert jnp.allclose(out, ref_out, atol=1e-4, rtol=1e-3)
    assert jnp.allclose(hidden[0], ref_hidden[0], atol=1e-4, rtol=1e-3)
    assert jnp.allclose(hidden[1], ref_hidden[1], atol=1e-4, rtol=1e-3)
    print("KERNEL_OK")
</pallas_src>

<mosaic_0001>
module attributes {stable_mosaic.version = 11 : i64} {
  func.func @kernel(%arg0: i32, %arg1: memref<4x2x128xf32, #tpu.memory_space<vmem>>, %arg2: memref<4x2x32xf32, #tpu.memory_space<vmem>>, %arg3: memref<2x8x64xf32, #tpu.memory_space<vmem>>, %arg4: memref<2x8x32xf32, #tpu.memory_space<vmem>>, %arg5: memref<2x1xi32, #tpu.memory_space<vmem>>, %arg6: memref<2x32xf32, #tpu.memory_space<vmem>>, %arg7: memref<2x32xf32, #tpu.memory_space<vmem>>, %arg8: memref<32x32xf32, #tpu.memory_space<vmem>>, %arg9: memref<1x32xf32, #tpu.memory_space<vmem>>, %arg10: memref<64x128xf32, #tpu.memory_space<vmem>>, %arg11: memref<32x128xf32, #tpu.memory_space<vmem>>, %arg12: memref<32x32xf32, #tpu.memory_space<vmem>>, %arg13: memref<64x32xf32, #tpu.memory_space<vmem>>, %arg14: memref<4x2x32xf32, #tpu.memory_space<vmem>>, %arg15: memref<2x32xf32, #tpu.memory_space<vmem>>, %arg16: memref<2x32xf32, #tpu.memory_space<vmem>>) attributes {dimension_semantics = [#tpu.dimension_semantics<arbitrary>], iteration_bounds = array<i64: 2>, scalar_prefetch = 0 : i64, scratch_operands = 0 : i64, tpu.core_type = #tpu.core_type<tc>, window_params = [{transform_indices = @transform_0, window_bounds = array<i64: 4, 2, 128>}, {transform_indices = @transform_1, window_bounds = array<i64: 4, 2, 32>}, {pipeline_mode = #tpu.pipeline_mode<synchronous>, transform_indices = @transform_2, window_bounds = array<i64: 2, 8, 64>}, {pipeline_mode = #tpu.pipeline_mode<synchronous>, transform_indices = @transform_3, window_bounds = array<i64: 2, 8, 32>}, {pipeline_mode = #tpu.pipeline_mode<synchronous>, transform_indices = @transform_4, window_bounds = array<i64: 2, 1>}, {pipeline_mode = #tpu.pipeline_mode<synchronous>, transform_indices = @transform_5, window_bounds = array<i64: 2, 32>}, {pipeline_mode = #tpu.pipeline_mode<synchronous>, transform_indices = @transform_6, window_bounds = array<i64: 2, 32>}, {pipeline_mode = #tpu.pipeline_mode<synchronous>, transform_indices = @transform_7, window_bounds = array<i64: 32, 32>}, {pipeline_mode = #tpu.pipeline_mode<synchronous>, transform_indices = @transform_8, window_bounds = array<i64: 1, 32>}, {pipeline_mode = #tpu.pipeline_mode<synchronous>, transform_indices = @transform_9, window_bounds = array<i64: 64, 128>}, {pipeline_mode = #tpu.pipeline_mode<synchronous>, transform_indices = @transform_10, window_bounds = array<i64: 32, 128>}, {pipeline_mode = #tpu.pipeline_mode<synchronous>, transform_indices = @transform_11, window_bounds = array<i64: 32, 32>}, {pipeline_mode = #tpu.pipeline_mode<synchronous>, transform_indices = @transform_12, window_bounds = array<i64: 64, 32>}, {transform_indices = @transform_13, window_bounds = array<i64: 4, 2, 32>}, {pipeline_mode = #tpu.pipeline_mode<synchronous>, transform_indices = @transform_14, window_bounds = array<i64: 2, 32>}, {pipeline_mode = #tpu.pipeline_mode<synchronous>, transform_indices = @transform_15, window_bounds = array<i64: 2, 32>}]} {
    %c0_i32 = arith.constant 0 : i32
    %0 = arith.cmpi eq, %arg0, %c0_i32 : i32
    %1 = arith.extui %0 : i1 to i32
    %c0_i32_0 = arith.constant 0 : i32
    %2 = arith.cmpi ne, %1, %c0_i32_0 : i32
    scf.if %2 {
      %c0_119 = arith.constant 0 : index
      %c0_120 = arith.constant 0 : index
      %356 = vector.load %arg6[%c0_119, %c0_120] : memref<2x32xf32, #tpu.memory_space<vmem>>, vector<2x32xf32>
      %c0_121 = arith.constant 0 : index
      %c0_122 = arith.constant 0 : index
      %357 = vector.load %arg15[%c0_121, %c0_122] : memref<2x32xf32, #tpu.memory_space<vmem>>, vector<2x32xf32>
      tpu.vector_store %arg15[%c0_121, %c0_122], %356 {strides = array<i32>} : memref<2x32xf32, #tpu.memory_space<vmem>>, vector<2x32xf32>,
      %c0_123 = arith.constant 0 : index
      %c0_124 = arith.constant 0 : index
      %358 = vector.load %arg7[%c0_123, %c0_124] : memref<2x32xf32, #tpu.memory_space<vmem>>, vector<2x32xf32>
      %c0_125 = arith.constant 0 : index
      %c0_126 = arith.constant 0 : index
      %359 = vector.load %arg16[%c0_125, %c0_126] : memref<2x32xf32, #tpu.memory_space<vmem>>, vector<2x32xf32>
      tpu.vector_store %arg16[%c0_125, %c0_126], %358 {strides = array<i32>} : memref<2x32xf32, #tpu.memory_space<vmem>>, vector<2x32xf32>,
    } else {
    }
    %c0 = arith.constant 0 : index
    %c0_1 = arith.constant 0 : index
    %c0_2 = arith.constant 0 : index
    %3 = vector.load %arg3[%c0, %c0_1, %c0_2] : memref<2x8x64xf32, #tpu.memory_space<vmem>>, vector<2x8x64xf32>
    %c0_3 = arith.constant 0 : index
    %c0_4 = arith.constant 0 : index
    %c0_5 = arith.constant 0 : index
    %4 = vector.load %arg4[%c0_3, %c0_4, %c0_5] : memref<2x8x32xf32, #tpu.memory_space<vmem>>, vector<2x8x32xf32>
    %c0_6 = arith.constant 0 : index
    %c0_7 = arith.constant 0 : index
    %5 = vector.load %arg9[%c0_6, %c0_7] : memref<1x32xf32, #tpu.memory_space<vmem>>, vector<1x32xf32>
    %6 = vector.shape_cast %5 : vector<1x32xf32> to vector<32xf32>
    %c0_8 = arith.constant 0 : index
    %c0_9 = arith.constant 0 : index
    %7 = vector.load %arg8[%c0_8, %c0_9] : memref<32x32xf32, #tpu.memory_space<vmem>>, vector<32x32xf32>
    %c0_10 = arith.constant 0 : index
    %c0_11 = arith.constant 0 : index
    %8 = vector.load %arg10[%c0_10, %c0_11] : memref<64x128xf32, #tpu.memory_space<vmem>>, vector<64x128xf32>
    %c0_12 = arith.constant 0 : index
    %c0_13 = arith.constant 0 : index
    %9 = vector.load %arg11[%c0_12, %c0_13] : memref<32x128xf32, #tpu.memory_space<vmem>>, vector<32x128xf32>
    %c0_14 = arith.constant 0 : index
    %c0_15 = arith.constant 0 : index
    %10 = vector.load %arg12[%c0_14, %c0_15] : memref<32x32xf32, #tpu.memory_space<vmem>>, vector<32x32xf32>
    %c0_16 = arith.constant 0 : index
    %c0_17 = arith.constant 0 : index
    %11 = vector.load %arg13[%c0_16, %c0_17] : memref<64x32xf32, #tpu.memory_space<vmem>>, vector<64x32xf32>
    %12 = tpu.iota {dimensions = array<i32: 1>} : vector<2x8xi32>
    %c0_18 = arith.constant 0 : index
    %c0_19 = arith.constant 0 : index
    %13 = vector.load %arg5[%c0_18, %c0_19] : memref<2x1xi32, #tpu.memory_space<vmem>>, vector<2x1xi32>
    %14 = vector.broadcast %13 : vector<2x1xi32> to vector<2x8xi32>
    %15 = arith.cmpi slt, %12, %14 : vector<2x8xi32>
    %c0_20 = arith.constant 0 : index
    %c0_21 = arith.constant 0 : index
    %16 = vector.load %arg15[%c0_20, %c0_21] : memref<2x32xf32, #tpu.memory_space<vmem>>, vector<2x32xf32>
    %c0_22 = arith.constant 0 : index
    %c0_23 = arith.constant 0 : index
    %17 = vector.load %arg16[%c0_22, %c0_23] : memref<2x32xf32, #tpu.memory_space<vmem>>, vector<2x32xf32>
    %c0_i32_24 = arith.constant 0 : i32
    %cst = arith.constant dense<0.000000e+00> : vector<2x32xf32>
    %18 = tpu.matmul %16, %7, %cst {dimension_numbers = #tpu.dot_dimension_numbers<[1], [0], [0], [1], [0, 0, 1, 1], [], []>} : vector<2x32xf32>, vector<32x32xf32>, vector<2x32xf32> -> vector<2x32xf32>
    %19 = vector.shape_cast %18 : vector<2x32xf32> to vector<2x1x32xf32>
    %20 = vector.broadcast %19 : vector<2x1x32xf32> to vector<2x8x32xf32>
    %21 = arith.addf %20, %4 : vector<2x8x32xf32>
    %22 = math.tanh %21 : vector<2x8x32xf32>
    %23 = vector.shape_cast %6 : vector<32xf32> to vector<1x1x32xf32>
    %24 = vector.broadcast %23 : vector<1x1x32xf32> to vector<2x8x32xf32>
    %25 = arith.mulf %22, %24 : vector<2x8x32xf32>
    %cst_25 = arith.constant dense<0.000000e+00> : vector<2x8xf32>
    %26 = vector.multi_reduction <add>, %25, %cst_25 [2] : vector<2x8x32xf32> to vector<2x8xf32>
    %cst_26 = arith.constant -1.000000e+30 : f32
    %27 = vector.broadcast %cst_26 : f32 to vector<2x8xf32>
    %28 = arith.select %15, %26, %27 : vector<2x8xi1>, vector<2x8xf32>
    %cst_27 = arith.constant dense<0xFF800000> : vector<2xf32>
    %29 = vector.multi_reduction <maximumf>, %28, %cst_27 [1] : vector<2x8xf32> to vector<2xf32>
    %30 = vector.shape_cast %29 : vector<2xf32> to vector<2x1xf32>
    %31 = vector.broadcast %30 : vector<2x1xf32> to vector<2x8xf32>
    %32 = arith.subf %28, %31 : vector<2x8xf32>
    %33 = math.exp %32 : vector<2x8xf32>
    %cst_28 = arith.constant dense<0.000000e+00> : vector<2xf32>
    %34 = vector.multi_reduction <add>, %33, %cst_28 [1] : vector<2x8xf32> to vector<2xf32>
    %35 = vector.shape_cast %34 : vector<2xf32> to vector<2x1xf32>
    %36 = vector.broadcast %35 : vector<2x1xf32> to vector<2x8xf32>
    %37 = arith.divf %33, %36 : vector<2x8xf32>
    %38 = vector.shape_cast %37 : vector<2x8xf32> to vector<2x8x1xf32>
    %39 = vector.broadcast %38 : vector<2x8x1xf32> to vector<2x8x64xf32>
    %40 = arith.mulf %39, %3 : vector<2x8x64xf32>
    %cst_29 = arith.constant dense<0.000000e+00> : vector<2x64xf32>
    %41 = vector.multi_reduction <add>, %40, %cst_29 [1] : vector<2x8x64xf32> to vector<2x64xf32>
    %42 = arith.index_cast %c0_i32_24 : i32 to index
    %c0_30 = arith.constant 0 : index
    %c0_31 = arith.constant 0 : index
    %43 = vector.load %arg1[%42, %c0_30, %c0_31] : memref<4x2x128xf32, #tpu.memory_space<vmem>>, vector<1x2x128xf32>
    %44 = vector.shape_cast %43 : vector<1x2x128xf32> to vector<2x128xf32>
    %cst_32 = arith.constant dense<0.000000e+00> : vector<2x128xf32>
    %45 = tpu.matmul %41, %8, %cst_32 {dimension_numbers = #tpu.dot_dimension_numbers<[1], [0], [0], [1], [0, 0, 1, 1], [], []>} : vector<2x64xf32>, vector<64x128xf32>, vector<2x128xf32> -> vector<2x128xf32>
    %46 = arith.addf %44, %45 : vector<2x128xf32>
    %cst_33 = arith.constant dense<0.000000e+00> : vector<2x128xf32>
    %47 = tpu.matmul %16, %9, %cst_33 {dimension_numbers = #tpu.dot_dimension_numbers<[1], [0], [0], [1], [0, 0, 1, 1], [], []>} : vector<2x32xf32>, vector<32x128xf32>, vector<2x128xf32> -> vector<2x128xf32>
    %48 = arith.addf %46, %47 : vector<2x128xf32>
    %49 = vector.extract_strided_slice %48 {offsets = [0, 0], sizes = [2, 32], strides = [1, 1]} : vector<2x128xf32> to vector<2x32xf32>
    %50 = arith.negf %49 : vector<2x32xf32>
    %51 = math.exp %50 : vector<2x32xf32>
    %cst_34 = arith.constant 1.000000e+00 : f32
    %52 = vector.broadcast %cst_34 : f32 to vector<2x32xf32>
    %53 = arith.addf %52, %51 : vector<2x32xf32>
    %54 = arith.divf %52, %53 : vector<2x32xf32>
    %55 = vector.extract_strided_slice %48 {offsets = [0, 32], sizes = [2, 32], strides = [1, 1]} : vector<2x128xf32> to vector<2x32xf32>
    %56 = arith.negf %55 : vector<2x32xf32>
    %57 = math.exp %56 : vector<2x32xf32>
    %cst_35 = arith.constant 1.000000e+00 : f32
    %58 = vector.broadcast %cst_35 : f32 to vector<2x32xf32>
    %59 = arith.addf %58, %57 : vector<2x32xf32>
    %60 = arith.divf %58, %59 : vector<2x32xf32>
    %61 = vector.extract_strided_slice %48 {offsets = [0, 64], sizes = [2, 32], strides = [1, 1]} : vector<2x128xf32> to vector<2x32xf32>
    %62 = math.tanh %61 : vector<2x32xf32>
    %63 = vector.extract_strided_slice %48 {offsets = [0, 96], sizes = [2, 32], strides = [1, 1]} : vector<2x128xf32> to vector<2x32xf32>
    %64 = arith.negf %63 : vector<2x32xf32>
    %65 = math.exp %64 : vector<2x32xf32>
    %cst_36 = arith.constant 1.000000e+00 : f32
    %66 = vector.broadcast %cst_36 : f32 to vector<2x32xf32>
    %67 = arith.addf %66, %65 : vector<2x32xf32>
    %68 = arith.divf %66, %67 : vector<2x32xf32>
    %69 = arith.mulf %60, %17 : vector<2x32xf32>
    %70 = arith.mulf %54, %62 : vector<2x32xf32>
    %71 = arith.addf %69, %70 : vector<2x32xf32>
    %72 = math.tanh %71 : vector<2x32xf32>
    %73 = arith.mulf %68, %72 : vector<2x32xf32>
    %74 = arith.index_cast %c0_i32_24 : i32 to index
    %c0_37 = arith.constant 0 : index
    %c0_38 = arith.constant 0 : index
    %75 = vector.load %arg2[%74, %c0_37, %c0_38] : memref<4x2x32xf32, #tpu.memory_space<vmem>>, vector<1x2x32xf32>
    %76 = vector.shape_cast %75 : vector<1x2x32xf32> to vector<2x32xf32>
    %cst_39 = arith.constant dense<0.000000e+00> : vector<2x32xf32>
    %77 = tpu.matmul %73, %10, %cst_39 {dimension_numbers = #tpu.dot_dimension_numbers<[1], [0], [0], [1], [0, 0, 1, 1], [], []>} : vector<2x32xf32>, vector<32x32xf32>, vector<2x32xf32> -> vector<2x32xf32>
    %78 = arith.addf %76, %77 : vector<2x32xf32>
    %cst_40 = arith.constant dense<0.000000e+00> : vector<2x32xf32>
    %79 = tpu.matmul %41, %11, %cst_40 {dimension_numbers = #tpu.dot_dimension_numbers<[1], [0], [0], [1], [0, 0, 1, 1], [], []>} : vector<2x64xf32>, vector<64x32xf32>, vector<2x32xf32> -> vector<2x32xf32>
    %80 = arith.addf %78, %79 : vector<2x32xf32>
    %81 = arith.index_cast %c0_i32_24 : i32 to index
    %c0_41 = arith.constant 0 : index
    %c0_42 = arith.constant 0 : index
    %82 = vector.load %arg14[%81, %c0_41, %c0_42] : memref<4x2x32xf32, #tpu.memory_space<vmem>>, vector<1x2x32xf32>
    %83 = vector.shape_cast %82 : vector<1x2x32xf32> to vector<2x32xf32>
    %84 = vector.shape_cast %80 : vector<2x32xf32> to vector<1x2x32xf32>
    tpu.vector_store %arg14[%81, %c0_41, %c0_42], %84 {strides = array<i32>} : memref<4x2x32xf32, #tpu.memory_space<vmem>>, vector<1x2x32xf32>,
    %c4_i32 = arith.constant 4 : i32
    %85 = arith.muli %arg0, %c4_i32 : i32
    %86 = arith.addi %85, %c0_i32_24 : i32
    %c6_i32 = arith.constant 6 : i32
    %87 = arith.cmpi slt, %86, %c6_i32 : i32
    %88 = arith.extui %87 : i1 to i32
    %89 = arith.sitofp %88 : i32 to f32
    %90 = vector.broadcast %89 : f32 to vector<2x32xf32>
    %91 = arith.mulf %90, %73 : vector<2x32xf32>
    %cst_43 = arith.constant 1.000000e+00 : f32
    %92 = arith.subf %cst_43, %89 : f32
    %93 = vector.broadcast %92 : f32 to vector<2x32xf32>
    %94 = arith.mulf %93, %16 : vector<2x32xf32>
    %95 = arith.addf %91, %94 : vector<2x32xf32>
    %96 = vector.broadcast %89 : f32 to vector<2x32xf32>
    %97 = arith.mulf %96, %71 : vector<2x32xf32>
    %cst_44 = arith.constant 1.000000e+00 : f32
    %98 = arith.subf %cst_44, %89 : f32
    %99 = vector.broadcast %98 : f32 to vector<2x32xf32>
    %100 = arith.mulf %99, %17 : vector<2x32xf32>
    %101 = arith.addf %97, %100 : vector<2x32xf32>
    %c1_i32 = arith.constant 1 : i32
    %cst_45 = arith.constant dense<0.000000e+00> : vector<2x32xf32>
    %102 = tpu.matmul %95, %7, %cst_45 {dimension_numbers = #tpu.dot_dimension_numbers<[1], [0], [0], [1], [0, 0, 1, 1], [], []>} : vector<2x32xf32>, vector<32x32xf32>, vector<2x32xf32> -> vector<2x32xf32>
    %103 = vector.shape_cast %102 : vector<2x32xf32> to vector<2x1x32xf32>
    %104 = vector.broadcast %103 : vector<2x1x32xf32> to vector<2x8x32xf32>
    %105 = arith.addf %104, %4 : vector<2x8x32xf32>
    %106 = math.tanh %105 : vector<2x8x32xf32>
    %107 = vector.shape_cast %6 : vector<32xf32> to vector<1x1x32xf32>
    %108 = vector.broadcast %107 : vector<1x1x32xf32> to vector<2x8x32xf32>
    %109 = arith.mulf %106, %108 : vector<2x8x32xf32>
    %cst_46 = arith.constant dense<0.000000e+00> : vector<2x8xf32>
    %110 = vector.multi_reduction <add>, %109, %cst_46 [2] : vector<2x8x32xf32> to vector<2x8xf32>
    %cst_47 = arith.constant -1.000000e+30 : f32
    %111 = vector.broadcast %cst_47 : f32 to vector<2x8xf32>
    %112 = arith.select %15, %110, %111 : vector<2x8xi1>, vector<2x8xf32>
    %cst_48 = arith.constant dense<0xFF800000> : vector<2xf32>
    %113 = vector.multi_reduction <maximumf>, %112, %cst_48 [1] : vector<2x8xf32> to vector<2xf32>
    %114 = vector.shape_cast %113 : vector<2xf32> to vector<2x1xf32>
    %115 = vector.broadcast %114 : vector<2x1xf32> to vector<2x8xf32>
    %116 = arith.subf %112, %115 : vector<2x8xf32>
    %117 = math.exp %116 : vector<2x8xf32>
    %cst_49 = arith.constant dense<0.000000e+00> : vector<2xf32>
    %118 = vector.multi_reduction <add>, %117, %cst_49 [1] : vector<2x8xf32> to vector<2xf32>
    %119 = vector.shape_cast %118 : vector<2xf32> to vector<2x1xf32>
    %120 = vector.broadcast %119 : vector<2x1xf32> to vector<2x8xf32>
    %121 = arith.divf %117, %120 : vector<2x8xf32>
    %122 = vector.shape_cast %121 : vector<2x8xf32> to vector<2x8x1xf32>
    %123 = vector.broadcast %122 : vector<2x8x1xf32> to vector<2x8x64xf32>
    %124 = arith.mulf %123, %3 : vector<2x8x64xf32>
    %cst_50 = arith.constant dense<0.000000e+00> : vector<2x64xf32>
    %125 = vector.multi_reduction <add>, %124, %cst_50 [1] : vector<2x8x64xf32> to vector<2x64xf32>
    %126 = arith.index_cast %c1_i32 : i32 to index
    %c0_51 = arith.constant 0 : index
    %c0_52 = arith.constant 0 : index
    %127 = vector.load %arg1[%126, %c0_51, %c0_52] : memref<4x2x128xf32, #tpu.memory_space<vmem>>, vector<1x2x128xf32>
    %128 = vector.shape_cast %127 : vector<1x2x128xf32> to vector<2x128xf32>
    %cst_53 = arith.constant dense<0.000000e+00> : vector<2x128xf32>
    %129 = tpu.matmul %125, %8, %cst_53 {dimension_numbers = #tpu.dot_dimension_numbers<[1], [0], [0], [1], [0, 0, 1, 1], [], []>} : vector<2x64xf32>, vector<64x128xf32>, vector<2x128xf32> -> vector<2x128xf32>
    %130 = arith.addf %128, %129 : vector<2x128xf32>
    %cst_54 = arith.constant dense<0.000000e+00> : vector<2x128xf32>
    %131 = tpu.matmul %95, %9, %cst_54 {dimension_numbers = #tpu.dot_dimension_numbers<[1], [0], [0], [1], [0, 0, 1, 1], [], []>} : vector<2x32xf32>, vector<32x128xf32>, vector<2x128xf32> -> vector<2x128xf32>
    %132 = arith.addf %130, %131 : vector<2x128xf32>
    %133 = vector.extract_strided_slice %132 {offsets = [0, 0], sizes = [2, 32], strides = [1, 1]} : vector<2x128xf32> to vector<2x32xf32>
    %134 = arith.negf %133 : vector<2x32xf32>
    %135 = math.exp %134 : vector<2x32xf32>
    %cst_55 = arith.constant 1.000000e+00 : f32
    %136 = vector.broadcast %cst_55 : f32 to vector<2x32xf32>
    %137 = arith.addf %136, %135 : vector<2x32xf32>
    %138 = arith.divf %136, %137 : vector<2x32xf32>
    %139 = vector.extract_strided_slice %132 {offsets = [0, 32], sizes = [2, 32], strides = [1, 1]} : vector<2x128xf32> to vector<2x32xf32>
    %140 = arith.negf %139 : vector<2x32xf32>
    %141 = math.exp %140 : vector<2x32xf32>
    %cst_56 = arith.constant 1.000000e+00 : f32
    %142 = vector.broadcast %cst_56 : f32 to vector<2x32xf32>
    %143 = arith.addf %142, %141 : vector<2x32xf32>
    %144 = arith.divf %142, %143 : vector<2x32xf32>
    %145 = vector.extract_strided_slice %132 {offsets = [0, 64], sizes = [2, 32], strides = [1, 1]} : vector<2x128xf32> to vector<2x32xf32>
    %146 = math.tanh %145 : vector<2x32xf32>
    %147 = vector.extract_strided_slice %132 {offsets = [0, 96], sizes = [2, 32], strides = [1, 1]} : vector<2x128xf32> to vector<2x32xf32>
    %148 = arith.negf %147 : vector<2x32xf32>
    %149 = math.exp %148 : vector<2x32xf32>
    %cst_57 = arith.constant 1.000000e+00 : f32
    %150 = vector.broadcast %cst_57 : f32 to vector<2x32xf32>
    %151 = arith.addf %150, %149 : vector<2x32xf32>
    %152 = arith.divf %150, %151 : vector<2x32xf32>
    %153 = arith.mulf %144, %101 : vector<2x32xf32>
    %154 = arith.mulf %138, %146 : vector<2x32xf32>
    %155 = arith.addf %153, %154 : vector<2x32xf32>
    %156 = math.tanh %155 : vector<2x32xf32>
    %157 = arith.mulf %152, %156 : vector<2x32xf32>
    %158 = arith.index_cast %c1_i32 : i32 to index
    %c0_58 = arith.constant 0 : index
    %c0_59 = arith.constant 0 : index
    %159 = vector.load %arg2[%158, %c0_58, %c0_59] : memref<4x2x32xf32, #tpu.memory_space<vmem>>, vector<1x2x32xf32>
    %160 = vector.shape_cast %159 : vector<1x2x32xf32> to vector<2x32xf32>
    %cst_60 = arith.constant dense<0.000000e+00> : vector<2x32xf32>
    %161 = tpu.matmul %157, %10, %cst_60 {dimension_numbers = #tpu.dot_dimension_numbers<[1], [0], [0], [1], [0, 0, 1, 1], [], []>} : vector<2x32xf32>, vector<32x32xf32>, vector<2x32xf32> -> vector<2x32xf32>
    %162 = arith.addf %160, %161 : vector<2x32xf32>
    %cst_61 = arith.constant dense<0.000000e+00> : vector<2x32xf32>
    %163 = tpu.matmul %125, %11, %cst_61 {dimension_numbers = #tpu.dot_dimension_numbers<[1], [0], [0], [1], [0, 0, 1, 1], [], []>} : vector<2x64xf32>, vector<64x32xf32>, vector<2x32xf32> -> vector<2x32xf32>
    %164 = arith.addf %162, %163 : vector<2x32xf32>
    %165 = arith.index_cast %c1_i32 : i32 to index
    %c0_62 = arith.constant 0 : index
    %c0_63 = arith.constant 0 : index
    %166 = vector.load %arg14[%165, %c0_62, %c0_63] : memref<4x2x32xf32, #tpu.memory_space<vmem>>, vector<1x2x32xf32>
    %167 = vector.shape_cast %166 : vector<1x2x32xf32> to vector<2x32xf32>
    %168 = vector.shape_cast %164 : vector<2x32xf32> to vector<1x2x32xf32>
    tpu.vector_store %arg14[%165, %c0_62, %c0_63], %168 {strides = array<i32>} : memref<4x2x32xf32, #tpu.memory_space<vmem>>, vector<1x2x32xf32>,
    %c4_i32_64 = arith.constant 4 : i32
    %169 = arith.muli %arg0, %c4_i32_64 : i32
    %170 = arith.addi %169, %c1_i32 : i32
    %c6_i32_65 = arith.constant 6 : i32
    %171 = arith.cmpi slt, %170, %c6_i32_65 : i32
    %172 = arith.extui %171 : i1 to i32
    %173 = arith.sitofp %172 : i32 to f32
    %174 = vector.broadcast %173 : f32 to vector<2x32xf32>
    %175 = arith.mulf %174, %157 : vector<2x32xf32>
    %cst_66 = arith.constant 1.000000e+00 : f32
    %176 = arith.subf %cst_66, %173 : f32
    %177 = vector.broadcast %176 : f32 to vector<2x32xf32>
    %178 = arith.mulf %177, %95 : vector<2x32xf32>
    %179 = arith.addf %175, %178 : vector<2x32xf32>
    %180 = vector.broadcast %173 : f32 to vector<2x32xf32>
    %181 = arith.mulf %180, %155 : vector<2x32xf32>
    %cst_67 = arith.constant 1.000000e+00 : f32
    %182 = arith.subf %cst_67, %173 : f32
    %183 = vector.broadcast %182 : f32 to vector<2x32xf32>
    %184 = arith.mulf %183, %101 : vector<2x32xf32>
    %185 = arith.addf %181, %184 : vector<2x32xf32>
    %c2_i32 = arith.constant 2 : i32
    %cst_68 = arith.constant dense<0.000000e+00> : vector<2x32xf32>
    %186 = tpu.matmul %179, %7, %cst_68 {dimension_numbers = #tpu.dot_dimension_numbers<[1], [0], [0], [1], [0, 0, 1, 1], [], []>} : vector<2x32xf32>, vector<32x32xf32>, vector<2x32xf32> -> vector<2x32xf32>
    %187 = vector.shape_cast %186 : vector<2x32xf32> to vector<2x1x32xf32>
    %188 = vector.broadcast %187 : vector<2x1x32xf32> to vector<2x8x32xf32>
    %189 = arith.addf %188, %4 : vector<2x8x32xf32>
    %190 = math.tanh %189 : vector<2x8x32xf32>
    %191 = vector.shape_cast %6 : vector<32xf32> to vector<1x1x32xf32>
    %192 = vector.broadcast %191 : vector<1x1x32xf32> to vector<2x8x32xf32>
    %193 = arith.mulf %190, %192 : vector<2x8x32xf32>
    %cst_69 = arith.constant dense<0.000000e+00> : vector<2x8xf32>
    %194 = vector.multi_reduction <add>, %193, %cst_69 [2] : vector<2x8x32xf32> to vector<2x8xf32>
    %cst_70 = arith.constant -1.000000e+30 : f32
    %195 = vector.broadcast %cst_70 : f32 to vector<2x8xf32>
    %196 = arith.select %15, %194, %195 : vector<2x8xi1>, vector<2x8xf32>
    %cst_71 = arith.constant dense<0xFF800000> : vector<2xf32>
    %197 = vector.multi_reduction <maximumf>, %196, %cst_71 [1] : vector<2x8xf32> to vector<2xf32>
    %198 = vector.shape_cast %197 : vector<2xf32> to vector<2x1xf32>
    %199 = vector.broadcast %198 : vector<2x1xf32> to vector<2x8xf32>
    %200 = arith.subf %196, %199 : vector<2x8xf32>
    %201 = math.exp %200 : vector<2x8xf32>
    %cst_72 = arith.constant dense<0.000000e+00> : vector<2xf32>
    %202 = vector.multi_reduction <add>, %201, %cst_72 [1] : vector<2x8xf32> to vector<2xf32>
    %203 = vector.shape_cast %202 : vector<2xf32> to vector<2x1xf32>
    %204 = vector.broadcast %203 : vector<2x1xf32> to vector<2x8xf32>
    %205 = arith.divf %201, %204 : vector<2x8xf32>
    %206 = vector.shape_cast %205 : vector<2x8xf32> to vector<2x8x1xf32>
    %207 = vector.broadcast %206 : vector<2x8x1xf32> to vector<2x8x64xf32>
    %208 = arith.mulf %207, %3 : vector<2x8x64xf32>
    %cst_73 = arith.constant dense<0.000000e+00> : vector<2x64xf32>
    %209 = vector.multi_reduction <add>, %208, %cst_73 [1] : vector<2x8x64xf32> to vector<2x64xf32>
    %210 = arith.index_cast %c2_i32 : i32 to index
    %c0_74 = arith.constant 0 : index
    %c0_75 = arith.constant 0 : index
    %211 = vector.load %arg1[%210, %c0_74, %c0_75] : memref<4x2x128xf32, #tpu.memory_space<vmem>>, vector<1x2x128xf32>
    %212 = vector.shape_cast %211 : vector<1x2x128xf32> to vector<2x128xf32>
    %cst_76 = arith.constant dense<0.000000e+00> : vector<2x128xf32>
    %213 = tpu.matmul %209, %8, %cst_76 {dimension_numbers = #tpu.dot_dimension_numbers<[1], [0], [0], [1], [0, 0, 1, 1], [], []>} : vector<2x64xf32>, vector<64x128xf32>, vector<2x128xf32> -> vector<2x128xf32>
    %214 = arith.addf %212, %213 : vector<2x128xf32>
    %cst_77 = arith.constant dense<0.000000e+00> : vector<2x128xf32>
    %215 = tpu.matmul %179, %9, %cst_77 {dimension_numbers = #tpu.dot_dimension_numbers<[1], [0], [0], [1], [0, 0, 1, 1], [], []>} : vector<2x32xf32>, vector<32x128xf32>, vector<2x128xf32> -> vector<2x128xf32>
    %216 = arith.addf %214, %215 : vector<2x128xf32>
    %217 = vector.extract_strided_slice %216 {offsets = [0, 0], sizes = [2, 32], strides = [1, 1]} : vector<2x128xf32> to vector<2x32xf32>
    %218 = arith.negf %217 : vector<2x32xf32>
    %219 = math.exp %218 : vector<2x32xf32>
    %cst_78 = arith.constant 1.000000e+00 : f32
    %220 = vector.broadcast %cst_78 : f32 to vector<2x32xf32>
    %221 = arith.addf %220, %219 : vector<2x32xf32>
    %222 = arith.divf %220, %221 : vector<2x32xf32>
    %223 = vector.extract_strided_slice %216 {offsets = [0, 32], sizes = [2, 32], strides = [1, 1]} : vector<2x128xf32> to vector<2x32xf32>
    %224 = arith.negf %223 : vector<2x32xf32>
    %225 = math.exp %224 : vector<2x32xf32>
    %cst_79 = arith.constant 1.000000e+00 : f32
    %226 = vector.broadcast %cst_79 : f32 to vector<2x32xf32>
    %227 = arith.addf %226, %225 : vector<2x32xf32>
    %228 = arith.divf %226, %227 : vector<2x32xf32>
    %229 = vector.extract_strided_slice %216 {offsets = [0, 64], sizes = [2, 32], strides = [1, 1]} : vector<2x128xf32> to vector<2x32xf32>
    %230 = math.tanh %229 : vector<2x32xf32>
    %231 = vector.extract_strided_slice %216 {offsets = [0, 96], sizes = [2, 32], strides = [1, 1]} : vector<2x128xf32> to vector<2x32xf32>
    %232 = arith.negf %231 : vector<2x32xf32>
    %233 = math.exp %232 : vector<2x32xf32>
    %cst_80 = arith.constant 1.000000e+00 : f32
    %234 = vector.broadcast %cst_80 : f32 to vector<2x32xf32>
    %235 = arith.addf %234, %233 : vector<2x32xf32>
    %236 = arith.divf %234, %235 : vector<2x32xf32>
    %237 = arith.mulf %228, %185 : vector<2x32xf32>
    %238 = arith.mulf %222, %230 : vector<2x32xf32>
    %239 = arith.addf %237, %238 : vector<2x32xf32>
    %240 = math.tanh %239 : vector<2x32xf32>
    %241 = arith.mulf %236, %240 : vector<2x32xf32>
    %242 = arith.index_cast %c2_i32 : i32 to index
    %c0_81 = arith.constant 0 : index
    %c0_82 = arith.constant 0 : index
    %243 = vector.load %arg2[%242, %c0_81, %c0_82] : memref<4x2x32xf32, #tpu.memory_space<vmem>>, vector<1x2x32xf32>
    %244 = vector.shape_cast %243 : vector<1x2x32xf32> to vector<2x32xf32>
    %cst_83 = arith.constant dense<0.000000e+00> : vector<2x32xf32>
    %245 = tpu.matmul %241, %10, %cst_83 {dimension_numbers = #tpu.dot_dimension_numbers<[1], [0], [0], [1], [0, 0, 1, 1], [], []>} : vector<2x32xf32>, vector<32x32xf32>, vector<2x32xf32> -> vector<2x32xf32>
    %246 = arith.addf %244, %245 : vector<2x32xf32>
    %cst_84 = arith.constant dense<0.000000e+00> : vector<2x32xf32>
    %247 = tpu.matmul %209, %11, %cst_84 {dimension_numbers = #tpu.dot_dimension_numbers<[1], [0], [0], [1], [0, 0, 1, 1], [], []>} : vector<2x64xf32>, vector<64x32xf32>, vector<2x32xf32> -> vector<2x32xf32>
    %248 = arith.addf %246, %247 : vector<2x32xf32>
    %249 = arith.index_cast %c2_i32 : i32 to index
    %c0_85 = arith.constant 0 : index
    %c0_86 = arith.constant 0 : index
    %250 = vector.load %arg14[%249, %c0_85, %c0_86] : memref<4x2x32xf32, #tpu.memory_space<vmem>>, vector<1x2x32xf32>
    %251 = vector.shape_cast %250 : vector<1x2x32xf32> to vector<2x32xf32>
    %252 = vector.shape_cast %248 : vector<2x32xf32> to vector<1x2x32xf32>
    tpu.vector_store %arg14[%249, %c0_85, %c0_86], %252 {strides = array<i32>} : memref<4x2x32xf32, #tpu.memory_space<vmem>>, vector<1x2x32xf32>,
    %c4_i32_87 = arith.constant 4 : i32
    %253 = arith.muli %arg0, %c4_i32_87 : i32
    %254 = arith.addi %253, %c2_i32 : i32
    %c6_i32_88 = arith.constant 6 : i32
    %255 = arith.cmpi slt, %254, %c6_i32_88 : i32
    %256 = arith.extui %255 : i1 to i32
    %257 = arith.sitofp %256 : i32 to f32
    %258 = vector.broadcast %257 : f32 to vector<2x32xf32>
    %259 = arith.mulf %258, %241 : vector<2x32xf32>
    %cst_89 = arith.constant 1.000000e+00 : f32
    %260 = arith.subf %cst_89, %257 : f32
    %261 = vector.broadcast %260 : f32 to vector<2x32xf32>
    %262 = arith.mulf %261, %179 : vector<2x32xf32>
    %263 = arith.addf %259, %262 : vector<2x32xf32>
    %264 = vector.broadcast %257 : f32 to vector<2x32xf32>
    %265 = arith.mulf %264, %239 : vector<2x32xf32>
    %cst_90 = arith.constant 1.000000e+00 : f32
    %266 = arith.subf %cst_90, %257 : f32
    %267 = vector.broadcast %266 : f32 to vector<2x32xf32>
    %268 = arith.mulf %267, %185 : vector<2x32xf32>
    %269 = arith.addf %265, %268 : vector<2x32xf32>
    %c3_i32 = arith.constant 3 : i32
    %cst_91 = arith.constant dense<0.000000e+00> : vector<2x32xf32>
    %270 = tpu.matmul %263, %7, %cst_91 {dimension_numbers = #tpu.dot_dimension_numbers<[1], [0], [0], [1], [0, 0, 1, 1], [], []>} : vector<2x32xf32>, vector<32x32xf32>, vector<2x32xf32> -> vector<2x32xf32>
    %271 = vector.shape_cast %270 : vector<2x32xf32> to vector<2x1x32xf32>
    %272 = vector.broadcast %271 : vector<2x1x32xf32> to vector<2x8x32xf32>
    %273 = arith.addf %272, %4 : vector<2x8x32xf32>
    %274 = math.tanh %273 : vector<2x8x32xf32>
    %275 = vector.shape_cast %6 : vector<32xf32> to vector<1x1x32xf32>
    %276 = vector.broadcast %275 : vector<1x1x32xf32> to vector<2x8x32xf32>
    %277 = arith.mulf %274, %276 : vector<2x8x32xf32>
    %cst_92 = arith.constant dense<0.000000e+00> : vector<2x8xf32>
    %278 = vector.multi_reduction <add>, %277, %cst_92 [2] : vector<2x8x32xf32> to vector<2x8xf32>
    %cst_93 = arith.constant -1.000000e+30 : f32
    %279 = vector.broadcast %cst_93 : f32 to vector<2x8xf32>
    %280 = arith.select %15, %278, %279 : vector<2x8xi1>, vector<2x8xf32>
    %cst_94 = arith.constant dense<0xFF800000> : vector<2xf32>
    %281 = vector.multi_reduction <maximumf>, %280, %cst_94 [1] : vector<2x8xf32> to vector<2xf32>
    %282 = vector.shape_cast %281 : vector<2xf32> to vector<2x1xf32>
    %283 = vector.broadcast %282 : vector<2x1xf32> to vector<2x8xf32>
    %284 = arith.subf %280, %283 : vector<2x8xf32>
    %285 = math.exp %284 : vector<2x8xf32>
    %cst_95 = arith.constant dense<0.000000e+00> : vector<2xf32>
    %286 = vector.multi_reduction <add>, %285, %cst_95 [1] : vector<2x8xf32> to vector<2xf32>
    %287 = vector.shape_cast %286 : vector<2xf32> to vector<2x1xf32>
    %288 = vector.broadcast %287 : vector<2x1xf32> to vector<2x8xf32>
    %289 = arith.divf %285, %288 : vector<2x8xf32>
    %290 = vector.shape_cast %289 : vector<2x8xf32> to vector<2x8x1xf32>
    %291 = vector.broadcast %290 : vector<2x8x1xf32> to vector<2x8x64xf32>
    %292 = arith.mulf %291, %3 : vector<2x8x64xf32>
    %cst_96 = arith.constant dense<0.000000e+00> : vector<2x64xf32>
    %293 = vector.multi_reduction <add>, %292, %cst_96 [1] : vector<2x8x64xf32> to vector<2x64xf32>
    %294 = arith.index_cast %c3_i32 : i32 to index
    %c0_97 = arith.constant 0 : index
    %c0_98 = arith.constant 0 : index
    %295 = vector.load %arg1[%294, %c0_97, %c0_98] : memref<4x2x128xf32, #tpu.memory_space<vmem>>, vector<1x2x128xf32>
    %296 = vector.shape_cast %295 : vector<1x2x128xf32> to vector<2x128xf32>
    %cst_99 = arith.constant dense<0.000000e+00> : vector<2x128xf32>
    %297 = tpu.matmul %293, %8, %cst_99 {dimension_numbers = #tpu.dot_dimension_numbers<[1], [0], [0], [1], [0, 0, 1, 1], [], []>} : vector<2x64xf32>, vector<64x128xf32>, vector<2x128xf32> -> vector<2x128xf32>
    %298 = arith.addf %296, %297 : vector<2x128xf32>
    %cst_100 = arith.constant dense<0.000000e+00> : vector<2x128xf32>
    %299 = tpu.matmul %263, %9, %cst_100 {dimension_numbers = #tpu.dot_dimension_numbers<[1], [0], [0], [1], [0, 0, 1, 1], [], []>} : vector<2x32xf32>, vector<32x128xf32>, vector<2x128xf32> -> vector<2x128xf32>
    %300 = arith.addf %298, %299 : vector<2x128xf32>
    %301 = vector.extract_strided_slice %300 {offsets = [0, 0], sizes = [2, 32], strides = [1, 1]} : vector<2x128xf32> to vector<2x32xf32>
    %302 = arith.negf %301 : vector<2x32xf32>
    %303 = math.exp %302 : vector<2x32xf32>
    %cst_101 = arith.constant 1.000000e+00 : f32
    %304 = vector.broadcast %cst_101 : f32 to vector<2x32xf32>
    %305 = arith.addf %304, %303 : vector<2x32xf32>
    %306 = arith.divf %304, %305 : vector<2x32xf32>
    %307 = vector.extract_strided_slice %300 {offsets = [0, 32], sizes = [2, 32], strides = [1, 1]} : vector<2x128xf32> to vector<2x32xf32>
    %308 = arith.negf %307 : vector<2x32xf32>
    %309 = math.exp %308 : vector<2x32xf32>
    %cst_102 = arith.constant 1.000000e+00 : f32
    %310 = vector.broadcast %cst_102 : f32 to vector<2x32xf32>
    %311 = arith.addf %310, %309 : vector<2x32xf32>
    %312 = arith.divf %310, %311 : vector<2x32xf32>
    %313 = vector.extract_strided_slice %300 {offsets = [0, 64], sizes = [2, 32], strides = [1, 1]} : vector<2x128xf32> to vector<2x32xf32>
    %314 = math.tanh %313 : vector<2x32xf32>
    %315 = vector.extract_strided_slice %300 {offsets = [0, 96], sizes = [2, 32], strides = [1, 1]} : vector<2x128xf32> to vector<2x32xf32>
    %316 = arith.negf %315 : vector<2x32xf32>
    %317 = math.exp %316 : vector<2x32xf32>
    %cst_103 = arith.constant 1.000000e+00 : f32
    %318 = vector.broadcast %cst_103 : f32 to vector<2x32xf32>
    %319 = arith.addf %318, %317 : vector<2x32xf32>
    %320 = arith.divf %318, %319 : vector<2x32xf32>
    %321 = arith.mulf %312, %269 : vector<2x32xf32>
    %322 = arith.mulf %306, %314 : vector<2x32xf32>
    %323 = arith.addf %321, %322 : vector<2x32xf32>
    %324 = math.tanh %323 : vector<2x32xf32>
    %325 = arith.mulf %320, %324 : vector<2x32xf32>
    %326 = arith.index_cast %c3_i32 : i32 to index
    %c0_104 = arith.constant 0 : index
    %c0_105 = arith.constant 0 : index
    %327 = vector.load %arg2[%326, %c0_104, %c0_105] : memref<4x2x32xf32, #tpu.memory_space<vmem>>, vector<1x2x32xf32>
    %328 = vector.shape_cast %327 : vector<1x2x32xf32> to vector<2x32xf32>
    %cst_106 = arith.constant dense<0.000000e+00> : vector<2x32xf32>
    %329 = tpu.matmul %325, %10, %cst_106 {dimension_numbers = #tpu.dot_dimension_numbers<[1], [0], [0], [1], [0, 0, 1, 1], [], []>} : vector<2x32xf32>, vector<32x32xf32>, vector<2x32xf32> -> vector<2x32xf32>
    %330 = arith.addf %328, %329 : vector<2x32xf32>
    %cst_107 = arith.constant dense<0.000000e+00> : vector<2x32xf32>
    %331 = tpu.matmul %293, %11, %cst_107 {dimension_numbers = #tpu.dot_dimension_numbers<[1], [0], [0], [1], [0, 0, 1, 1], [], []>} : vector<2x64xf32>, vector<64x32xf32>, vector<2x32xf32> -> vector<2x32xf32>
    %332 = arith.addf %330, %331 : vector<2x32xf32>
    %333 = arith.index_cast %c3_i32 : i32 to index
    %c0_108 = arith.constant 0 : index
    %c0_109 = arith.constant 0 : index
    %334 = vector.load %arg14[%333, %c0_108, %c0_109] : memref<4x2x32xf32, #tpu.memory_space<vmem>>, vector<1x2x32xf32>
    %335 = vector.shape_cast %334 : vector<1x2x32xf32> to vector<2x32xf32>
    %336 = vector.shape_cast %332 : vector<2x32xf32> to vector<1x2x32xf32>
    tpu.vector_store %arg14[%333, %c0_108, %c0_109], %336 {strides = array<i32>} : memref<4x2x32xf32, #tpu.memory_space<vmem>>, vector<1x2x32xf32>,
    %c4_i32_110 = arith.constant 4 : i32
    %337 = arith.muli %arg0, %c4_i32_110 : i32
    %338 = arith.addi %337, %c3_i32 : i32
    %c6_i32_111 = arith.constant 6 : i32
    %339 = arith.cmpi slt, %338, %c6_i32_111 : i32
    %340 = arith.extui %339 : i1 to i32
    %341 = arith.sitofp %340 : i32 to f32
    %342 = vector.broadcast %341 : f32 to vector<2x32xf32>
    %343 = arith.mulf %342, %325 : vector<2x32xf32>
    %cst_112 = arith.constant 1.000000e+00 : f32
    %344 = arith.subf %cst_112, %341 : f32
    %345 = vector.broadcast %344 : f32 to vector<2x32xf32>
    %346 = arith.mulf %345, %263 : vector<2x32xf32>
    %347 = arith.addf %343, %346 : vector<2x32xf32>
    %348 = vector.broadcast %341 : f32 to vector<2x32xf32>
    %349 = arith.mulf %348, %323 : vector<2x32xf32>
    %cst_113 = arith.constant 1.000000e+00 : f32
    %350 = arith.subf %cst_113, %341 : f32
    %351 = vector.broadcast %350 : f32 to vector<2x32xf32>
    %352 = arith.mulf %351, %269 : vector<2x32xf32>
    %353 = arith.addf %349, %352 : vector<2x32xf32>
    %c4_i32_114 = arith.constant 4 : i32
    %c0_115 = arith.constant 0 : index
    %c0_116 = arith.constant 0 : index
    %354 = vector.load %arg15[%c0_115, %c0_116] : memref<2x32xf32, #tpu.memory_space<vmem>>, vector<2x32xf32>
    tpu.vector_store %arg15[%c0_115, %c0_116], %347 {strides = array<i32>} : memref<2x32xf32, #tpu.memory_space<vmem>>, vector<2x32xf32>,
    %c0_117 = arith.constant 0 : index
    %c0_118 = arith.constant 0 : index
    %355 = vector.load %arg16[%c0_117, %c0_118] : memref<2x32xf32, #tpu.memory_space<vmem>>, vector<2x32xf32>
    tpu.vector_store %arg16[%c0_117, %c0_118], %353 {strides = array<i32>} : memref<2x32xf32, #tpu.memory_space<vmem>>, vector<2x32xf32>,
    return
  }
  func.func @transform_0(%arg0: i32) -> (i32, i32, i32) {
    %c0_i32 = arith.constant 0 : i32
    %c0_i32_0 = arith.constant 0 : i32
    %c0_i32_1 = arith.constant 0 : i32
    return %arg0, %c0_i32, %c0_i32_0 : i32, i32, i32
  }
  func.func @transform_1(%arg0: i32) -> (i32, i32, i32) {
    %c0_i32 = arith.constant 0 : i32
    %c0_i32_0 = arith.constant 0 : i32
    %c0_i32_1 = arith.constant 0 : i32
    return %arg0, %c0_i32, %c0_i32_0 : i32, i32, i32
  }
  func.func @transform_2(%arg0: i32) -> (i32, i32, i32) {
    %c0_i32 = arith.constant 0 : i32
    %c0_i32_0 = arith.constant 0 : i32
    %c0_i32_1 = arith.constant 0 : i32
    %c0_i32_2 = arith.constant 0 : i32
    return %c0_i32, %c0_i32_0, %c0_i32_1 : i32, i32, i32
  }
  func.func @transform_3(%arg0: i32) -> (i32, i32, i32) {
    %c0_i32 = arith.constant 0 : i32
    %c0_i32_0 = arith.constant 0 : i32
    %c0_i32_1 = arith.constant 0 : i32
    %c0_i32_2 = arith.constant 0 : i32
    return %c0_i32, %c0_i32_0, %c0_i32_1 : i32, i32, i32
  }
  func.func @transform_4(%arg0: i32) -> (i32, i32) {
    %c0_i32 = arith.constant 0 : i32
    %c0_i32_0 = arith.constant 0 : i32
    %c0_i32_1 = arith.constant 0 : i32
    return %c0_i32, %c0_i32_0 : i32, i32
  }
  func.func @transform_5(%arg0: i32) -> (i32, i32) {
    %c0_i32 = arith.constant 0 : i32
    %c0_i32_0 = arith.constant 0 : i32
    %c0_i32_1 = arith.constant 0 : i32
    return %c0_i32, %c0_i32_0 : i32, i32
  }
  func.func @transform_6(%arg0: i32) -> (i32, i32) {
    %c0_i32 = arith.constant 0 : i32
    %c0_i32_0 = arith.constant 0 : i32
    %c0_i32_1 = arith.constant 0 : i32
    return %c0_i32, %c0_i32_0 : i32, i32
  }
  func.func @transform_7(%arg0: i32) -> (i32, i32) {
    %c0_i32 = arith.constant 0 : i32
    %c0_i32_0 = arith.constant 0 : i32
    %c0_i32_1 = arith.constant 0 : i32
    return %c0_i32, %c0_i32_0 : i32, i32
  }
  func.func @transform_8(%arg0: i32) -> (i32, i32) {
    %c0_i32 = arith.constant 0 : i32
    %c0_i32_0 = arith.constant 0 : i32
    %c0_i32_1 = arith.constant 0 : i32
    return %c0_i32, %c0_i32_0 : i32, i32
  }
  func.func @transform_9(%arg0: i32) -> (i32, i32) {
    %c0_i32 = arith.constant 0 : i32
    %c0_i32_0 = arith.constant 0 : i32
    %c0_i32_1 = arith.constant 0 : i32
    return %c0_i32, %c0_i32_0 : i32, i32
  }
  func.func @transform_10(%arg0: i32) -> (i32, i32) {
    %c0_i32 = arith.constant 0 : i32
    %c0_i32_0 = arith.constant 0 : i32
    %c0_i32_1 = arith.constant 0 : i32
    return %c0_i32, %c0_i32_0 : i32, i32
  }
  func.func @transform_11(%arg0: i32) -> (i32, i32) {
    %c0_i32 = arith.constant 0 : i32
    %c0_i32_0 = arith.constant 0 : i32
    %c0_i32_1 = arith.constant 0 : i32
    return %c0_i32, %c0_i32_0 : i32, i32
  }
  func.func @transform_12(%arg0: i32) -> (i32, i32) {
    %c0_i32 = arith.constant 0 : i32
    %c0_i32_0 = arith.constant 0 : i32
    %c0_i32_1 = arith.constant 0 : i32
    return %c0_i32, %c0_i32_0 : i32, i32
  }
  func.func @transform_13(%arg0: i32) -> (i32, i32, i32) {
    %c0_i32 = arith.constant 0 : i32
    %c0_i32_0 = arith.constant 0 : i32
    %c0_i32_1 = arith.constant 0 : i32
    return %arg0, %c0_i32, %c0_i32_0 : i32, i32, i32
  }
  func.func @transform_14(%arg0: i32) -> (i32, i32) {
    %c0_i32 = arith.constant 0 : i32
    %c0_i32_0 = arith.constant 0 : i32
    %c0_i32_1 = arith.constant 0 : i32
    return %c0_i32, %c0_i32_0 : i32, i32
  }
  func.func @transform_15(%arg0: i32) -> (i32, i32) {
    %c0_i32 = arith.constant 0 : i32
    %c0_i32_0 = arith.constant 0 : i32
    %c0_i32_1 = arith.constant 0 : i32
    return %c0_i32, %c0_i32_0 : i32, i32
  }
}

</mosaic_0001>

<llo_original>
// kernel: decoder_forward.1
$region0: #{decoder_forward.1}
  #allocation0 [shape = 'u32[]', space=smem, size = 0x4, offset = 0x4, fixed_abs, tag = 'smem constant byte address 0x4 - core index']
  #allocation1 [shape = 'u32[144,128]{1,0:T(1,128)}', space=vmem, size = 0x12000, scoped, tag = 'internal scratch']
  %s0 = inlined_call_operand.vmem [shape: f32[8,2,128], index: 0, kind: input, shape index: {}]
  %s1 = inlined_call_operand.vmem [shape: f32[8,2,32], index: 1, kind: input, shape index: {}]
  %s2 = inlined_call_operand.vmem [shape: f32[2,8,64], index: 2, kind: input, shape index: {}]
  %s3 = inlined_call_operand.vmem [shape: f32[2,8,32], index: 3, kind: input, shape index: {}]
  %s4 = inlined_call_operand.vmem [shape: s32[2,1], index: 4, kind: input, shape index: {}]
  %s5 = inlined_call_operand.vmem [shape: f32[2,32], index: 5, kind: input, shape index: {}]
  %s6 = inlined_call_operand.vmem [shape: f32[2,32], index: 6, kind: input, shape index: {}]
  %s7 = inlined_call_operand.vmem [shape: f32[32,32], index: 7, kind: input, shape index: {}]
  %s8 = inlined_call_operand.vmem [shape: f32[1,32], index: 8, kind: input, shape index: {}]
  %s9 = inlined_call_operand.vmem [shape: f32[64,128], index: 9, kind: input, shape index: {}]
  %s10 = inlined_call_operand.vmem [shape: f32[32,128], index: 10, kind: input, shape index: {}]
  %s11 = inlined_call_operand.vmem [shape: f32[32,32], index: 11, kind: input, shape index: {}]
  %s12 = inlined_call_operand.vmem [shape: f32[64,32], index: 12, kind: input, shape index: {}]
  %s13 = inlined_call_operand.vmem [shape: f32[8,2,32], index: 13, kind: output, shape index: {0}]
  %s14 = inlined_call_operand.hbm [shape: f32[2,32], index: 14, kind: output, shape index: {1}]
  %s15 = inlined_call_operand.hbm [shape: f32[2,32], index: 15, kind: output, shape index: {2}]
  %16 = xla_tuple %s13, %s14, %s15
  %s17 = sld [smem:[#allocation0]]
  $region105: #{decoder_forward.1} parent=0
    _
  %s19 = ssub.s32 1, %s17
  %s20 = scalar_select 0, %s19, %s17
  $region1: #{decoder_forward.1} parent=0
    #allocation2 [shape = 'u8[1024]{0}', space=vmem, size = 0x400, scoped, tag = 'output window, operand 1, single buffered']
    #allocation3 [shape = 's32[2]{0}', space=sflag, size = 0x8, scoped, tag = 'scoped memory for decoder_forward.1']
    #allocation4 [shape = 'u8[1024]{0}', space=vmem, size = 0x400, scoped, tag = 'output window, operand 2, single buffered']
    #allocation5 [shape = 's32[1]{0}', space=sflag, size = 0x4, scoped, tag = 'scoped memory for decoder_forward.1']
    %21 = vsyncpa [#allocation3], 0
    %22 = vsyncpa [#allocation5], 0
    loop: start=0, step=1, limit=4
    $region2: #{decoder_forward.1} parent=1 // loop_pre_header
      _
    $region3: #{decoder_forward.1} parent=1 // loop_header
      %s24 = sphi 0, %s28
      %p25 = scmp.ge.s32.totalorder %s24, 4
      %s34 = sphi 0, %s36
      %s37 = sphi 0, %s34
      %s38 = sphi 0, %s37
      %s54 = sphi 0, %s38
      %s60 = sphi 0, %s62
      %s63 = sphi 0, %s60
      %s64 = sphi 0, %s63
      %s80 = sphi 0, %s64
      %s84 = sphi 0, %s84
      %s86 = sphi 0, %s84
      %s87 = sphi 0, %s86
      %s101 = sphi 0, %s87
      %s105 = sphi 0, %s105
      %s107 = sphi 0, %s105
      %s108 = sphi 0, %s107
      %s122 = sphi 0, %s108
      %s126 = sphi 0, %s126
      %s128 = sphi 0, %s126
      %s129 = sphi 0, %s128
      %s143 = sphi 0, %s129
      %s147 = sphi 0, %s147
      %s149 = sphi 0, %s147
      %s150 = sphi 0, %s149
      %s164 = sphi 0, %s150
      %s168 = sphi 0, %s168
      %s170 = sphi 0, %s168
      %s171 = sphi 0, %s170
      %s185 = sphi 0, %s171
      %s189 = sphi 0, %s189
      %s191 = sphi 0, %s189
      %s192 = sphi 0, %s191
      %s206 = sphi 0, %s192
      %s210 = sphi 0, %s210
      %s212 = sphi 0, %s210
      %s213 = sphi 0, %s212
      %s227 = sphi 0, %s213
      %s231 = sphi 0, %s231
      %s233 = sphi 0, %s231
      %s234 = sphi 0, %s233
      %s248 = sphi 0, %s234
      %s252 = sphi 0, %s252
      %s254 = sphi 0, %s252
      %s255 = sphi 0, %s254
      %s269 = sphi 0, %s255
      %s273 = sphi 0, %s273
      %s275 = sphi 0, %s273
      %s276 = sphi 0, %s275
      %s290 = sphi 0, %s276
      %s294 = sphi 0, %s294
      %s296 = sphi 0, %s294
      %s297 = sphi 0, %s296
      %s311 = sphi 0, %s297
      %s317 = sphi 0, %s319
      %s320 = sphi 0, %s317
      %s321 = sphi 0, %s320
      %s337 = sphi 0, %s321
      %s341 = sphi 0, %s341
      %s343 = sphi 0, %s341
      %s344 = sphi 0, %s343
      %s358 = sphi 0, %s344
      %s362 = sphi 0, %s362
      %s364 = sphi 0, %s362
      %s365 = sphi 0, %s364
      %s379 = sphi 0, %s365
    $region4: #{decoder_forward.1} parent=1 // loop_header_branch
      %27 = sbr.rel (%p25) target = $region8
    $region5: #{decoder_forward.1} parent=1 // loop_body
      %s29 = ssub.s32 %s24, 1
      %s30 = ssub.s32 %s24, 2
      %s31 = sadd.s32 %s24, 1
      %s32 = ssub.s32 %s24, %s31
      %p33 = scmp.eq.s32.totalorder %s32, 0
      %s35 = sadd.s32 %s34, 1
      %s36 = scalar_select %p33, %s34, %s35
      %p39 = pneg %p33
      %p40 = scmp.eq.s32.totalorder %s24, 1
      %p41 = por %p39, %p40
      %p42 = scmp.ne.s32.totalorder %s34, %s37
      %p43 = scmp.eq.s32.totalorder %s24, 0
      %p44 = por %p42, %p43
      %p45 = scmp.ne.s32.totalorder %s34, %s37
      %p46 = scmp.eq.s32.totalorder %s29, 1
      %p47 = por %p45, %p46
      %p48 = scmp.ne.s32.totalorder %s37, %s38
      %p49 = scmp.eq.s32.totalorder %s29, 0
      %p50 = por %p48, %p49
      %p51 = scmp.ne.s32.totalorder %s37, %s38
      %p52 = scmp.eq.s32.totalorder %s30, 1
      %p53 = por %p51, %p52
      %p55 = scmp.ne.s32.totalorder %s38, %s54
      %p56 = scmp.eq.s32.totalorder %s30, 0
      %p57 = por %p55, %p56
      %s58 = ssub.s32 %s24, %s31
      %p59 = scmp.eq.s32.totalorder %s58, 0
      %s61 = sadd.s32 %s60, 1
      %s62 = scalar_select %p59, %s60, %s61
      %p65 = pneg %p59
      %p66 = scmp.eq.s32.totalorder %s24, 1
      %p67 = por %p65, %p66
      %p68 = scmp.ne.s32.totalorder %s60, %s63
      %p69 = scmp.eq.s32.totalorder %s24, 0
      %p70 = por %p68, %p69
      %p71 = scmp.ne.s32.totalorder %s60, %s63
      %p72 = scmp.eq.s32.totalorder %s29, 1
      %p73 = por %p71, %p72
      %p74 = scmp.ne.s32.totalorder %s63, %s64
      %p75 = scmp.eq.s32.totalorder %s29, 0
      %p76 = por %p74, %p75
      %p77 = scmp.ne.s32.totalorder %s63, %s64
      %p78 = scmp.eq.s32.totalorder %s30, 1
      %p79 = por %p77, %p78
      %p81 = scmp.ne.s32.totalorder %s64, %s80
      %p82 = scmp.eq.s32.totalorder %s30, 0
      %p83 = por %p81, %p82
      %s85 = sadd.s32 %s84, 1
      %p88 = scmp.eq.s32.totalorder %s24, 1
      %p89 = scmp.ne.s32.totalorder %s84, %s86
      %p90 = scmp.eq.s32.totalorder %s24, 0
      %p91 = por %p89, %p90
      %p92 = scmp.ne.s32.totalorder %s84, %s86
      %p93 = scmp.eq.s32.totalorder %s29, 1
      %p94 = por %p92, %p93
      %p95 = scmp.ne.s32.totalorder %s86, %s87
      %p96 = scmp.eq.s32.totalorder %s29, 0
      %p97 = por %p95, %p96
      %p98 = scmp.ne.s32.totalorder %s86, %s87
      %p99 = scmp.eq.s32.totalorder %s30, 1
      %p100 = por %p98, %p99
      %p102 = scmp.ne.s32.totalorder %s87, %s101
      %p103 = scmp.eq.s32.totalorder %s30, 0
      %p104 = por %p102, %p103
      %s106 = sadd.s32 %s105, 1
      %p109 = scmp.eq.s32.totalorder %s24, 1
      %p110 = scmp.ne.s32.totalorder %s105, %s107
      %p111 = scmp.eq.s32.totalorder %s24, 0
      %p112 = por %p110, %p111
      %p113 = scmp.ne.s32.totalorder %s105, %s107
      %p114 = scmp.eq.s32.totalorder %s29, 1
      %p115 = por %p113, %p114
      %p116 = scmp.ne.s32.totalorder %s107, %s108
      %p117 = scmp.eq.s32.totalorder %s29, 0
      %p118 = por %p116, %p117
      %p119 = scmp.ne.s32.totalorder %s107, %s108
      %p120 = scmp.eq.s32.totalorder %s30, 1
      %p121 = por %p119, %p120
      %p123 = scmp.ne.s32.totalorder %s108, %s122
      %p124 = scmp.eq.s32.totalorder %s30, 0
      %p125 = por %p123, %p124
      %s127 = sadd.s32 %s126, 1
      %p130 = scmp.eq.s32.totalorder %s24, 1
      %p131 = scmp.ne.s32.totalorder %s126, %s128
      %p132 = scmp.eq.s32.totalorder %s24, 0
      %p133 = por %p131, %p132
      %p134 = scmp.ne.s32.totalorder %s126, %s128
      %p135 = scmp.eq.s32.totalorder %s29, 1
      %p136 = por %p134, %p135
      %p137 = scmp.ne.s32.totalorder %s128, %s129
      %p138 = scmp.eq.s32.totalorder %s29, 0
      %p139 = por %p137, %p138
      %p140 = scmp.ne.s32.totalorder %s128, %s129
      %p141 = scmp.eq.s32.totalorder %s30, 1
      %p142 = por %p140, %p141
      %p144 = scmp.ne.s32.totalorder %s129, %s143
      %p145 = scmp.eq.s32.totalorder %s30, 0
      %p146 = por %p144, %p145
      %s148 = sadd.s32 %s147, 1
      %p151 = scmp.eq.s32.totalorder %s24, 1
      %p152 = scmp.ne.s32.totalorder %s147, %s149
      %p153 = scmp.eq.s32.totalorder %s24, 0
      %p154 = por %p152, %p153
      %p155 = scmp.ne.s32.totalorder %s147, %s149
      %p156 = scmp.eq.s32.totalorder %s29, 1
      %p157 = por %p155, %p156
      %p158 = scmp.ne.s32.totalorder %s149, %s150
      %p159 = scmp.eq.s32.totalorder %s29, 0
      %p160 = por %p158, %p159
      %p161 = scmp.ne.s32.totalorder %s149, %s150
      %p162 = scmp.eq.s32.totalorder %s30, 1
      %p163 = por %p161, %p162
      %p165 = scmp.ne.s32.totalorder %s150, %s164
      %p166 = scmp.eq.s32.totalorder %s30, 0
      %p167 = por %p165, %p166
      %s169 = sadd.s32 %s168, 1
      %p172 = scmp.eq.s32.totalorder %s24, 1
      %p173 = scmp.ne.s32.totalorder %s168, %s170
      %p174 = scmp.eq.s32.totalorder %s24, 0
      %p175 = por %p173, %p174
      %p176 = scmp.ne.s32.totalorder %s168, %s170
      %p177 = scmp.eq.s32.totalorder %s29, 1
      %p178 = por %p176, %p177
      %p179 = scmp.ne.s32.totalorder %s170, %s171
      %p180 = scmp.eq.s32.totalorder %s29, 0
      %p181 = por %p179, %p180
      %p182 = scmp.ne.s32.totalorder %s170, %s171
      %p183 = scmp.eq.s32.totalorder %s30, 1
      %p184 = por %p182, %p183
      %p186 = scmp.ne.s32.totalorder %s171, %s185
      %p187 = scmp.eq.s32.totalorder %s30, 0
      %p188 = por %p186, %p187
      %s190 = sadd.s32 %s189, 1
      %p193 = scmp.eq.s32.totalorder %s24, 1
      %p194 = scmp.ne.s32.totalorder %s189, %s191
      %p195 = scmp.eq.s32.totalorder %s24, 0
      %p196 = por %p194, %p195
      %p197 = scmp.ne.s32.totalorder %s189, %s191
      %p198 = scmp.eq.s32.totalorder %s29, 1
      %p199 = por %p197, %p198
      %p200 = scmp.ne.s32.totalorder %s191, %s192
      %p201 = scmp.eq.s32.totalorder %s29, 0
      %p202 = por %p200, %p201
      %p203 = scmp.ne.s32.totalorder %s191, %s192
      %p204 = scmp.eq.s32.totalorder %s30, 1
      %p205 = por %p203, %p204
      %p207 = scmp.ne.s32.totalorder %s192, %s206
      %p208 = scmp.eq.s32.totalorder %s30, 0
      %p209 = por %p207, %p208
      %s211 = sadd.s32 %s210, 1
      %p214 = scmp.eq.s32.totalorder %s24, 1
      %p215 = scmp.ne.s32.totalorder %s210, %s212
      %p216 = scmp.eq.s32.totalorder %s24, 0
      %p217 = por %p215, %p216
      %p218 = scmp.ne.s32.totalorder %s210, %s212
      %p219 = scmp.eq.s32.totalorder %s29, 1
      %p220 = por %p218, %p219
      %p221 = scmp.ne.s32.totalorder %s212, %s213
      %p222 = scmp.eq.s32.totalorder %s29, 0
      %p223 = por %p221, %p222
      %p224 = scmp.ne.s32.totalorder %s212, %s213
      %p225 = scmp.eq.s32.totalorder %s30, 1
      %p226 = por %p224, %p225
      %p228 = scmp.ne.s32.totalorder %s213, %s227
      %p229 = scmp.eq.s32.totalorder %s30, 0
      %p230 = por %p228, %p229
      %s232 = sadd.s32 %s231, 1
      %p235 = scmp.eq.s32.totalorder %s24, 1
      %p236 = scmp.ne.s32.totalorder %s231, %s233
      %p237 = scmp.eq.s32.totalorder %s24, 0
      %p238 = por %p236, %p237
      %p239 = scmp.ne.s32.totalorder %s231, %s233
      %p240 = scmp.eq.s32.totalorder %s29, 1
      %p241 = por %p239, %p240
      %p242 = scmp.ne.s32.totalorder %s233, %s234
      %p243 = scmp.eq.s32.totalorder %s29, 0
      %p244 = por %p242, %p243
      %p245 = scmp.ne.s32.totalorder %s233, %s234
      %p246 = scmp.eq.s32.totalorder %s30, 1
      %p247 = por %p245, %p246
      %p249 = scmp.ne.s32.totalorder %s234, %s248
      %p250 = scmp.eq.s32.totalorder %s30, 0
      %p251 = por %p249, %p250
      %s253 = sadd.s32 %s252, 1
      %p256 = scmp.eq.s32.totalorder %s24, 1
      %p257 = scmp.ne.s32.totalorder %s252, %s254
      %p258 = scmp.eq.s32.totalorder %s24, 0
      %p259 = por %p257, %p258
      %p260 = scmp.ne.s32.totalorder %s252, %s254
      %p261 = scmp.eq.s32.totalorder %s29, 1
      %p262 = por %p260, %p261
      %p263 = scmp.ne.s32.totalorder %s254, %s255
      %p264 = scmp.eq.s32.totalorder %s29, 0
      %p265 = por %p263, %p264
      %p266 = scmp.ne.s32.totalorder %s254, %s255
      %p267 = scmp.eq.s32.totalorder %s30, 1
      %p268 = por %p266, %p267
      %p270 = scmp.ne.s32.totalorder %s255, %s269
      %p271 = scmp.eq.s32.totalorder %s30, 0
      %p272 = por %p270, %p271
      %s274 = sadd.s32 %s273, 1
      %p277 = scmp.eq.s32.totalorder %s24, 1
      %p278 = scmp.ne.s32.totalorder %s273, %s275
      %p279 = scmp.eq.s32.totalorder %s24, 0
      %p280 = por %p278, %p279
      %p281 = scmp.ne.s32.totalorder %s273, %s275
      %p282 = scmp.eq.s32.totalorder %s29, 1
      %p283 = por %p281, %p282
      %p284 = scmp.ne.s32.totalorder %s275, %s276
      %p285 = scmp.eq.s32.totalorder %s29, 0
      %p286 = por %p284, %p285
      %p287 = scmp.ne.s32.totalorder %s275, %s276
      %p288 = scmp.eq.s32.totalorder %s30, 1
      %p289 = por %p287, %p288
      %p291 = scmp.ne.s32.totalorder %s276, %s290
      %p292 = scmp.eq.s32.totalorder %s30, 0
      %p293 = por %p291, %p292
      %s295 = sadd.s32 %s294, 1
      %p298 = scmp.eq.s32.totalorder %s24, 1
      %p299 = scmp.ne.s32.totalorder %s294, %s296
      %p300 = scmp.eq.s32.totalorder %s24, 0
      %p301 = por %p299, %p300
      %p302 = scmp.ne.s32.totalorder %s294, %s296
      %p303 = scmp.eq.s32.totalorder %s29, 1
      %p304 = por %p302, %p303
      %p305 = scmp.ne.s32.totalorder %s296, %s297
      %p306 = scmp.eq.s32.totalorder %s29, 0
      %p307 = por %p305, %p306
      %p308 = scmp.ne.s32.totalorder %s296, %s297
      %p309 = scmp.eq.s32.totalorder %s30, 1
      %p310 = por %p308, %p309
      %p312 = scmp.ne.s32.totalorder %s297, %s311
      %p313 = scmp.eq.s32.totalorder %s30, 0
      %p314 = por %p312, %p313
      %s315 = ssub.s32 %s24, %s31
      %p316 = scmp.eq.s32.totalorder %s315, 0
      %s318 = sadd.s32 %s317, 1
      %s319 = scalar_select %p316, %s317, %s318
      %p322 = pneg %p316
      %p323 = scmp.eq.s32.totalorder %s24, 1
      %p324 = por %p322, %p323
      %p325 = scmp.ne.s32.totalorder %s317, %s320
      %p326 = scmp.eq.s32.totalorder %s24, 0
      %p327 = por %p325, %p326
      %p328 = scmp.ne.s32.totalorder %s317, %s320
      %p329 = scmp.eq.s32.totalorder %s29, 1
      %p330 = por %p328, %p329
      %p331 = scmp.ne.s32.totalorder %s320, %s321
      %p332 = scmp.eq.s32.totalorder %s29, 0
      %p333 = por %p331, %p332
      %p334 = scmp.ne.s32.totalorder %s320, %s321
      %p335 = scmp.eq.s32.totalorder %s30, 1
      %p336 = por %p334, %p335
      %p338 = scmp.ne.s32.totalorder %s321, %s337
      %p339 = scmp.eq.s32.totalorder %s30, 0
      %p340 = por %p338, %p339
      %s342 = sadd.s32 %s341, 1
      %p345 = scmp.eq.s32.totalorder %s24, 1
      %p346 = scmp.ne.s32.totalorder %s341, %s343
      %p347 = scmp.eq.s32.totalorder %s24, 0
      %p348 = por %p346, %p347
      %p349 = scmp.ne.s32.totalorder %s341, %s343
      %p350 = scmp.eq.s32.totalorder %s29, 1
      %p351 = por %p349, %p350
      %p352 = scmp.ne.s32.totalorder %s343, %s344
      %p353 = scmp.eq.s32.totalorder %s29, 0
      %p354 = por %p352, %p353
      %p355 = scmp.ne.s32.totalorder %s343, %s344
      %p356 = scmp.eq.s32.totalorder %s30, 1
      %p357 = por %p355, %p356
      %p359 = scmp.ne.s32.totalorder %s344, %s358
      %p360 = scmp.eq.s32.totalorder %s30, 0
      %p361 = por %p359, %p360
      %s363 = sadd.s32 %s362, 1
      %p366 = scmp.eq.s32.totalorder %s24, 1
      %p367 = scmp.ne.s32.totalorder %s362, %s364
      %p368 = scmp.eq.s32.totalorder %s24, 0
      %p369 = por %p367, %p368
      %p370 = scmp.ne.s32.totalorder %s362, %s364
      %p371 = scmp.eq.s32.totalorder %s29, 1
      %p372 = por %p370, %p371
      %p373 = scmp.ne.s32.totalorder %s364, %s365
      %p374 = scmp.eq.s32.totalorder %s29, 0
      %p375 = por %p373, %p374
      %p376 = scmp.ne.s32.totalorder %s364, %s365
      %p377 = scmp.eq.s32.totalorder %s30, 1
      %p378 = por %p376, %p377
      %p380 = scmp.ne.s32.totalorder %s365, %s379
      %p381 = scmp.eq.s32.totalorder %s30, 0
      %p382 = por %p380, %p381
      %p383 = scmp.le.s32.totalorder 1, %s24
      %p384 = scmp.lt.s32.totalorder %s24, 3
      %p385 = pnand %p383, %p384
      %p386 = pneg %p385
      // Predicated region
      $region9: #{decoder_forward.1} parent=5 // pred_check
        _
      $region10: #{decoder_forward.1} parent=5 // pred_check_branch
        %388 = sbr.rel (%p385) target = $region12
      $region11: #{decoder_forward.1} parent=5 // pred_region
        %s389 = ssub.s32 %s24, 1
        // Predicated region
        $region13: #{decoder_forward.1} parent=11 // pred_check
          %p390 = pneg %p97
        $region14: #{decoder_forward.1} parent=11 // pred_check_branch
          %392 = sbr.rel (%p390) target = $region16
        $region15: #{decoder_forward.1} parent=11 // pred_region
          _
        $region16: #{decoder_forward.1} parent=11 // pred_fallthru
          _
        // Predicated region
        $region17: #{decoder_forward.1} parent=11 // pred_check
          %p393 = pneg %p118
        $region18: #{decoder_forward.1} parent=11 // pred_check_branch
          %395 = sbr.rel (%p393) target = $region20
        $region19: #{decoder_forward.1} parent=11 // pred_region
          _
        $region20: #{decoder_forward.1} parent=11 // pred_fallthru
          _
        // Predicated region
        $region21: #{decoder_forward.1} parent=11 // pred_check
          %p396 = pneg %p139
        $region22: #{decoder_forward.1} parent=11 // pred_check_branch
          %398 = sbr.rel (%p396) target = $region24
        $region23: #{decoder_forward.1} parent=11 // pred_region
          _
        $region24: #{decoder_forward.1} parent=11 // pred_fallthru
          _
        // Predicated region
        $region25: #{decoder_forward.1} parent=11 // pred_check
          %p399 = pneg %p160
        $region26: #{decoder_forward.1} parent=11 // pred_check_branch
          %401 = sbr.rel (%p399) target = $region28
        $region27: #{decoder_forward.1} parent=11 // pred_region
          _
        $region28: #{decoder_forward.1} parent=11 // pred_fallthru
          _
        // Predicated region
        $region29: #{decoder_forward.1} parent=11 // pred_check
          %p402 = pneg %p181
        $region30: #{decoder_forward.1} parent=11 // pred_check_branch
          %404 = sbr.rel (%p402) target = $region32
        $region31: #{decoder_forward.1} parent=11 // pred_region
          _
        $region32: #{decoder_forward.1} parent=11 // pred_fallthru
          _
        // Predicated region
        $region33: #{decoder_forward.1} parent=11 // pred_check
          %p405 = pneg %p202
        $region34: #{decoder_forward.1} parent=11 // pred_check_branch
          %407 = sbr.rel (%p405) target = $region36
        $region35: #{decoder_forward.1} parent=11 // pred_region
          _
        $region36: #{decoder_forward.1} parent=11 // pred_fallthru
          _
        // Predicated region
        $region37: #{decoder_forward.1} parent=11 // pred_check
          %p408 = pneg %p223
        $region38: #{decoder_forward.1} parent=11 // pred_check_branch
          %410 = sbr.rel (%p408) target = $region40
        $region39: #{decoder_forward.1} parent=11 // pred_region
          _
        $region40: #{decoder_forward.1} parent=11 // pred_fallthru
          _
        // Predicated region
        $region41: #{decoder_forward.1} parent=11 // pred_check
          %p411 = pneg %p244
        $region42: #{decoder_forward.1} parent=11 // pred_check_branch
          %413 = sbr.rel (%p411) target = $region44
        $region43: #{decoder_forward.1} parent=11 // pred_region
          _
        $region44: #{decoder_forward.1} parent=11 // pred_fallthru
          _
        // Predicated region
        $region45: #{decoder_forward.1} parent=11 // pred_check
          %p414 = pneg %p265
        $region46: #{decoder_forward.1} parent=11 // pred_check_branch
          %416 = sbr.rel (%p414) target = $region48
        $region47: #{decoder_forward.1} parent=11 // pred_region
          _
        $region48: #{decoder_forward.1} parent=11 // pred_fallthru
          _
        // Predicated region
        $region49: #{decoder_forward.1} parent=11 // pred_check
          %p417 = pneg %p286
        $region50: #{decoder_forward.1} parent=11 // pred_check_branch
          %419 = sbr.rel (%p417) target = $region52
        $region51: #{decoder_forward.1} parent=11 // pred_region
          _
        $region52: #{decoder_forward.1} parent=11 // pred_fallthru
          _
        // Predicated region
        $region53: #{decoder_forward.1} parent=11 // pred_check
          %p420 = pneg %p307
        $region54: #{decoder_forward.1} parent=11 // pred_check_branch
          %422 = sbr.rel (%p420) target = $region56
        $region55: #{decoder_forward.1} parent=11 // pred_region
          _
        $region56: #{decoder_forward.1} parent=11 // pred_fallthru
          _
      $region12: #{decoder_forward.1} parent=5 // pred_fallthru
        _
      %p423 = scmp.lt.s32.totalorder %s24, 2
      // Predicated region
      $region57: #{decoder_forward.1} parent=5 // pred_check
        %p424 = pneg %p423
      $region58: #{decoder_forward.1} parent=5 // pred_check_branch
        %426 = sbr.rel (%p424) target = $region60
      $region59: #{decoder_forward.1} parent=5 // pred_region
        // Predicated region
        $region61: #{decoder_forward.1} parent=59 // pred_check
          %p427 = pneg %p44
        $region62: #{decoder_forward.1} parent=59 // pred_check_branch
          %429 = sbr.rel (%p427) target = $region64
        $region63: #{decoder_forward.1} parent=59 // pred_region
          %s430 = smul.u32 4, %s24
          %p431 = scmp.lt.s32.totalorder %s430, 7
          %s432 = scalar_select %p431, %s430, 7
          %s433 = smul.addr %s432, 2
          %s434 = scalar_lea.vmem %s0, %s433
          %s435 = smul.u32 4, %s24
        $region64: #{decoder_forward.1} parent=59 // pred_fallthru
          _
        // Predicated region
        $region65: #{decoder_forward.1} parent=59 // pred_check
          %p436 = pneg %p70
        $region66: #{decoder_forward.1} parent=59 // pred_check_branch
          %438 = sbr.rel (%p436) target = $region68
        $region67: #{decoder_forward.1} parent=59 // pred_region
          %s439 = smul.u32 4, %s24
          %p440 = scmp.lt.s32.totalorder %s439, 7
          %s441 = scalar_select %p440, %s439, 7
          %s442 = smul.addr %s441, 2
          %s443 = scalar_lea.vmem %s1, %s442
          %s444 = smul.u32 4, %s24
        $region68: #{decoder_forward.1} parent=59 // pred_fallthru
          _
      $region60: #{decoder_forward.1} parent=5 // pred_fallthru
        _
      %p445 = scmp.le.s32.totalorder 1, %s24
      %p446 = scmp.lt.s32.totalorder %s24, 3
      %p447 = pnand %p445, %p446
      %p448 = pneg %p447
      // Predicated region
      $region69: #{decoder_forward.1} parent=5 // pred_check
        _
      $region70: #{decoder_forward.1} parent=5 // pred_check_branch
        %450 = sbr.rel (%p447) target = $region72
      $region71: #{decoder_forward.1} parent=5 // pred_region
        %s451 = ssub.s32 %s24, 1
        %s452 = smul.u32 4, %s29
        %p453 = scmp.lt.s32.totalorder %s452, 7
        %s454 = scalar_select %p453, %s452, 7
        %s455 = smul.addr %s454, 2
        %s456 = scalar_lea.vmem %s0, %s455
        %p457 = pneg %p50
        %p458 = pneg %p47
        %s459 = smul.u32 4, %s29
        %p460 = scmp.lt.s32.totalorder %s459, 7
        %s461 = scalar_select %p460, %s459, 7
        %s462 = smul.addr %s461, 2
        %s463 = scalar_lea.vmem %s1, %s462
        %p464 = pneg %p76
        %p465 = pneg %p73
        %p466 = pneg %p97
        %p467 = pneg %p94
        %p468 = pneg %p118
        %p469 = pneg %p115
        %p470 = pneg %p139
        %p471 = pneg %p136
        %p472 = pneg %p160
        %p473 = pneg %p157
        %p474 = pneg %p181
        %p475 = pneg %p178
        %p476 = pneg %p202
        %p477 = pneg %p199
        %p478 = pneg %p223
        %p479 = pneg %p220
        %p480 = pneg %p244
        %p481 = pneg %p241
        %p482 = pneg %p265
        %p483 = pneg %p262
        %p484 = pneg %p286
        %p485 = pneg %p283
        %p486 = pneg %p307
        %p487 = pneg %p304
        %p488 = pneg %p333
        %p489 = pneg %p330
        %s490 = smul.u32 4, %s29
        %p491 = scmp.lt.s32.totalorder %s490, 7
        %s492 = scalar_select %p491, %s490, 7
        %s493 = smul.addr %s492, 2
        %s494 = scalar_lea.vmem %s13, %s493
        %p495 = pneg %p354
        %p496 = pneg %p351
        %p497 = pneg %p375
        %p498 = pneg %p372
        %s499 = smul.u32 4, %s29
        %p500 = scmp.lt.s32.totalorder %s499, 7
        %s501 = scalar_select %p500, %s499, 7
        %s502 = smul.addr %s501, 2
        %s503 = scalar_lea.vmem %s0, %s502
        %s504 = smul.u32 4, %s29
        %s505 = smul.u32 4, %s29
        %p506 = scmp.lt.s32.totalorder %s505, 7
        %s507 = scalar_select %p506, %s505, 7
        %s508 = smul.addr %s507, 2
        %s509 = scalar_lea.vmem %s1, %s508
        %s510 = smul.u32 4, %s29
        %s511 = smul.u32 4, %s29
        %p512 = scmp.lt.s32.totalorder %s511, 7
        %s513 = scalar_select %p512, %s511, 7
        %s514 = smul.addr %s513, 2
        %s515 = scalar_lea.vmem %s13, %s514
        %s516 = smul.u32 4, %s29
        %p517 = scmp.eq.s32.totalorder %s29, 0
        // Predicated region
        $region73: #{decoder_forward.1} parent=71 // pred_check
          %p518 = pneg %p517
        $region74: #{decoder_forward.1} parent=71 // pred_check_branch
          %520 = sbr.rel (%p518) target = $region76
        $region75: #{decoder_forward.1} parent=71 // pred_region
          %v521 = vld [vmem:[%s5] sm:$0x3]
          %vm522 = vcmask 254976
          %523 = vst.msk [vmem:[#allocation2] sm:$0x3] %vm522, %v521
          %v524 = vld [vmem:[%s6] sm:$0x3]
          %525 = vst.msk [vmem:[#allocation4] sm:$0x3] %vm522, %v524
        $region76: #{decoder_forward.1} parent=71 // pred_fallthru
          _
        %v526 = vld [vmem:[%s2] sm:$0xff]
        %v527 = vld [vmem:[%s2 + $0x8] sm:$0xff]
        %v528 = vld [vmem:[%s3] sm:$0xff]
        %v529 = vld [vmem:[%s3 + $0x8] sm:$0xff]
        %v530 = vld [vmem:[%s8] sm:$0x1]
        %v531 = vld [vmem:[%s7] sm:$0xff]
        %v532 = vld [vmem:[%s7 + $0x8] sm:$0xff]
        %v533 = vld [vmem:[%s7 + $0x10] sm:$0xff]
        %v534 = vld [vmem:[%s7 + $0x18] sm:$0xff]
        %v535 = vld [vmem:[%s9] sm:$0xff]
        %v536 = vld [vmem:[%s9 + $0x8] sm:$0xff]
        %v537 = vld [vmem:[%s9 + $0x10] sm:$0xff]
        %v538 = vld [vmem:[%s9 + $0x18] sm:$0xff]
        %v539 = vld [vmem:[%s9 + $0x20] sm:$0xff]
        %v540 = vld [vmem:[%s9 + $0x28] sm:$0xff]
        %v541 = vld [vmem:[%s9 + $0x30] sm:$0xff]
        %v542 = vld [vmem:[%s9 + $0x38] sm:$0xff]
        %v543 = vld [vmem:[%s10] sm:$0xff]
        %v544 = vld [vmem:[%s10 + $0x8] sm:$0xff]
        %v545 = vld [vmem:[%s10 + $0x10] sm:$0xff]
        %v546 = vld [vmem:[%s10 + $0x18] sm:$0xff]
        %v547 = vld [vmem:[%s11] sm:$0xff]
        %v548 = vld [vmem:[%s11 + $0x8] sm:$0xff]
        %v549 = vld [vmem:[%s11 + $0x10] sm:$0xff]
        %v550 = vld [vmem:[%s11 + $0x18] sm:$0xff]
        %v551 = vld [vmem:[%s12] sm:$0xff]
        %v552 = vld [vmem:[%s12 + $0x8] sm:$0xff]
        %v553 = vld [vmem:[%s12 + $0x10] sm:$0xff]
        %v554 = vld [vmem:[%s12 + $0x18] sm:$0xff]
        %v555 = vld [vmem:[%s12 + $0x20] sm:$0xff]
        %v556 = vld [vmem:[%s12 + $0x28] sm:$0xff]
        %v557 = vld [vmem:[%s12 + $0x30] sm:$0xff]
        %v558 = vld [vmem:[%s12 + $0x38] sm:$0xff]
        %v559 = vlaneseq
        %v560 = vand.u32 %v559, 127
        %v561 = vld [vmem:[%s4] sm:$0x3]
        %562 = vset.pattern.permute.xlu0 0
        %563 = vperm.xlu0 %562, %v561
        %v564 = vpop.permute.xlu0 %563
        %vm565 = vcmp.lt.s32.totalorder %v560, %v564
        %v566 = vld [vmem:[#allocation2] sm:$0x3]
        %v567 = vld [vmem:[#allocation4] sm:$0x3]
        %vm568 = vcmask 261120
        %v570 = vsel %vm568, %v566, 0
        %572 = vmatprep.subr.mxu0 0.0
        %573 = vmatpush1.msra.mxu0 0.0
        %574 = vmatprep.subr.mxu0 0.0
        %575 = vmatpush1.msra.mxu0 0.0
        %576 = vmatprep.subr.mxu0 0.0
        %577 = vmatpush1.msra.mxu0 0.0
        %578 = vmatprep.subr.mxu0 0.0
        %579 = vmatpush1.msra.mxu0 0.0
        %580 = vmatprep.subr.mxu0 0.0
        %581 = vmatpush1.msra.mxu0 0.0
        %582 = vmatprep.subr.mxu0 0.0
        %583 = vmatpush1.msra.mxu0 0.0
        %584 = vmatprep.subr.mxu0 0.0
        %585 = vmatpush1.msra.mxu0 0.0
        %586 = vmatprep.subr.mxu0 0.0
        %587 = vmatpush1.msra.mxu0 0.0
        %588 = vmatprep.subr.mxu0 0.0
        %589 = vmatpush1.msra.mxu0 0.0
        %590 = vmatprep.subr.mxu0 0.0
        %591 = vmatpush1.msra.mxu0 0.0
        %592 = vmatprep.subr.mxu0 0.0
        %593 = vmatpush1.msra.mxu0 0.0
        %594 = vmatprep.subr.mxu0 0.0
        %595 = vmatpush1.msra.mxu0 0.0
        %596 = vmatprep.subr.mxu0 0.0
        %597 = vmatpush1.msra.mxu0 %v534
        %598 = vmatprep.subr.mxu0 0.0
        %599 = vmatpush1.msra.mxu0 %v533
        %600 = vmatprep.subr.mxu0 0.0
        %601 = vmatpush1.msra.mxu0 %v532
        %602 = vmatprep.subr.mxu0 0.0
        %603 = vmatpush1.msra.mxu0 %v531
        %604 = vmatprep.subr.mxu0 0.0
        %605 = vmatpush2.msra.mxu0 0.0
        %606 = vmatprep.subr.mxu0 0.0
        %607 = vmatpush2.msra.mxu0 0.0
        %608 = vmatprep.subr.mxu0 0.0
        %609 = vmatpush2.msra.mxu0 0.0
        %610 = vmatprep.subr.mxu0 0.0
        %611 = vmatpush2.msra.mxu0 0.0
        %612 = vmatprep.subr.mxu0 0.0
        %613 = vmatpush2.msra.mxu0 0.0
        %614 = vmatprep.subr.mxu0 0.0
        %615 = vmatpush2.msra.mxu0 0.0
        %616 = vmatprep.subr.mxu0 0.0
        %617 = vmatpush2.msra.mxu0 0.0
        %618 = vmatprep.subr.mxu0 0.0
        %619 = vmatpush2.msra.mxu0 0.0
        %620 = vmatprep.subr.mxu0 0.0
        %621 = vmatpush2.msra.mxu0 0.0
        %622 = vmatprep.subr.mxu0 0.0
        %623 = vmatpush2.msra.mxu0 0.0
        %624 = vmatprep.subr.mxu0 0.0
        %625 = vmatpush2.msra.mxu0 0.0
        %626 = vmatprep.subr.mxu0 0.0
        %627 = vmatpush2.msra.mxu0 0.0
        %628 = vmatprep.subr.mxu0 0.0
        %629 = vmatpush2.msra.mxu0 0.0
        %630 = vmatprep.subr.mxu0 0.0
        %631 = vmatpush2.msra.mxu0 0.0
        %632 = vmatprep.subr.mxu0 0.0
        %633 = vmatpush2.msra.mxu0 0.0
        %634 = vmatprep.subr.mxu0 0.0
        %635 = vmatpush2.msra.mxu0 0.0
        %636 = vmatprep.mubr.f32.mxu0 0.0
        %637 = vmatmul.mubr.f32.gmra.mxu0 %v570
        %v638 = vpop.f32.mrf.mxu0
        %v639 = vadd.f32 0.0, %v638
        %v640 = vpop.f32.mrf.mxu0
        %641 = vdwg.mxu0
        %v644 = vunpack.c.l.s4 1966171168
        %v645 = vunpack.c.0.s8 %v644
        %v646 = vlaneseq
        %v647 = vshrl.u32 %v646, 7
        %v648 = vsub.s32 %v645, %v647
        %v649 = vrot.slane %v639, %v648
        %v650 = vcombine.high %v649, %v649
        %v652 = vunpack.c.l.s4 1966171168
        %v653 = vunpack.c.0.s8 %v652
        %v654 = vlaneseq
        %v655 = vshrl.u32 %v654, 7
        %v656 = vsub.s32 %v653, %v655
        %v657 = vrot.slane %v649, %v656
        %v659 = vunpack.c.l.s4 1966171168
        %v660 = vunpack.c.0.s8 %v659
        %v661 = vlaneseq
        %v662 = vshrl.u32 %v661, 7
        %v663 = vsub.s32 %v660, %v662
        %v664 = vrot.slane %v650, %v663
        %v665 = vlaneseq
        %v666 = vshrl.u32 %v665, 7
        %v667 = vsub.s32 0, %v666
        %v668 = vrot.slane %v657, %v667
        %v669 = vlaneseq
        %v670 = vshrl.u32 %v669, 7
        %v671 = vsub.s32 0, %v670
        %v672 = vrot.slane %v664, %v671
        %v675 = vadd.f32 %v668, %v528
        %v676 = vadd.f32 %v672, %v529
        %v677 = vtanh.pop %v675
        %v678 = vtanh.pop %v676
        %v680 = vlaneseq
        %v681 = vshrl.u32 %v680, 7
        %v682 = vsub.s32 0, %v681
        %v683 = vrot.slane %v530, %v682
        %v685 = vmul.f32 %v677, %v683
        %v686 = vmul.f32 %v678, %v683
        %v687 = vsel %vm568, %v685, 0.0
        %688 = vadd.xlane.f32.xlu0 %v687
        %v689 = vpop.xlane.xlu0 %688
        %v690 = vsel %vm568, %v686, 0.0
        %691 = vadd.xlane.f32.xlu0 %v690
        %v692 = vpop.xlane.xlu0 %691
        %v695 = vlaneseq
        %v696 = vshrl.u32 %v695, 7
        %v697 = vsub.s32 %v560, %v696
        %v698 = vrot.slane %v689, %v697
        %v699 = vlaneseq
        %v700 = vshrl.u32 %v699, 7
        %v701 = vsub.s32 %v560, %v700
        %v702 = vrot.slane %v692, %v701
        %vm703 = vcmask 1041409
        %v704 = vsel %vm703, %v702, %v698
        %v706 = vsel %vm565, %v704, -1e+30
        %vm707 = vcmask 58368
        %v708 = vsel %vm707, %v706, -inf
        %709 = vmax.xlane.f32.xlu0 %v708
        %v710 = vpop.xlane.xlu0 %709
        %v711 = vsub.f32 %v706, %v710
        %v712 = vmul.f32 %v711, 1.442695
        %v713 = vpow.pop %v712
        %v714 = vsel %vm707, %v713, 0.0
        %715 = vadd.xlane.f32.xlu0 %v714
        %v716 = vpop.xlane.xlu0 %715
        %v717 = vrcp.pop %v716
        %v718 = vmul.f32 %v713, %v717
        %v719 = vlaneseq
        %v720 = vshrl.u32 %v719, 7
        %v721 = vsub.s32 0, %v720
        %v722 = vrot.slane %v718, %v721
        %724 = vbcast.lane.b32.xlu0 %v722, 256
        %v725 = vpop.permute.xlu0 %724
        %v726 = vlaneseq
        %v727 = vshrl.u32 %v726, 7
        %v728 = vsub.s32 1, %v727
        %v729 = vrot.slane %v718, %v728
        %731 = vbcast.lane.b32.xlu0 %v729, 256
        %v732 = vpop.permute.xlu0 %731
        %v733 = vmul.f32 %v725, %v526
        %v734 = vmul.f32 %v732, %v527
        %vm735 = vcmask 523264
        %v736 = vsel %vm735, %v733, 0.0
        %v737 = vrot.slane %v736, 4
        %v738 = vadd.f32 %v736, %v737
        %v739 = vrot.slane %v738, 2
        %v740 = vadd.f32 %v738, %v739
        %v741 = vrot.slane %v740, 1
        %v742 = vadd.f32 %v740, %v741
        %v743 = vsel %vm735, %v734, 0.0
        %v744 = vrot.slane %v743, 4
        %v745 = vadd.f32 %v743, %v744
        %v746 = vrot.slane %v745, 2
        %v747 = vadd.f32 %v745, %v746
        %v748 = vrot.slane %v747, 1
        %v749 = vadd.f32 %v747, %v748
        %v750 = vld [vmem:[%s503] sm:$0x3]
        %v753 = vsel %vm703, %v749, %v742
        %v754 = vsel %vm735, %v753, 0
        %756 = vmatprep.subr.mxu0 0.0
        %757 = vmatpush1.msra.mxu0 0.0
        %758 = vmatprep.subr.mxu0 0.0
        %759 = vmatpush1.msra.mxu0 0.0
        %760 = vmatprep.subr.mxu0 0.0
        %761 = vmatpush1.msra.mxu0 0.0
        %762 = vmatprep.subr.mxu0 0.0
        %763 = vmatpush1.msra.mxu0 0.0
        %764 = vmatprep.subr.mxu0 0.0
        %765 = vmatpush1.msra.mxu0 0.0
        %766 = vmatprep.subr.mxu0 0.0
        %767 = vmatpush1.msra.mxu0 0.0
        %768 = vmatprep.subr.mxu0 0.0
        %769 = vmatpush1.msra.mxu0 0.0
        %770 = vmatprep.subr.mxu0 0.0
        %771 = vmatpush1.msra.mxu0 0.0
        %772 = vmatprep.subr.mxu0 0.0
        %773 = vmatpush1.msra.mxu0 %v542
        %774 = vmatprep.subr.mxu0 0.0
        %775 = vmatpush1.msra.mxu0 %v541
        %776 = vmatprep.subr.mxu0 0.0
        %777 = vmatpush1.msra.mxu0 %v540
        %778 = vmatprep.subr.mxu0 0.0
        %779 = vmatpush1.msra.mxu0 %v539
        %780 = vmatprep.subr.mxu0 0.0
        %781 = vmatpush1.msra.mxu0 %v538
        %782 = vmatprep.subr.mxu0 0.0
        %783 = vmatpush1.msra.mxu0 %v537
        %784 = vmatprep.subr.mxu0 0.0
        %785 = vmatpush1.msra.mxu0 %v536
        %786 = vmatprep.subr.mxu0 0.0
        %787 = vmatpush1.msra.mxu0 %v535
        %788 = vmatprep.subr.mxu0 0.0
        %789 = vmatpush2.msra.mxu0 0.0
        %790 = vmatprep.subr.mxu0 0.0
        %791 = vmatpush2.msra.mxu0 0.0
        %792 = vmatprep.subr.mxu0 0.0
        %793 = vmatpush2.msra.mxu0 0.0
        %794 = vmatprep.subr.mxu0 0.0
        %795 = vmatpush2.msra.mxu0 0.0
        %796 = vmatprep.subr.mxu0 0.0
        %797 = vmatpush2.msra.mxu0 0.0
        %798 = vmatprep.subr.mxu0 0.0
        %799 = vmatpush2.msra.mxu0 0.0
        %800 = vmatprep.subr.mxu0 0.0
        %801 = vmatpush2.msra.mxu0 0.0
        %802 = vmatprep.subr.mxu0 0.0
        %803 = vmatpush2.msra.mxu0 0.0
        %804 = vmatprep.subr.mxu0 0.0
        %805 = vmatpush2.msra.mxu0 0.0
        %806 = vmatprep.subr.mxu0 0.0
        %807 = vmatpush2.msra.mxu0 0.0
        %808 = vmatprep.subr.mxu0 0.0
        %809 = vmatpush2.msra.mxu0 0.0
        %810 = vmatprep.subr.mxu0 0.0
        %811 = vmatpush2.msra.mxu0 0.0
        %812 = vmatprep.subr.mxu0 0.0
        %813 = vmatpush2.msra.mxu0 0.0
        %814 = vmatprep.subr.mxu0 0.0
        %815 = vmatpush2.msra.mxu0 0.0
        %816 = vmatprep.subr.mxu0 0.0
        %817 = vmatpush2.msra.mxu0 0.0
        %818 = vmatprep.subr.mxu0 0.0
        %819 = vmatpush2.msra.mxu0 0.0
        %820 = vmatprep.mubr.f32.mxu0 0.0
        %821 = vmatmul.mubr.f32.gmra.mxu0 %v754
        %v822 = vpop.f32.mrf.mxu0
        %v823 = vadd.f32 0.0, %v822
        %v824 = vpop.f32.mrf.mxu0
        %825 = vdwg.mxu0
        %v826 = vadd.f32 %v750, %v823
        %827 = vmatprep.subr.mxu0 0.0
        %828 = vmatpush1.msra.mxu0 0.0
        %829 = vmatprep.subr.mxu0 0.0
        %830 = vmatpush1.msra.mxu0 0.0
        %831 = vmatprep.subr.mxu0 0.0
        %832 = vmatpush1.msra.mxu0 0.0
        %833 = vmatprep.subr.mxu0 0.0
        %834 = vmatpush1.msra.mxu0 0.0
        %835 = vmatprep.subr.mxu0 0.0
        %836 = vmatpush1.msra.mxu0 0.0
        %837 = vmatprep.subr.mxu0 0.0
        %838 = vmatpush1.msra.mxu0 0.0
        %839 = vmatprep.subr.mxu0 0.0
        %840 = vmatpush1.msra.mxu0 0.0
        %841 = vmatprep.subr.mxu0 0.0
        %842 = vmatpush1.msra.mxu0 0.0
        %843 = vmatprep.subr.mxu0 0.0
        %844 = vmatpush1.msra.mxu0 0.0
        %845 = vmatprep.subr.mxu0 0.0
        %846 = vmatpush1.msra.mxu0 0.0
        %847 = vmatprep.subr.mxu0 0.0
        %848 = vmatpush1.msra.mxu0 0.0
        %849 = vmatprep.subr.mxu0 0.0
        %850 = vmatpush1.msra.mxu0 0.0
        %851 = vmatprep.subr.mxu0 0.0
        %852 = vmatpush1.msra.mxu0 %v546
        %853 = vmatprep.subr.mxu0 0.0
        %854 = vmatpush1.msra.mxu0 %v545
        %855 = vmatprep.subr.mxu0 0.0
        %856 = vmatpush1.msra.mxu0 %v544
        %857 = vmatprep.subr.mxu0 0.0
        %858 = vmatpush1.msra.mxu0 %v543
        %859 = vmatprep.subr.mxu0 0.0
        %860 = vmatpush2.msra.mxu0 0.0
        %861 = vmatprep.subr.mxu0 0.0
        %862 = vmatpush2.msra.mxu0 0.0
        %863 = vmatprep.subr.mxu0 0.0
        %864 = vmatpush2.msra.mxu0 0.0
        %865 = vmatprep.subr.mxu0 0.0
        %866 = vmatpush2.msra.mxu0 0.0
        %867 = vmatprep.subr.mxu0 0.0
        %868 = vmatpush2.msra.mxu0 0.0
        %869 = vmatprep.subr.mxu0 0.0
        %870 = vmatpush2.msra.mxu0 0.0
        %871 = vmatprep.subr.mxu0 0.0
        %872 = vmatpush2.msra.mxu0 0.0
        %873 = vmatprep.subr.mxu0 0.0
        %874 = vmatpush2.msra.mxu0 0.0
        %875 = vmatprep.subr.mxu0 0.0
        %876 = vmatpush2.msra.mxu0 0.0
        %877 = vmatprep.subr.mxu0 0.0
        %878 = vmatpush2.msra.mxu0 0.0
        %879 = vmatprep.subr.mxu0 0.0
        %880 = vmatpush2.msra.mxu0 0.0
        %881 = vmatprep.subr.mxu0 0.0
        %882 = vmatpush2.msra.mxu0 0.0
        %883 = vmatprep.subr.mxu0 0.0
        %884 = vmatpush2.msra.mxu0 0.0
        %885 = vmatprep.subr.mxu0 0.0
        %886 = vmatpush2.msra.mxu0 0.0
        %887 = vmatprep.subr.mxu0 0.0
        %888 = vmatpush2.msra.mxu0 0.0
        %889 = vmatprep.subr.mxu0 0.0
        %890 = vmatpush2.msra.mxu0 0.0
        %891 = vmatprep.mubr.f32.mxu0 0.0
        %892 = vmatmul.mubr.f32.gmra.mxu0 %v570
        %v893 = vpop.f32.mrf.mxu0
        %v894 = vadd.f32 0.0, %v893
        %v895 = vpop.f32.mrf.mxu0
        %896 = vdwg.mxu0
        %v897 = vadd.f32 %v826, %v894
        %v898 = vxor.u32 %v897, 2147483648
        %v899 = vmul.f32 %v898, 1.442695
        %v900 = vpow.pop %v899
        %v901 = vadd.f32 %v900, 1.0
        %v902 = vrcp.pop %v901
        %v903 = vmul.f32 1.0, %v902
        %v904 = vtanh.pop %v897
        %906 = vrot.lane.b32.xlu0 %v567, 32
        %v907 = vpop.permute.xlu0 %906
        %v909 = vmul.f32 %v903, %v907
        %911 = vrot.lane.b32.xlu0 %v904, 64
        %v912 = vpop.permute.xlu0 %911
        %v914 = vmul.f32 %v903, %v912
        %916 = vrot.lane.b32.xlu0 %v914, 32
        %v917 = vpop.permute.xlu0 %916
        %v919 = vadd.f32 %v909, %v917
        %v920 = vtanh.pop %v919
        %922 = vrot.lane.b32.xlu0 %v920, 64
        %v923 = vpop.permute.xlu0 %922
        %v925 = vmul.f32 %v903, %v923
        %v926 = vld [vmem:[%s509] sm:$0x3]
        %928 = vrot.lane.b32.xlu0 %v925, 32
        %v929 = vpop.permute.xlu0 %928
        %v930 = vsel %vm568, %v929, 0
        %932 = vmatprep.subr.mxu0 0.0
        %933 = vmatpush1.msra.mxu0 0.0
        %934 = vmatprep.subr.mxu0 0.0
        %935 = vmatpush1.msra.mxu0 0.0
        %936 = vmatprep.subr.mxu0 0.0
        %937 = vmatpush1.msra.mxu0 0.0
        %938 = vmatprep.subr.mxu0 0.0
        %939 = vmatpush1.msra.mxu0 0.0
        %940 = vmatprep.subr.mxu0 0.0
        %941 = vmatpush1.msra.mxu0 0.0
        %942 = vmatprep.subr.mxu0 0.0
        %943 = vmatpush1.msra.mxu0 0.0
        %944 = vmatprep.subr.mxu0 0.0
        %945 = vmatpush1.msra.mxu0 0.0
        %946 = vmatprep.subr.mxu0 0.0
        %947 = vmatpush1.msra.mxu0 0.0
        %948 = vmatprep.subr.mxu0 0.0
        %949 = vmatpush1.msra.mxu0 0.0
        %950 = vmatprep.subr.mxu0 0.0
        %951 = vmatpush1.msra.mxu0 0.0
        %952 = vmatprep.subr.mxu0 0.0
        %953 = vmatpush1.msra.mxu0 0.0
        %954 = vmatprep.subr.mxu0 0.0
        %955 = vmatpush1.msra.mxu0 0.0
        %956 = vmatprep.subr.mxu0 0.0
        %957 = vmatpush1.msra.mxu0 %v550
        %958 = vmatprep.subr.mxu0 0.0
        %959 = vmatpush1.msra.mxu0 %v549
        %960 = vmatprep.subr.mxu0 0.0
        %961 = vmatpush1.msra.mxu0 %v548
        %962 = vmatprep.subr.mxu0 0.0
        %963 = vmatpush1.msra.mxu0 %v547
        %964 = vmatprep.subr.mxu0 0.0
        %965 = vmatpush2.msra.mxu0 0.0
        %966 = vmatprep.subr.mxu0 0.0
        %967 = vmatpush2.msra.mxu0 0.0
        %968 = vmatprep.subr.mxu0 0.0
        %969 = vmatpush2.msra.mxu0 0.0
        %970 = vmatprep.subr.mxu0 0.0
        %971 = vmatpush2.msra.mxu0 0.0
        %972 = vmatprep.subr.mxu0 0.0
        %973 = vmatpush2.msra.mxu0 0.0
        %974 = vmatprep.subr.mxu0 0.0
        %975 = vmatpush2.msra.mxu0 0.0
        %976 = vmatprep.subr.mxu0 0.0
        %977 = vmatpush2.msra.mxu0 0.0
        %978 = vmatprep.subr.mxu0 0.0
        %979 = vmatpush2.msra.mxu0 0.0
        %980 = vmatprep.subr.mxu0 0.0
        %981 = vmatpush2.msra.mxu0 0.0
        %982 = vmatprep.subr.mxu0 0.0
        %983 = vmatpush2.msra.mxu0 0.0
        %984 = vmatprep.subr.mxu0 0.0
        %985 = vmatpush2.msra.mxu0 0.0
        %986 = vmatprep.subr.mxu0 0.0
        %987 = vmatpush2.msra.mxu0 0.0
        %988 = vmatprep.subr.mxu0 0.0
        %989 = vmatpush2.msra.mxu0 0.0
        %990 = vmatprep.subr.mxu0 0.0
        %991 = vmatpush2.msra.mxu0 0.0
        %992 = vmatprep.subr.mxu0 0.0
        %993 = vmatpush2.msra.mxu0 0.0
        %994 = vmatprep.subr.mxu0 0.0
        %995 = vmatpush2.msra.mxu0 0.0
        %996 = vmatprep.mubr.f32.mxu0 0.0
        %997 = vmatmul.mubr.f32.gmra.mxu0 %v930
        %v998 = vpop.f32.mrf.mxu0
        %v999 = vadd.f32 0.0, %v998
        %v1000 = vpop.f32.mrf.mxu0
        %1001 = vdwg.mxu0
        %v1002 = vadd.f32 %v926, %v999
        %1003 = vmatprep.subr.mxu0 0.0
        %1004 = vmatpush1.msra.mxu0 0.0
        %1005 = vmatprep.subr.mxu0 0.0
        %1006 = vmatpush1.msra.mxu0 0.0
        %1007 = vmatprep.subr.mxu0 0.0
        %1008 = vmatpush1.msra.mxu0 0.0
        %1009 = vmatprep.subr.mxu0 0.0
        %1010 = vmatpush1.msra.mxu0 0.0
        %1011 = vmatprep.subr.mxu0 0.0
        %1012 = vmatpush1.msra.mxu0 0.0
        %1013 = vmatprep.subr.mxu0 0.0
        %1014 = vmatpush1.msra.mxu0 0.0
        %1015 = vmatprep.subr.mxu0 0.0
        %1016 = vmatpush1.msra.mxu0 0.0
        %1017 = vmatprep.subr.mxu0 0.0
        %1018 = vmatpush1.msra.mxu0 0.0
        %1019 = vmatprep.subr.mxu0 0.0
        %1020 = vmatpush1.msra.mxu0 %v558
        %1021 = vmatprep.subr.mxu0 0.0
        %1022 = vmatpush1.msra.mxu0 %v557
        %1023 = vmatprep.subr.mxu0 0.0
        %1024 = vmatpush1.msra.mxu0 %v556
        %1025 = vmatprep.subr.mxu0 0.0
        %1026 = vmatpush1.msra.mxu0 %v555
        %1027 = vmatprep.subr.mxu0 0.0
        %1028 = vmatpush1.msra.mxu0 %v554
        %1029 = vmatprep.subr.mxu0 0.0
        %1030 = vmatpush1.msra.mxu0 %v553
        %1031 = vmatprep.subr.mxu0 0.0
        %1032 = vmatpush1.msra.mxu0 %v552
        %1033 = vmatprep.subr.mxu0 0.0
        %1034 = vmatpush1.msra.mxu0 %v551
        %1035 = vmatprep.subr.mxu0 0.0
        %1036 = vmatpush2.msra.mxu0 0.0
        %1037 = vmatprep.subr.mxu0 0.0
        %1038 = vmatpush2.msra.mxu0 0.0
        %1039 = vmatprep.subr.mxu0 0.0
        %1040 = vmatpush2.msra.mxu0 0.0
        %1041 = vmatprep.subr.mxu0 0.0
        %1042 = vmatpush2.msra.mxu0 0.0
        %1043 = vmatprep.subr.mxu0 0.0
        %1044 = vmatpush2.msra.mxu0 0.0
        %1045 = vmatprep.subr.mxu0 0.0
        %1046 = vmatpush2.msra.mxu0 0.0
        %1047 = vmatprep.subr.mxu0 0.0
        %1048 = vmatpush2.msra.mxu0 0.0
        %1049 = vmatprep.subr.mxu0 0.0
        %1050 = vmatpush2.msra.mxu0 0.0
        %1051 = vmatprep.subr.mxu0 0.0
        %1052 = vmatpush2.msra.mxu0 0.0
        %1053 = vmatprep.subr.mxu0 0.0
        %1054 = vmatpush2.msra.mxu0 0.0
        %1055 = vmatprep.subr.mxu0 0.0
        %1056 = vmatpush2.msra.mxu0 0.0
        %1057 = vmatprep.subr.mxu0 0.0
        %1058 = vmatpush2.msra.mxu0 0.0
        %1059 = vmatprep.subr.mxu0 0.0
        %1060 = vmatpush2.msra.mxu0 0.0
        %1061 = vmatprep.subr.mxu0 0.0
        %1062 = vmatpush2.msra.mxu0 0.0
        %1063 = vmatprep.subr.mxu0 0.0
        %1064 = vmatpush2.msra.mxu0 0.0
        %1065 = vmatprep.subr.mxu0 0.0
        %1066 = vmatpush2.msra.mxu0 0.0
        %1067 = vmatprep.mubr.f32.mxu0 0.0
        %1068 = vmatmul.mubr.f32.gmra.mxu0 %v754
        %v1069 = vpop.f32.mrf.mxu0
        %v1070 = vadd.f32 0.0, %v1069
        %v1071 = vpop.f32.mrf.mxu0
        %1072 = vdwg.mxu0
        %v1073 = vadd.f32 %v1002, %v1070
        %vm1074 = vcmask 254976
        %1075 = vst.msk [vmem:[%s515] sm:$0x3] %vm1074, %v1073
        %s1076 = smul.u32 %s29, 4
        %p1077 = scmp.lt.s32.totalorder %s1076, 6
        %s1078 = scalar_select %p1077, 1, 0
        %s1079 = scvt.s32.f32 %s1078
        %v1080 = vstv %s1079
        %v1081 = vmul.f32 %v1080, %v925
        %s1082 = ssub.f32 1.0, %s1079
        %v1083 = vstv %s1082
        %v1084 = vmul.f32 %v1083, %v566
        %1086 = vrot.lane.b32.xlu0 %v1084, 96
        %v1087 = vpop.permute.xlu0 %1086
        %v1089 = vadd.f32 %v1081, %v1087
        %v1090 = vmul.f32 %v1080, %v919
        %v1091 = vmul.f32 %v1083, %v567
        %1093 = vrot.lane.b32.xlu0 %v1091, 32
        %v1094 = vpop.permute.xlu0 %1093
        %v1096 = vadd.f32 %v1090, %v1094
        %1098 = vrot.lane.b32.xlu0 %v1089, 32
        %v1099 = vpop.permute.xlu0 %1098
        %v1100 = vsel %vm568, %v1099, 0
        %1102 = vmatprep.subr.mxu0 0.0
        %1103 = vmatpush1.msra.mxu0 0.0
        %1104 = vmatprep.subr.mxu0 0.0
        %1105 = vmatpush1.msra.mxu0 0.0
        %1106 = vmatprep.subr.mxu0 0.0
        %1107 = vmatpush1.msra.mxu0 0.0
        %1108 = vmatprep.subr.mxu0 0.0
        %1109 = vmatpush1.msra.mxu0 0.0
        %1110 = vmatprep.subr.mxu0 0.0
        %1111 = vmatpush1.msra.mxu0 0.0
        %1112 = vmatprep.subr.mxu0 0.0
        %1113 = vmatpush1.msra.mxu0 0.0
        %1114 = vmatprep.subr.mxu0 0.0
        %1115 = vmatpush1.msra.mxu0 0.0
        %1116 = vmatprep.subr.mxu0 0.0
        %1117 = vmatpush1.msra.mxu0 0.0
        %1118 = vmatprep.subr.mxu0 0.0
        %1119 = vmatpush1.msra.mxu0 0.0
        %1120 = vmatprep.subr.mxu0 0.0
        %1121 = vmatpush1.msra.mxu0 0.0
        %1122 = vmatprep.subr.mxu0 0.0
        %1123 = vmatpush1.msra.mxu0 0.0
        %1124 = vmatprep.subr.mxu0 0.0
        %1125 = vmatpush1.msra.mxu0 0.0
        %1126 = vmatprep.subr.mxu0 0.0
        %1127 = vmatpush1.msra.mxu0 %v534
        %1128 = vmatprep.subr.mxu0 0.0
        %1129 = vmatpush1.msra.mxu0 %v533
        %1130 = vmatprep.subr.mxu0 0.0
        %1131 = vmatpush1.msra.mxu0 %v532
        %1132 = vmatprep.subr.mxu0 0.0
        %1133 = vmatpush1.msra.mxu0 %v531
        %1134 = vmatprep.subr.mxu0 0.0
        %1135 = vmatpush2.msra.mxu0 0.0
        %1136 = vmatprep.subr.mxu0 0.0
        %1137 = vmatpush2.msra.mxu0 0.0
        %1138 = vmatprep.subr.mxu0 0.0
        %1139 = vmatpush2.msra.mxu0 0.0
        %1140 = vmatprep.subr.mxu0 0.0
        %1141 = vmatpush2.msra.mxu0 0.0
        %1142 = vmatprep.subr.mxu0 0.0
        %1143 = vmatpush2.msra.mxu0 0.0
        %1144 = vmatprep.subr.mxu0 0.0
        %1145 = vmatpush2.msra.mxu0 0.0
        %1146 = vmatprep.subr.mxu0 0.0
        %1147 = vmatpush2.msra.mxu0 0.0
        %1148 = vmatprep.subr.mxu0 0.0
        %1149 = vmatpush2.msra.mxu0 0.0
        %1150 = vmatprep.subr.mxu0 0.0
        %1151 = vmatpush2.msra.mxu0 0.0
        %1152 = vmatprep.subr.mxu0 0.0
        %1153 = vmatpush2.msra.mxu0 0.0
        %1154 = vmatprep.subr.mxu0 0.0
        %1155 = vmatpush2.msra.mxu0 0.0
        %1156 = vmatprep.subr.mxu0 0.0
        %1157 = vmatpush2.msra.mxu0 0.0
        %1158 = vmatprep.subr.mxu0 0.0
        %1159 = vmatpush2.msra.mxu0 0.0
        %1160 = vmatprep.subr.mxu0 0.0
        %1161 = vmatpush2.msra.mxu0 0.0
        %1162 = vmatprep.subr.mxu0 0.0
        %1163 = vmatpush2.msra.mxu0 0.0
        %1164 = vmatprep.subr.mxu0 0.0
        %1165 = vmatpush2.msra.mxu0 0.0
        %1166 = vmatprep.mubr.f32.mxu0 0.0
        %1167 = vmatmul.mubr.f32.gmra.mxu0 %v1100
        %v1168 = vpop.f32.mrf.mxu0
        %v1169 = vadd.f32 0.0, %v1168
        %v1170 = vpop.f32.mrf.mxu0
        %1171 = vdwg.mxu0
        %v1174 = vunpack.c.l.s4 1966171168
        %v1175 = vunpack.c.0.s8 %v1174
        %v1176 = vlaneseq
        %v1177 = vshrl.u32 %v1176, 7
        %v1178 = vsub.s32 %v1175, %v1177
        %v1179 = vrot.slane %v1169, %v1178
        %v1180 = vcombine.high %v1179, %v1179
        %v1182 = vunpack.c.l.s4 1966171168
        %v1183 = vunpack.c.0.s8 %v1182
        %v1184 = vlaneseq
        %v1185 = vshrl.u32 %v1184, 7
        %v1186 = vsub.s32 %v1183, %v1185
        %v1187 = vrot.slane %v1179, %v1186
        %v1189 = vunpack.c.l.s4 1966171168
        %v1190 = vunpack.c.0.s8 %v1189
        %v1191 = vlaneseq
        %v1192 = vshrl.u32 %v1191, 7
        %v1193 = vsub.s32 %v1190, %v1192
        %v1194 = vrot.slane %v1180, %v1193
        %v1195 = vlaneseq
        %v1196 = vshrl.u32 %v1195, 7
        %v1197 = vsub.s32 0, %v1196
        %v1198 = vrot.slane %v1187, %v1197
        %v1199 = vlaneseq
        %v1200 = vshrl.u32 %v1199, 7
        %v1201 = vsub.s32 0, %v1200
        %v1202 = vrot.slane %v1194, %v1201
        %v1205 = vadd.f32 %v1198, %v528
        %v1206 = vadd.f32 %v1202, %v529
        %v1207 = vtanh.pop %v1205
        %v1208 = vtanh.pop %v1206
        %v1209 = vmul.f32 %v1207, %v683
        %v1210 = vmul.f32 %v1208, %v683
        %v1211 = vsel %vm568, %v1209, 0.0
        %1212 = vadd.xlane.f32.xlu0 %v1211
        %v1213 = vpop.xlane.xlu0 %1212
        %v1214 = vsel %vm568, %v1210, 0.0
        %1215 = vadd.xlane.f32.xlu0 %v1214
        %v1216 = vpop.xlane.xlu0 %1215
        %v1219 = vlaneseq
        %v1220 = vshrl.u32 %v1219, 7
        %v1221 = vsub.s32 %v560, %v1220
        %v1222 = vrot.slane %v1213, %v1221
        %v1223 = vlaneseq
        %v1224 = vshrl.u32 %v1223, 7
        %v1225 = vsub.s32 %v560, %v1224
        %v1226 = vrot.slane %v1216, %v1225
        %v1227 = vsel %vm703, %v1226, %v1222
        %v1229 = vsel %vm565, %v1227, -1e+30
        %v1230 = vsel %vm707, %v1229, -inf
        %1231 = vmax.xlane.f32.xlu0 %v1230
        %v1232 = vpop.xlane.xlu0 %1231
        %v1233 = vsub.f32 %v1229, %v1232
        %v1234 = vmul.f32 %v1233, 1.442695
        %v1235 = vpow.pop %v1234
        %v1236 = vsel %vm707, %v1235, 0.0
        %1237 = vadd.xlane.f32.xlu0 %v1236
        %v1238 = vpop.xlane.xlu0 %1237
        %v1239 = vrcp.pop %v1238
        %v1240 = vmul.f32 %v1235, %v1239
        %v1241 = vlaneseq
        %v1242 = vshrl.u32 %v1241, 7
        %v1243 = vsub.s32 0, %v1242
        %v1244 = vrot.slane %v1240, %v1243
        %1246 = vbcast.lane.b32.xlu0 %v1244, 256
        %v1247 = vpop.permute.xlu0 %1246
        %v1248 = vlaneseq
        %v1249 = vshrl.u32 %v1248, 7
        %v1250 = vsub.s32 1, %v1249
        %v1251 = vrot.slane %v1240, %v1250
        %1253 = vbcast.lane.b32.xlu0 %v1251, 256
        %v1254 = vpop.permute.xlu0 %1253
        %v1255 = vmul.f32 %v1247, %v526
        %v1256 = vmul.f32 %v1254, %v527
        %v1257 = vsel %vm735, %v1255, 0.0
        %v1258 = vrot.slane %v1257, 4
        %v1259 = vadd.f32 %v1257, %v1258
        %v1260 = vrot.slane %v1259, 2
        %v1261 = vadd.f32 %v1259, %v1260
        %v1262 = vrot.slane %v1261, 1
        %v1263 = vadd.f32 %v1261, %v1262
        %v1264 = vsel %vm735, %v1256, 0.0
        %v1265 = vrot.slane %v1264, 4
        %v1266 = vadd.f32 %v1264, %v1265
        %v1267 = vrot.slane %v1266, 2
        %v1268 = vadd.f32 %v1266, %v1267
        %v1269 = vrot.slane %v1268, 1
        %v1270 = vadd.f32 %v1268, %v1269
        %s1271 = scalar_lea.vmem %s503, 2
        %v1272 = vld [vmem:[%s1271] sm:$0x3]
        %v1275 = vsel %vm703, %v1270, %v1263
        %v1276 = vsel %vm735, %v1275, 0
        %1278 = vmatprep.subr.mxu0 0.0
        %1279 = vmatpush1.msra.mxu0 0.0
        %1280 = vmatprep.subr.mxu0 0.0
        %1281 = vmatpush1.msra.mxu0 0.0
        %1282 = vmatprep.subr.mxu0 0.0
        %1283 = vmatpush1.msra.mxu0 0.0
        %1284 = vmatprep.subr.mxu0 0.0
        %1285 = vmatpush1.msra.mxu0 0.0
        %1286 = vmatprep.subr.mxu0 0.0
        %1287 = vmatpush1.msra.mxu0 0.0
        %1288 = vmatprep.subr.mxu0 0.0
        %1289 = vmatpush1.msra.mxu0 0.0
        %1290 = vmatprep.subr.mxu0 0.0
        %1291 = vmatpush1.msra.mxu0 0.0
        %1292 = vmatprep.subr.mxu0 0.0
        %1293 = vmatpush1.msra.mxu0 0.0
        %1294 = vmatprep.subr.mxu0 0.0
        %1295 = vmatpush1.msra.mxu0 %v542
        %1296 = vmatprep.subr.mxu0 0.0
        %1297 = vmatpush1.msra.mxu0 %v541
        %1298 = vmatprep.subr.mxu0 0.0
        %1299 = vmatpush1.msra.mxu0 %v540
        %1300 = vmatprep.subr.mxu0 0.0
        %1301 = vmatpush1.msra.mxu0 %v539
        %1302 = vmatprep.subr.mxu0 0.0
        %1303 = vmatpush1.msra.mxu0 %v538
        %1304 = vmatprep.subr.mxu0 0.0
        %1305 = vmatpush1.msra.mxu0 %v537
        %1306 = vmatprep.subr.mxu0 0.0
        %1307 = vmatpush1.msra.mxu0 %v536
        %1308 = vmatprep.subr.mxu0 0.0
        %1309 = vmatpush1.msra.mxu0 %v535
        %1310 = vmatprep.subr.mxu0 0.0
        %1311 = vmatpush2.msra.mxu0 0.0
        %1312 = vmatprep.subr.mxu0 0.0
        %1313 = vmatpush2.msra.mxu0 0.0
        %1314 = vmatprep.subr.mxu0 0.0
        %1315 = vmatpush2.msra.mxu0 0.0
        %1316 = vmatprep.subr.mxu0 0.0
        %1317 = vmatpush2.msra.mxu0 0.0
        %1318 = vmatprep.subr.mxu0 0.0
        %1319 = vmatpush2.msra.mxu0 0.0
        %1320 = vmatprep.subr.mxu0 0.0
        %1321 = vmatpush2.msra.mxu0 0.0
        %1322 = vmatprep.subr.mxu0 0.0
        %1323 = vmatpush2.msra.mxu0 0.0
        %1324 = vmatprep.subr.mxu0 0.0
        %1325 = vmatpush2.msra.mxu0 0.0
        %1326 = vmatprep.subr.mxu0 0.0
        %1327 = vmatpush2.msra.mxu0 0.0
        %1328 = vmatprep.subr.mxu0 0.0
        %1329 = vmatpush2.msra.mxu0 0.0
        %1330 = vmatprep.subr.mxu0 0.0
        %1331 = vmatpush2.msra.mxu0 0.0
        %1332 = vmatprep.subr.mxu0 0.0
        %1333 = vmatpush2.msra.mxu0 0.0
        %1334 = vmatprep.subr.mxu0 0.0
        %1335 = vmatpush2.msra.mxu0 0.0
        %1336 = vmatprep.subr.mxu0 0.0
        %1337 = vmatpush2.msra.mxu0 0.0
        %1338 = vmatprep.subr.mxu0 0.0
        %1339 = vmatpush2.msra.mxu0 0.0
        %1340 = vmatprep.subr.mxu0 0.0
        %1341 = vmatpush2.msra.mxu0 0.0
        %1342 = vmatprep.mubr.f32.mxu0 0.0
        %1343 = vmatmul.mubr.f32.gmra.mxu0 %v1276
        %v1344 = vpop.f32.mrf.mxu0
        %v1345 = vadd.f32 0.0, %v1344
        %v1346 = vpop.f32.mrf.mxu0
        %1347 = vdwg.mxu0
        %v1348 = vadd.f32 %v1272, %v1345
        %1349 = vmatprep.subr.mxu0 0.0
        %1350 = vmatpush1.msra.mxu0 0.0
        %1351 = vmatprep.subr.mxu0 0.0
        %1352 = vmatpush1.msra.mxu0 0.0
        %1353 = vmatprep.subr.mxu0 0.0
        %1354 = vmatpush1.msra.mxu0 0.0
        %1355 = vmatprep.subr.mxu0 0.0
        %1356 = vmatpush1.msra.mxu0 0.0
        %1357 = vmatprep.subr.mxu0 0.0
        %1358 = vmatpush1.msra.mxu0 0.0
        %1359 = vmatprep.subr.mxu0 0.0
        %1360 = vmatpush1.msra.mxu0 0.0
        %1361 = vmatprep.subr.mxu0 0.0
        %1362 = vmatpush1.msra.mxu0 0.0
        %1363 = vmatprep.subr.mxu0 0.0
        %1364 = vmatpush1.msra.mxu0 0.0
        %1365 = vmatprep.subr.mxu0 0.0
        %1366 = vmatpush1.msra.mxu0 0.0
        %1367 = vmatprep.subr.mxu0 0.0
        %1368 = vmatpush1.msra.mxu0 0.0
        %1369 = vmatprep.subr.mxu0 0.0
        %1370 = vmatpush1.msra.mxu0 0.0
        %1371 = vmatprep.subr.mxu0 0.0
        %1372 = vmatpush1.msra.mxu0 0.0
        %1373 = vmatprep.subr.mxu0 0.0
        %1374 = vmatpush1.msra.mxu0 %v546
        %1375 = vmatprep.subr.mxu0 0.0
        %1376 = vmatpush1.msra.mxu0 %v545
        %1377 = vmatprep.subr.mxu0 0.0
        %1378 = vmatpush1.msra.mxu0 %v544
        %1379 = vmatprep.subr.mxu0 0.0
        %1380 = vmatpush1.msra.mxu0 %v543
        %1381 = vmatprep.subr.mxu0 0.0
        %1382 = vmatpush2.msra.mxu0 0.0
        %1383 = vmatprep.subr.mxu0 0.0
        %1384 = vmatpush2.msra.mxu0 0.0
        %1385 = vmatprep.subr.mxu0 0.0
        %1386 = vmatpush2.msra.mxu0 0.0
        %1387 = vmatprep.subr.mxu0 0.0
        %1388 = vmatpush2.msra.mxu0 0.0
        %1389 = vmatprep.subr.mxu0 0.0
        %1390 = vmatpush2.msra.mxu0 0.0
        %1391 = vmatprep.subr.mxu0 0.0
        %1392 = vmatpush2.msra.mxu0 0.0
        %1393 = vmatprep.subr.mxu0 0.0
        %1394 = vmatpush2.msra.mxu0 0.0
        %1395 = vmatprep.subr.mxu0 0.0
        %1396 = vmatpush2.msra.mxu0 0.0
        %1397 = vmatprep.subr.mxu0 0.0
        %1398 = vmatpush2.msra.mxu0 0.0
        %1399 = vmatprep.subr.mxu0 0.0
        %1400 = vmatpush2.msra.mxu0 0.0
        %1401 = vmatprep.subr.mxu0 0.0
        %1402 = vmatpush2.msra.mxu0 0.0
        %1403 = vmatprep.subr.mxu0 0.0
        %1404 = vmatpush2.msra.mxu0 0.0
        %1405 = vmatprep.subr.mxu0 0.0
        %1406 = vmatpush2.msra.mxu0 0.0
        %1407 = vmatprep.subr.mxu0 0.0
        %1408 = vmatpush2.msra.mxu0 0.0
        %1409 = vmatprep.subr.mxu0 0.0
        %1410 = vmatpush2.msra.mxu0 0.0
        %1411 = vmatprep.subr.mxu0 0.0
        %1412 = vmatpush2.msra.mxu0 0.0
        %1413 = vmatprep.mubr.f32.mxu0 0.0
        %1414 = vmatmul.mubr.f32.gmra.mxu0 %v1100
        %v1415 = vpop.f32.mrf.mxu0
        %v1416 = vadd.f32 0.0, %v1415
        %v1417 = vpop.f32.mrf.mxu0
        %1418 = vdwg.mxu0
        %v1419 = vadd.f32 %v1348, %v1416
        %v1420 = vxor.u32 %v1419, 2147483648
        %v1421 = vmul.f32 %v1420, 1.442695
        %v1422 = vpow.pop %v1421
        %v1423 = vadd.f32 %v1422, 1.0
        %v1424 = vrcp.pop %v1423
        %v1425 = vmul.f32 1.0, %v1424
        %v1426 = vtanh.pop %v1419
        %v1427 = vmul.f32 %v1425, %v1096
        %1429 = vrot.lane.b32.xlu0 %v1426, 64
        %v1430 = vpop.permute.xlu0 %1429
        %v1432 = vmul.f32 %v1425, %v1430
        %1434 = vrot.lane.b32.xlu0 %v1432, 32
        %v1435 = vpop.permute.xlu0 %1434
        %v1437 = vadd.f32 %v1427, %v1435
        %v1438 = vtanh.pop %v1437
        %1440 = vrot.lane.b32.xlu0 %v1438, 64
        %v1441 = vpop.permute.xlu0 %1440
        %v1443 = vmul.f32 %v1425, %v1441
        %s1444 = scalar_lea.vmem %s509, 2
        %v1445 = vld [vmem:[%s1444] sm:$0x3]
        %1447 = vrot.lane.b32.xlu0 %v1443, 32
        %v1448 = vpop.permute.xlu0 %1447
        %v1449 = vsel %vm568, %v1448, 0
        %1451 = vmatprep.subr.mxu0 0.0
        %1452 = vmatpush1.msra.mxu0 0.0
        %1453 = vmatprep.subr.mxu0 0.0
        %1454 = vmatpush1.msra.mxu0 0.0
        %1455 = vmatprep.subr.mxu0 0.0
        %1456 = vmatpush1.msra.mxu0 0.0
        %1457 = vmatprep.subr.mxu0 0.0
        %1458 = vmatpush1.msra.mxu0 0.0
        %1459 = vmatprep.subr.mxu0 0.0
        %1460 = vmatpush1.msra.mxu0 0.0
        %1461 = vmatprep.subr.mxu0 0.0
        %1462 = vmatpush1.msra.mxu0 0.0
        %1463 = vmatprep.subr.mxu0 0.0
        %1464 = vmatpush1.msra.mxu0 0.0
        %1465 = vmatprep.subr.mxu0 0.0
        %1466 = vmatpush1.msra.mxu0 0.0
        %1467 = vmatprep.subr.mxu0 0.0
        %1468 = vmatpush1.msra.mxu0 0.0
        %1469 = vmatprep.subr.mxu0 0.0
        %1470 = vmatpush1.msra.mxu0 0.0
        %1471 = vmatprep.subr.mxu0 0.0
        %1472 = vmatpush1.msra.mxu0 0.0
        %1473 = vmatprep.subr.mxu0 0.0
        %1474 = vmatpush1.msra.mxu0 0.0
        %1475 = vmatprep.subr.mxu0 0.0
        %1476 = vmatpush1.msra.mxu0 %v550
        %1477 = vmatprep.subr.mxu0 0.0
        %1478 = vmatpush1.msra.mxu0 %v549
        %1479 = vmatprep.subr.mxu0 0.0
        %1480 = vmatpush1.msra.mxu0 %v548
        %1481 = vmatprep.subr.mxu0 0.0
        %1482 = vmatpush1.msra.mxu0 %v547
        %1483 = vmatprep.subr.mxu0 0.0
        %1484 = vmatpush2.msra.mxu0 0.0
        %1485 = vmatprep.subr.mxu0 0.0
        %1486 = vmatpush2.msra.mxu0 0.0
        %1487 = vmatprep.subr.mxu0 0.0
        %1488 = vmatpush2.msra.mxu0 0.0
        %1489 = vmatprep.subr.mxu0 0.0
        %1490 = vmatpush2.msra.mxu0 0.0
        %1491 = vmatprep.subr.mxu0 0.0
        %1492 = vmatpush2.msra.mxu0 0.0
        %1493 = vmatprep.subr.mxu0 0.0
        %1494 = vmatpush2.msra.mxu0 0.0
        %1495 = vmatprep.subr.mxu0 0.0
        %1496 = vmatpush2.msra.mxu0 0.0
        %1497 = vmatprep.subr.mxu0 0.0
        %1498 = vmatpush2.msra.mxu0 0.0
        %1499 = vmatprep.subr.mxu0 0.0
        %1500 = vmatpush2.msra.mxu0 0.0
        %1501 = vmatprep.subr.mxu0 0.0
        %1502 = vmatpush2.msra.mxu0 0.0
        %1503 = vmatprep.subr.mxu0 0.0
        %1504 = vmatpush2.msra.mxu0 0.0
        %1505 = vmatprep.subr.mxu0 0.0
        %1506 = vmatpush2.msra.mxu0 0.0
        %1507 = vmatprep.subr.mxu0 0.0
        %1508 = vmatpush2.msra.mxu0 0.0
        %1509 = vmatprep.subr.mxu0 0.0
        %1510 = vmatpush2.msra.mxu0 0.0
        %1511 = vmatprep.subr.mxu0 0.0
        %1512 = vmatpush2.msra.mxu0 0.0
        %1513 = vmatprep.subr.mxu0 0.0
        %1514 = vmatpush2.msra.mxu0 0.0
        %1515 = vmatprep.mubr.f32.mxu0 0.0
        %1516 = vmatmul.mubr.f32.gmra.mxu0 %v1449
        %v1517 = vpop.f32.mrf.mxu0
        %v1518 = vadd.f32 0.0, %v1517
        %v1519 = vpop.f32.mrf.mxu0
        %1520 = vdwg.mxu0
        %v1521 = vadd.f32 %v1445, %v1518
        %1522 = vmatprep.subr.mxu0 0.0
        %1523 = vmatpush1.msra.mxu0 0.0
        %1524 = vmatprep.subr.mxu0 0.0
        %1525 = vmatpush1.msra.mxu0 0.0
        %1526 = vmatprep.subr.mxu0 0.0
        %1527 = vmatpush1.msra.mxu0 0.0
        %1528 = vmatprep.subr.mxu0 0.0
        %1529 = vmatpush1.msra.mxu0 0.0
        %1530 = vmatprep.subr.mxu0 0.0
        %1531 = vmatpush1.msra.mxu0 0.0
        %1532 = vmatprep.subr.mxu0 0.0
        %1533 = vmatpush1.msra.mxu0 0.0
        %1534 = vmatprep.subr.mxu0 0.0
        %1535 = vmatpush1.msra.mxu0 0.0
        %1536 = vmatprep.subr.mxu0 0.0
        %1537 = vmatpush1.msra.mxu0 0.0
        %1538 = vmatprep.subr.mxu0 0.0
        %1539 = vmatpush1.msra.mxu0 %v558
        %1540 = vmatprep.subr.mxu0 0.0
        %1541 = vmatpush1.msra.mxu0 %v557
        %1542 = vmatprep.subr.mxu0 0.0
        %1543 = vmatpush1.msra.mxu0 %v556
        %1544 = vmatprep.subr.mxu0 0.0
        %1545 = vmatpush1.msra.mxu0 %v555
        %1546 = vmatprep.subr.mxu0 0.0
        %1547 = vmatpush1.msra.mxu0 %v554
        %1548 = vmatprep.subr.mxu0 0.0
        %1549 = vmatpush1.msra.mxu0 %v553
        %1550 = vmatprep.subr.mxu0 0.0
        %1551 = vmatpush1.msra.mxu0 %v552
        %1552 = vmatprep.subr.mxu0 0.0
        %1553 = vmatpush1.msra.mxu0 %v551
        %1554 = vmatprep.subr.mxu0 0.0
        %1555 = vmatpush2.msra.mxu0 0.0
        %1556 = vmatprep.subr.mxu0 0.0
        %1557 = vmatpush2.msra.mxu0 0.0
        %1558 = vmatprep.subr.mxu0 0.0
        %1559 = vmatpush2.msra.mxu0 0.0
        %1560 = vmatprep.subr.mxu0 0.0
        %1561 = vmatpush2.msra.mxu0 0.0
        %1562 = vmatprep.subr.mxu0 0.0
        %1563 = vmatpush2.msra.mxu0 0.0
        %1564 = vmatprep.subr.mxu0 0.0
        %1565 = vmatpush2.msra.mxu0 0.0
        %1566 = vmatprep.subr.mxu0 0.0
        %1567 = vmatpush2.msra.mxu0 0.0
        %1568 = vmatprep.subr.mxu0 0.0
        %1569 = vmatpush2.msra.mxu0 0.0
        %1570 = vmatprep.subr.mxu0 0.0
        %1571 = vmatpush2.msra.mxu0 0.0
        %1572 = vmatprep.subr.mxu0 0.0
        %1573 = vmatpush2.msra.mxu0 0.0
        %1574 = vmatprep.subr.mxu0 0.0
        %1575 = vmatpush2.msra.mxu0 0.0
        %1576 = vmatprep.subr.mxu0 0.0
        %1577 = vmatpush2.msra.mxu0 0.0
        %1578 = vmatprep.subr.mxu0 0.0
        %1579 = vmatpush2.msra.mxu0 0.0
        %1580 = vmatprep.subr.mxu0 0.0
        %1581 = vmatpush2.msra.mxu0 0.0
        %1582 = vmatprep.subr.mxu0 0.0
        %1583 = vmatpush2.msra.mxu0 0.0
        %1584 = vmatprep.subr.mxu0 0.0
        %1585 = vmatpush2.msra.mxu0 0.0
        %1586 = vmatprep.mubr.f32.mxu0 0.0
        %1587 = vmatmul.mubr.f32.gmra.mxu0 %v1276
        %v1588 = vpop.f32.mrf.mxu0
        %v1589 = vadd.f32 0.0, %v1588
        %v1590 = vpop.f32.mrf.mxu0
        %1591 = vdwg.mxu0
        %v1592 = vadd.f32 %v1521, %v1589
        %s1593 = scalar_lea.vmem %s515, 2
        %1594 = vst.msk [vmem:[%s1593] sm:$0x3] %vm1074, %v1592
        %s1595 = sadd.s32 %s1076, 1
        %p1596 = scmp.lt.s32.totalorder %s1595, 6
        %s1597 = scalar_select %p1596, 1, 0
        %s1598 = scvt.s32.f32 %s1597
        %v1599 = vstv %s1598
        %v1600 = vmul.f32 %v1599, %v1443
        %s1601 = ssub.f32 1.0, %s1598
        %v1602 = vstv %s1601
        %v1603 = vmul.f32 %v1602, %v1089
        %v1604 = vadd.f32 %v1600, %v1603
        %v1605 = vmul.f32 %v1599, %v1437
        %v1606 = vmul.f32 %v1602, %v1096
        %v1607 = vadd.f32 %v1605, %v1606
        %1609 = vrot.lane.b32.xlu0 %v1604, 32
        %v1610 = vpop.permute.xlu0 %1609
        %v1611 = vsel %vm568, %v1610, 0
        %1613 = vmatprep.subr.mxu0 0.0
        %1614 = vmatpush1.msra.mxu0 0.0
        %1615 = vmatprep.subr.mxu0 0.0
        %1616 = vmatpush1.msra.mxu0 0.0
        %1617 = vmatprep.subr.mxu0 0.0
        %1618 = vmatpush1.msra.mxu0 0.0
        %1619 = vmatprep.subr.mxu0 0.0
        %1620 = vmatpush1.msra.mxu0 0.0
        %1621 = vmatprep.subr.mxu0 0.0
        %1622 = vmatpush1.msra.mxu0 0.0
        %1623 = vmatprep.subr.mxu0 0.0
        %1624 = vmatpush1.msra.mxu0 0.0
        %1625 = vmatprep.subr.mxu0 0.0
        %1626 = vmatpush1.msra.mxu0 0.0
        %1627 = vmatprep.subr.mxu0 0.0
        %1628 = vmatpush1.msra.mxu0 0.0
        %1629 = vmatprep.subr.mxu0 0.0
        %1630 = vmatpush1.msra.mxu0 0.0
        %1631 = vmatprep.subr.mxu0 0.0
        %1632 = vmatpush1.msra.mxu0 0.0
        %1633 = vmatprep.subr.mxu0 0.0
        %1634 = vmatpush1.msra.mxu0 0.0
        %1635 = vmatprep.subr.mxu0 0.0
        %1636 = vmatpush1.msra.mxu0 0.0
        %1637 = vmatprep.subr.mxu0 0.0
        %1638 = vmatpush1.msra.mxu0 %v534
        %1639 = vmatprep.subr.mxu0 0.0
        %1640 = vmatpush1.msra.mxu0 %v533
        %1641 = vmatprep.subr.mxu0 0.0
        %1642 = vmatpush1.msra.mxu0 %v532
        %1643 = vmatprep.subr.mxu0 0.0
        %1644 = vmatpush1.msra.mxu0 %v531
        %1645 = vmatprep.subr.mxu0 0.0
        %1646 = vmatpush2.msra.mxu0 0.0
        %1647 = vmatprep.subr.mxu0 0.0
        %1648 = vmatpush2.msra.mxu0 0.0
        %1649 = vmatprep.subr.mxu0 0.0
        %1650 = vmatpush2.msra.mxu0 0.0
        %1651 = vmatprep.subr.mxu0 0.0
        %1652 = vmatpush2.msra.mxu0 0.0
        %1653 = vmatprep.subr.mxu0 0.0
        %1654 = vmatpush2.msra.mxu0 0.0
        %1655 = vmatprep.subr.mxu0 0.0
        %1656 = vmatpush2.msra.mxu0 0.0
        %1657 = vmatprep.subr.mxu0 0.0
        %1658 = vmatpush2.msra.mxu0 0.0
        %1659 = vmatprep.subr.mxu0 0.0
        %1660 = vmatpush2.msra.mxu0 0.0
        %1661 = vmatprep.subr.mxu0 0.0
        %1662 = vmatpush2.msra.mxu0 0.0
        %1663 = vmatprep.subr.mxu0 0.0
        %1664 = vmatpush2.msra.mxu0 0.0
        %1665 = vmatprep.subr.mxu0 0.0
        %1666 = vmatpush2.msra.mxu0 0.0
        %1667 = vmatprep.subr.mxu0 0.0
        %1668 = vmatpush2.msra.mxu0 0.0
        %1669 = vmatprep.subr.mxu0 0.0
        %1670 = vmatpush2.msra.mxu0 0.0
        %1671 = vmatprep.subr.mxu0 0.0
        %1672 = vmatpush2.msra.mxu0 0.0
        %1673 = vmatprep.subr.mxu0 0.0
        %1674 = vmatpush2.msra.mxu0 0.0
        %1675 = vmatprep.subr.mxu0 0.0
        %1676 = vmatpush2.msra.mxu0 0.0
        %1677 = vmatprep.mubr.f32.mxu0 0.0
        %1678 = vmatmul.mubr.f32.gmra.mxu0 %v1611
        %v1679 = vpop.f32.mrf.mxu0
        %v1680 = vadd.f32 0.0, %v1679
        %v1681 = vpop.f32.mrf.mxu0
        %1682 = vdwg.mxu0
        %v1685 = vunpack.c.l.s4 1966171168
        %v1686 = vunpack.c.0.s8 %v1685
        %v1687 = vlaneseq
        %v1688 = vshrl.u32 %v1687, 7
        %v1689 = vsub.s32 %v1686, %v1688
        %v1690 = vrot.slane %v1680, %v1689
        %v1691 = vcombine.high %v1690, %v1690
        %v1693 = vunpack.c.l.s4 1966171168
        %v1694 = vunpack.c.0.s8 %v1693
        %v1695 = vlaneseq
        %v1696 = vshrl.u32 %v1695, 7
        %v1697 = vsub.s32 %v1694, %v1696
        %v1698 = vrot.slane %v1690, %v1697
        %v1700 = vunpack.c.l.s4 1966171168
        %v1701 = vunpack.c.0.s8 %v1700
        %v1702 = vlaneseq
        %v1703 = vshrl.u32 %v1702, 7
        %v1704 = vsub.s32 %v1701, %v1703
        %v1705 = vrot.slane %v1691, %v1704
        %v1706 = vlaneseq
        %v1707 = vshrl.u32 %v1706, 7
        %v1708 = vsub.s32 0, %v1707
        %v1709 = vrot.slane %v1698, %v1708
        %v1710 = vlaneseq
        %v1711 = vshrl.u32 %v1710, 7
        %v1712 = vsub.s32 0, %v1711
        %v1713 = vrot.slane %v1705, %v1712
        %v1716 = vadd.f32 %v1709, %v528
        %v1717 = vadd.f32 %v1713, %v529
        %v1718 = vtanh.pop %v1716
        %v1719 = vtanh.pop %v1717
        %v1720 = vmul.f32 %v1718, %v683
        %v1721 = vmul.f32 %v1719, %v683
        %v1722 = vsel %vm568, %v1720, 0.0
        %1723 = vadd.xlane.f32.xlu0 %v1722
        %v1724 = vpop.xlane.xlu0 %1723
        %v1725 = vsel %vm568, %v1721, 0.0
        %1726 = vadd.xlane.f32.xlu0 %v1725
        %v1727 = vpop.xlane.xlu0 %1726
        %v1730 = vlaneseq
        %v1731 = vshrl.u32 %v1730, 7
        %v1732 = vsub.s32 %v560, %v1731
        %v1733 = vrot.slane %v1724, %v1732
        %v1734 = vlaneseq
        %v1735 = vshrl.u32 %v1734, 7
        %v1736 = vsub.s32 %v560, %v1735
        %v1737 = vrot.slane %v1727, %v1736
        %v1738 = vsel %vm703, %v1737, %v1733
        %v1740 = vsel %vm565, %v1738, -1e+30
        %v1741 = vsel %vm707, %v1740, -inf
        %1742 = vmax.xlane.f32.xlu0 %v1741
        %v1743 = vpop.xlane.xlu0 %1742
        %v1744 = vsub.f32 %v1740, %v1743
        %v1745 = vmul.f32 %v1744, 1.442695
        %v1746 = vpow.pop %v1745
        %v1747 = vsel %vm707, %v1746, 0.0
        %1748 = vadd.xlane.f32.xlu0 %v1747
        %v1749 = vpop.xlane.xlu0 %1748
        %v1750 = vrcp.pop %v1749
        %v1751 = vmul.f32 %v1746, %v1750
        %v1752 = vlaneseq
        %v1753 = vshrl.u32 %v1752, 7
        %v1754 = vsub.s32 0, %v1753
        %v1755 = vrot.slane %v1751, %v1754
        %1757 = vbcast.lane.b32.xlu0 %v1755, 256
        %v1758 = vpop.permute.xlu0 %1757
        %v1759 = vlaneseq
        %v1760 = vshrl.u32 %v1759, 7
        %v1761 = vsub.s32 1, %v1760
        %v1762 = vrot.slane %v1751, %v1761
        %1764 = vbcast.lane.b32.xlu0 %v1762, 256
        %v1765 = vpop.permute.xlu0 %1764
        %v1766 = vmul.f32 %v1758, %v526
        %v1767 = vmul.f32 %v1765, %v527
        %v1768 = vsel %vm735, %v1766, 0.0
        %v1769 = vrot.slane %v1768, 4
        %v1770 = vadd.f32 %v1768, %v1769
        %v1771 = vrot.slane %v1770, 2
        %v1772 = vadd.f32 %v1770, %v1771
        %v1773 = vrot.slane %v1772, 1
        %v1774 = vadd.f32 %v1772, %v1773
        %v1775 = vsel %vm735, %v1767, 0.0
        %v1776 = vrot.slane %v1775, 4
        %v1777 = vadd.f32 %v1775, %v1776
        %v1778 = vrot.slane %v1777, 2
        %v1779 = vadd.f32 %v1777, %v1778
        %v1780 = vrot.slane %v1779, 1
        %v1781 = vadd.f32 %v1779, %v1780
        %s1782 = scalar_lea.vmem %s503, 4
        %v1783 = vld [vmem:[%s1782] sm:$0x3]
        %v1786 = vsel %vm703, %v1781, %v1774
        %v1787 = vsel %vm735, %v1786, 0
        %1789 = vmatprep.subr.mxu0 0.0
        %1790 = vmatpush1.msra.mxu0 0.0
        %1791 = vmatprep.subr.mxu0 0.0
        %1792 = vmatpush1.msra.mxu0 0.0
        %1793 = vmatprep.subr.mxu0 0.0
        %1794 = vmatpush1.msra.mxu0 0.0
        %1795 = vmatprep.subr.mxu0 0.0
        %1796 = vmatpush1.msra.mxu0 0.0
        %1797 = vmatprep.subr.mxu0 0.0
        %1798 = vmatpush1.msra.mxu0 0.0
        %1799 = vmatprep.subr.mxu0 0.0
        %1800 = vmatpush1.msra.mxu0 0.0
        %1801 = vmatprep.subr.mxu0 0.0
        %1802 = vmatpush1.msra.mxu0 0.0
        %1803 = vmatprep.subr.mxu0 0.0
        %1804 = vmatpush1.msra.mxu0 0.0
        %1805 = vmatprep.subr.mxu0 0.0
        %1806 = vmatpush1.msra.mxu0 %v542
        %1807 = vmatprep.subr.mxu0 0.0
        %1808 = vmatpush1.msra.mxu0 %v541
        %1809 = vmatprep.subr.mxu0 0.0
        %1810 = vmatpush1.msra.mxu0 %v540
        %1811 = vmatprep.subr.mxu0 0.0
        %1812 = vmatpush1.msra.mxu0 %v539
        %1813 = vmatprep.subr.mxu0 0.0
        %1814 = vmatpush1.msra.mxu0 %v538
        %1815 = vmatprep.subr.mxu0 0.0
        %1816 = vmatpush1.msra.mxu0 %v537
        %1817 = vmatprep.subr.mxu0 0.0
        %1818 = vmatpush1.msra.mxu0 %v536
        %1819 = vmatprep.subr.mxu0 0.0
        %1820 = vmatpush1.msra.mxu0 %v535
        %1821 = vmatprep.subr.mxu0 0.0
        %1822 = vmatpush2.msra.mxu0 0.0
        %1823 = vmatprep.subr.mxu0 0.0
        %1824 = vmatpush2.msra.mxu0 0.0
        %1825 = vmatprep.subr.mxu0 0.0
        %1826 = vmatpush2.msra.mxu0 0.0
        %1827 = vmatprep.subr.mxu0 0.0
        %1828 = vmatpush2.msra.mxu0 0.0
        %1829 = vmatprep.subr.mxu0 0.0
        %1830 = vmatpush2.msra.mxu0 0.0
        %1831 = vmatprep.subr.mxu0 0.0
        %1832 = vmatpush2.msra.mxu0 0.0
        %1833 = vmatprep.subr.mxu0 0.0
        %1834 = vmatpush2.msra.mxu0 0.0
        %1835 = vmatprep.subr.mxu0 0.0
        %1836 = vmatpush2.msra.mxu0 0.0
        %1837 = vmatprep.subr.mxu0 0.0
        %1838 = vmatpush2.msra.mxu0 0.0
        %1839 = vmatprep.subr.mxu0 0.0
        %1840 = vmatpush2.msra.mxu0 0.0
        %1841 = vmatprep.subr.mxu0 0.0
        %1842 = vmatpush2.msra.mxu0 0.0
        %1843 = vmatprep.subr.mxu0 0.0
        %1844 = vmatpush2.msra.mxu0 0.0
        %1845 = vmatprep.subr.mxu0 0.0
        %1846 = vmatpush2.msra.mxu0 0.0
        %1847 = vmatprep.subr.mxu0 0.0
        %1848 = vmatpush2.msra.mxu0 0.0
        %1849 = vmatprep.subr.mxu0 0.0
        %1850 = vmatpush2.msra.mxu0 0.0
        %1851 = vmatprep.subr.mxu0 0.0
        %1852 = vmatpush2.msra.mxu0 0.0
        %1853 = vmatprep.mubr.f32.mxu0 0.0
        %1854 = vmatmul.mubr.f32.gmra.mxu0 %v1787
        %v1855 = vpop.f32.mrf.mxu0
        %v1856 = vadd.f32 0.0, %v1855
        %v1857 = vpop.f32.mrf.mxu0
        %1858 = vdwg.mxu0
        %v1859 = vadd.f32 %v1783, %v1856
        %1860 = vmatprep.subr.mxu0 0.0
        %1861 = vmatpush1.msra.mxu0 0.0
        %1862 = vmatprep.subr.mxu0 0.0
        %1863 = vmatpush1.msra.mxu0 0.0
        %1864 = vmatprep.subr.mxu0 0.0
        %1865 = vmatpush1.msra.mxu0 0.0
        %1866 = vmatprep.subr.mxu0 0.0
        %1867 = vmatpush1.msra.mxu0 0.0
        %1868 = vmatprep.subr.mxu0 0.0
        %1869 = vmatpush1.msra.mxu0 0.0
        %1870 = vmatprep.subr.mxu0 0.0
        %1871 = vmatpush1.msra.mxu0 0.0
        %1872 = vmatprep.subr.mxu0 0.0
        %1873 = vmatpush1.msra.mxu0 0.0
        %1874 = vmatprep.subr.mxu0 0.0
        %1875 = vmatpush1.msra.mxu0 0.0
        %1876 = vmatprep.subr.mxu0 0.0
        %1877 = vmatpush1.msra.mxu0 0.0
        %1878 = vmatprep.subr.mxu0 0.0
        %1879 = vmatpush1.msra.mxu0 0.0
        %1880 = vmatprep.subr.mxu0 0.0
        %1881 = vmatpush1.msra.mxu0 0.0
        %1882 = vmatprep.subr.mxu0 0.0
        %1883 = vmatpush1.msra.mxu0 0.0
        %1884 = vmatprep.subr.mxu0 0.0
        %1885 = vmatpush1.msra.mxu0 %v546
        %1886 = vmatprep.subr.mxu0 0.0
        %1887 = vmatpush1.msra.mxu0 %v545
        %1888 = vmatprep.subr.mxu0 0.0
        %1889 = vmatpush1.msra.mxu0 %v544
        %1890 = vmatprep.subr.mxu0 0.0
        %1891 = vmatpush1.msra.mxu0 %v543
        %1892 = vmatprep.subr.mxu0 0.0
        %1893 = vmatpush2.msra.mxu0 0.0
        %1894 = vmatprep.subr.mxu0 0.0
        %1895 = vmatpush2.msra.mxu0 0.0
        %1896 = vmatprep.subr.mxu0 0.0
        %1897 = vmatpush2.msra.mxu0 0.0
        %1898 = vmatprep.subr.mxu0 0.0
        %1899 = vmatpush2.msra.mxu0 0.0
        %1900 = vmatprep.subr.mxu0 0.0
        %1901 = vmatpush2.msra.mxu0 0.0
        %1902 = vmatprep.subr.mxu0 0.0
        %1903 = vmatpush2.msra.mxu0 0.0
        %1904 = vmatprep.subr.mxu0 0.0
        %1905 = vmatpush2.msra.mxu0 0.0
        %1906 = vmatprep.subr.mxu0 0.0
        %1907 = vmatpush2.msra.mxu0 0.0
        %1908 = vmatprep.subr.mxu0 0.0
        %1909 = vmatpush2.msra.mxu0 0.0
        %1910 = vmatprep.subr.mxu0 0.0
        %1911 = vmatpush2.msra.mxu0 0.0
        %1912 = vmatprep.subr.mxu0 0.0
        %1913 = vmatpush2.msra.mxu0 0.0
        %1914 = vmatprep.subr.mxu0 0.0
        %1915 = vmatpush2.msra.mxu0 0.0
        %1916 = vmatprep.subr.mxu0 0.0
        %1917 = vmatpush2.msra.mxu0 0.0
        %1918 = vmatprep.subr.mxu0 0.0
        %1919 = vmatpush2.msra.mxu0 0.0
        %1920 = vmatprep.subr.mxu0 0.0
        %1921 = vmatpush2.msra.mxu0 0.0
        %1922 = vmatprep.subr.mxu0 0.0
        %1923 = vmatpush2.msra.mxu0 0.0
        %1924 = vmatprep.mubr.f32.mxu0 0.0
        %1925 = vmatmul.mubr.f32.gmra.mxu0 %v1611
        %v1926 = vpop.f32.mrf.mxu0
        %v1927 = vadd.f32 0.0, %v1926
        %v1928 = vpop.f32.mrf.mxu0
        %1929 = vdwg.mxu0
        %v1930 = vadd.f32 %v1859, %v1927
        %v1931 = vxor.u32 %v1930, 2147483648
        %v1932 = vmul.f32 %v1931, 1.442695
        %v1933 = vpow.pop %v1932
        %v1934 = vadd.f32 %v1933, 1.0
        %v1935 = vrcp.pop %v1934
        %v1936 = vmul.f32 1.0, %v1935
        %v1937 = vtanh.pop %v1930
        %v1938 = vmul.f32 %v1936, %v1607
        %1940 = vrot.lane.b32.xlu0 %v1937, 64
        %v1941 = vpop.permute.xlu0 %1940
        %v1943 = vmul.f32 %v1936, %v1941
        %1945 = vrot.lane.b32.xlu0 %v1943, 32
        %v1946 = vpop.permute.xlu0 %1945
        %v1948 = vadd.f32 %v1938, %v1946
        %v1949 = vtanh.pop %v1948
        %1951 = vrot.lane.b32.xlu0 %v1949, 64
        %v1952 = vpop.permute.xlu0 %1951
        %v1954 = vmul.f32 %v1936, %v1952
        %s1955 = scalar_lea.vmem %s509, 4
        %v1956 = vld [vmem:[%s1955] sm:$0x3]
        %1958 = vrot.lane.b32.xlu0 %v1954, 32
        %v1959 = vpop.permute.xlu0 %1958
        %v1960 = vsel %vm568, %v1959, 0
        %1962 = vmatprep.subr.mxu0 0.0
        %1963 = vmatpush1.msra.mxu0 0.0
        %1964 = vmatprep.subr.mxu0 0.0
        %1965 = vmatpush1.msra.mxu0 0.0
        %1966 = vmatprep.subr.mxu0 0.0
        %1967 = vmatpush1.msra.mxu0 0.0
        %1968 = vmatprep.subr.mxu0 0.0
        %1969 = vmatpush1.msra.mxu0 0.0
        %1970 = vmatprep.subr.mxu0 0.0
        %1971 = vmatpush1.msra.mxu0 0.0
        %1972 = vmatprep.subr.mxu0 0.0
        %1973 = vmatpush1.msra.mxu0 0.0
        %1974 = vmatprep.subr.mxu0 0.0
        %1975 = vmatpush1.msra.mxu0 0.0
        %1976 = vmatprep.subr.mxu0 0.0
        %1977 = vmatpush1.msra.mxu0 0.0
        %1978 = vmatprep.subr.mxu0 0.0
        %1979 = vmatpush1.msra.mxu0 0.0
        %1980 = vmatprep.subr.mxu0 0.0
        %1981 = vmatpush1.msra.mxu0 0.0
        %1982 = vmatprep.subr.mxu0 0.0
        %1983 = vmatpush1.msra.mxu0 0.0
        %1984 = vmatprep.subr.mxu0 0.0
        %1985 = vmatpush1.msra.mxu0 0.0
        %1986 = vmatprep.subr.mxu0 0.0
        %1987 = vmatpush1.msra.mxu0 %v550
        %1988 = vmatprep.subr.mxu0 0.0
        %1989 = vmatpush1.msra.mxu0 %v549
        %1990 = vmatprep.subr.mxu0 0.0
        %1991 = vmatpush1.msra.mxu0 %v548
        %1992 = vmatprep.subr.mxu0 0.0
        %1993 = vmatpush1.msra.mxu0 %v547
        %1994 = vmatprep.subr.mxu0 0.0
        %1995 = vmatpush2.msra.mxu0 0.0
        %1996 = vmatprep.subr.mxu0 0.0
        %1997 = vmatpush2.msra.mxu0 0.0
        %1998 = vmatprep.subr.mxu0 0.0
        %1999 = vmatpush2.msra.mxu0 0.0
        %2000 = vmatprep.subr.mxu0 0.0
        %2001 = vmatpush2.msra.mxu0 0.0
        %2002 = vmatprep.subr.mxu0 0.0
        %2003 = vmatpush2.msra.mxu0 0.0
        %2004 = vmatprep.subr.mxu0 0.0
        %2005 = vmatpush2.msra.mxu0 0.0
        %2006 = vmatprep.subr.mxu0 0.0
        %2007 = vmatpush2.msra.mxu0 0.0
        %2008 = vmatprep.subr.mxu0 0.0
        %2009 = vmatpush2.msra.mxu0 0.0
        %2010 = vmatprep.subr.mxu0 0.0
        %2011 = vmatpush2.msra.mxu0 0.0
        %2012 = vmatprep.subr.mxu0 0.0
        %2013 = vmatpush2.msra.mxu0 0.0
        %2014 = vmatprep.subr.mxu0 0.0
        %2015 = vmatpush2.msra.mxu0 0.0
        %2016 = vmatprep.subr.mxu0 0.0
        %2017 = vmatpush2.msra.mxu0 0.0
        %2018 = vmatprep.subr.mxu0 0.0
        %2019 = vmatpush2.msra.mxu0 0.0
        %2020 = vmatprep.subr.mxu0 0.0
        %2021 = vmatpush2.msra.mxu0 0.0
        %2022 = vmatprep.subr.mxu0 0.0
        %2023 = vmatpush2.msra.mxu0 0.0
        %2024 = vmatprep.subr.mxu0 0.0
        %2025 = vmatpush2.msra.mxu0 0.0
        %2026 = vmatprep.mubr.f32.mxu0 0.0
        %2027 = vmatmul.mubr.f32.gmra.mxu0 %v1960
        %v2028 = vpop.f32.mrf.mxu0
        %v2029 = vadd.f32 0.0, %v2028
        %v2030 = vpop.f32.mrf.mxu0
        %2031 = vdwg.mxu0
        %v2032 = vadd.f32 %v1956, %v2029
        %2033 = vmatprep.subr.mxu0 0.0
        %2034 = vmatpush1.msra.mxu0 0.0
        %2035 = vmatprep.subr.mxu0 0.0
        %2036 = vmatpush1.msra.mxu0 0.0
        %2037 = vmatprep.subr.mxu0 0.0
        %2038 = vmatpush1.msra.mxu0 0.0
        %2039 = vmatprep.subr.mxu0 0.0
        %2040 = vmatpush1.msra.mxu0 0.0
        %2041 = vmatprep.subr.mxu0 0.0
        %2042 = vmatpush1.msra.mxu0 0.0
        %2043 = vmatprep.subr.mxu0 0.0
        %2044 = vmatpush1.msra.mxu0 0.0
        %2045 = vmatprep.subr.mxu0 0.0
        %2046 = vmatpush1.msra.mxu0 0.0
        %2047 = vmatprep.subr.mxu0 0.0
        %2048 = vmatpush1.msra.mxu0 0.0
        %2049 = vmatprep.subr.mxu0 0.0
        %2050 = vmatpush1.msra.mxu0 %v558
        %2051 = vmatprep.subr.mxu0 0.0
        %2052 = vmatpush1.msra.mxu0 %v557
        %2053 = vmatprep.subr.mxu0 0.0
        %2054 = vmatpush1.msra.mxu0 %v556
        %2055 = vmatprep.subr.mxu0 0.0
        %2056 = vmatpush1.msra.mxu0 %v555
        %2057 = vmatprep.subr.mxu0 0.0
        %2058 = vmatpush1.msra.mxu0 %v554
        %2059 = vmatprep.subr.mxu0 0.0
        %2060 = vmatpush1.msra.mxu0 %v553
        %2061 = vmatprep.subr.mxu0 0.0
        %2062 = vmatpush1.msra.mxu0 %v552
        %2063 = vmatprep.subr.mxu0 0.0
        %2064 = vmatpush1.msra.mxu0 %v551
        %2065 = vmatprep.subr.mxu0 0.0
        %2066 = vmatpush2.msra.mxu0 0.0
        %2067 = vmatprep.subr.mxu0 0.0
        %2068 = vmatpush2.msra.mxu0 0.0
        %2069 = vmatprep.subr.mxu0 0.0
        %2070 = vmatpush2.msra.mxu0 0.0
        %2071 = vmatprep.subr.mxu0 0.0
        %2072 = vmatpush2.msra.mxu0 0.0
        %2073 = vmatprep.subr.mxu0 0.0
        %2074 = vmatpush2.msra.mxu0 0.0
        %2075 = vmatprep.subr.mxu0 0.0
        %2076 = vmatpush2.msra.mxu0 0.0
        %2077 = vmatprep.subr.mxu0 0.0
        %2078 = vmatpush2.msra.mxu0 0.0
        %2079 = vmatprep.subr.mxu0 0.0
        %2080 = vmatpush2.msra.mxu0 0.0
        %2081 = vmatprep.subr.mxu0 0.0
        %2082 = vmatpush2.msra.mxu0 0.0
        %2083 = vmatprep.subr.mxu0 0.0
        %2084 = vmatpush2.msra.mxu0 0.0
        %2085 = vmatprep.subr.mxu0 0.0
        %2086 = vmatpush2.msra.mxu0 0.0
        %2087 = vmatprep.subr.mxu0 0.0
        %2088 = vmatpush2.msra.mxu0 0.0
        %2089 = vmatprep.subr.mxu0 0.0
        %2090 = vmatpush2.msra.mxu0 0.0
        %2091 = vmatprep.subr.mxu0 0.0
        %2092 = vmatpush2.msra.mxu0 0.0
        %2093 = vmatprep.subr.mxu0 0.0
        %2094 = vmatpush2.msra.mxu0 0.0
        %2095 = vmatprep.subr.mxu0 0.0
        %2096 = vmatpush2.msra.mxu0 0.0
        %2097 = vmatprep.mubr.f32.mxu0 0.0
        %2098 = vmatmul.mubr.f32.gmra.mxu0 %v1787
        %v2099 = vpop.f32.mrf.mxu0
        %v2100 = vadd.f32 0.0, %v2099
        %v2101 = vpop.f32.mrf.mxu0
        %2102 = vdwg.mxu0
        %v2103 = vadd.f32 %v2032, %v2100
        %s2104 = scalar_lea.vmem %s515, 4
        %2105 = vst.msk [vmem:[%s2104] sm:$0x3] %vm1074, %v2103
        %s2106 = sadd.s32 %s1076, 2
        %p2107 = scmp.lt.s32.totalorder %s2106, 6
        %s2108 = scalar_select %p2107, 1, 0
        %s2109 = scvt.s32.f32 %s2108
        %v2110 = vstv %s2109
        %v2111 = vmul.f32 %v2110, %v1954
        %s2112 = ssub.f32 1.0, %s2109
        %v2113 = vstv %s2112
        %v2114 = vmul.f32 %v2113, %v1604
        %v2115 = vadd.f32 %v2111, %v2114
        %v2116 = vmul.f32 %v2110, %v1948
        %v2117 = vmul.f32 %v2113, %v1607
        %v2118 = vadd.f32 %v2116, %v2117
        %2120 = vrot.lane.b32.xlu0 %v2115, 32
        %v2121 = vpop.permute.xlu0 %2120
        %v2122 = vsel %vm568, %v2121, 0
        %2124 = vmatprep.subr.mxu0 0.0
        %2125 = vmatpush1.msra.mxu0 0.0
        %2126 = vmatprep.subr.mxu0 0.0
        %2127 = vmatpush1.msra.mxu0 0.0
        %2128 = vmatprep.subr.mxu0 0.0
        %2129 = vmatpush1.msra.mxu0 0.0
        %2130 = vmatprep.subr.mxu0 0.0
        %2131 = vmatpush1.msra.mxu0 0.0
        %2132 = vmatprep.subr.mxu0 0.0
        %2133 = vmatpush1.msra.mxu0 0.0
        %2134 = vmatprep.subr.mxu0 0.0
        %2135 = vmatpush1.msra.mxu0 0.0
        %2136 = vmatprep.subr.mxu0 0.0
        %2137 = vmatpush1.msra.mxu0 0.0
        %2138 = vmatprep.subr.mxu0 0.0
        %2139 = vmatpush1.msra.mxu0 0.0
        %2140 = vmatprep.subr.mxu0 0.0
        %2141 = vmatpush1.msra.mxu0 0.0
        %2142 = vmatprep.subr.mxu0 0.0
        %2143 = vmatpush1.msra.mxu0 0.0
        %2144 = vmatprep.subr.mxu0 0.0
        %2145 = vmatpush1.msra.mxu0 0.0
        %2146 = vmatprep.subr.mxu0 0.0
        %2147 = vmatpush1.msra.mxu0 0.0
        %2148 = vmatprep.subr.mxu0 0.0
        %2149 = vmatpush1.msra.mxu0 %v534
        %2150 = vmatprep.subr.mxu0 0.0
        %2151 = vmatpush1.msra.mxu0 %v533
        %2152 = vmatprep.subr.mxu0 0.0
        %2153 = vmatpush1.msra.mxu0 %v532
        %2154 = vmatprep.subr.mxu0 0.0
        %2155 = vmatpush1.msra.mxu0 %v531
        %2156 = vmatprep.subr.mxu0 0.0
        %2157 = vmatpush2.msra.mxu0 0.0
        %2158 = vmatprep.subr.mxu0 0.0
        %2159 = vmatpush2.msra.mxu0 0.0
        %2160 = vmatprep.subr.mxu0 0.0
        %2161 = vmatpush2.msra.mxu0 0.0
        %2162 = vmatprep.subr.mxu0 0.0
        %2163 = vmatpush2.msra.mxu0 0.0
        %2164 = vmatprep.subr.mxu0 0.0
        %2165 = vmatpush2.msra.mxu0 0.0
        %2166 = vmatprep.subr.mxu0 0.0
        %2167 = vmatpush2.msra.mxu0 0.0
        %2168 = vmatprep.subr.mxu0 0.0
        %2169 = vmatpush2.msra.mxu0 0.0
        %2170 = vmatprep.subr.mxu0 0.0
        %2171 = vmatpush2.msra.mxu0 0.0
        %2172 = vmatprep.subr.mxu0 0.0
        %2173 = vmatpush2.msra.mxu0 0.0
        %2174 = vmatprep.subr.mxu0 0.0
        %2175 = vmatpush2.msra.mxu0 0.0
        %2176 = vmatprep.subr.mxu0 0.0
        %2177 = vmatpush2.msra.mxu0 0.0
        %2178 = vmatprep.subr.mxu0 0.0
        %2179 = vmatpush2.msra.mxu0 0.0
        %2180 = vmatprep.subr.mxu0 0.0
        %2181 = vmatpush2.msra.mxu0 0.0
        %2182 = vmatprep.subr.mxu0 0.0
        %2183 = vmatpush2.msra.mxu0 0.0
        %2184 = vmatprep.subr.mxu0 0.0
        %2185 = vmatpush2.msra.mxu0 0.0
        %2186 = vmatprep.subr.mxu0 0.0
        %2187 = vmatpush2.msra.mxu0 0.0
        %2188 = vmatprep.mubr.f32.mxu0 0.0
        %2189 = vmatmul.mubr.f32.gmra.mxu0 %v2122
        %v2190 = vpop.f32.mrf.mxu0
        %v2191 = vadd.f32 0.0, %v2190
        %v2192 = vpop.f32.mrf.mxu0
        %2193 = vdwg.mxu0
        %v2196 = vunpack.c.l.s4 1966171168
        %v2197 = vunpack.c.0.s8 %v2196
        %v2198 = vlaneseq
        %v2199 = vshrl.u32 %v2198, 7
        %v2200 = vsub.s32 %v2197, %v2199
        %v2201 = vrot.slane %v2191, %v2200
        %v2202 = vcombine.high %v2201, %v2201
        %v2204 = vunpack.c.l.s4 1966171168
        %v2205 = vunpack.c.0.s8 %v2204
        %v2206 = vlaneseq
        %v2207 = vshrl.u32 %v2206, 7
        %v2208 = vsub.s32 %v2205, %v2207
        %v2209 = vrot.slane %v2201, %v2208
        %v2211 = vunpack.c.l.s4 1966171168
        %v2212 = vunpack.c.0.s8 %v2211
        %v2213 = vlaneseq
        %v2214 = vshrl.u32 %v2213, 7
        %v2215 = vsub.s32 %v2212, %v2214
        %v2216 = vrot.slane %v2202, %v2215
        %v2217 = vlaneseq
        %v2218 = vshrl.u32 %v2217, 7
        %v2219 = vsub.s32 0, %v2218
        %v2220 = vrot.slane %v2209, %v2219
        %v2221 = vlaneseq
        %v2222 = vshrl.u32 %v2221, 7
        %v2223 = vsub.s32 0, %v2222
        %v2224 = vrot.slane %v2216, %v2223
        %v2227 = vadd.f32 %v2220, %v528
        %v2228 = vadd.f32 %v2224, %v529
        %v2229 = vtanh.pop %v2227
        %v2230 = vtanh.pop %v2228
        %v2231 = vmul.f32 %v2229, %v683
        %v2232 = vmul.f32 %v2230, %v683
        %v2233 = vsel %vm568, %v2231, 0.0
        %2234 = vadd.xlane.f32.xlu0 %v2233
        %v2235 = vpop.xlane.xlu0 %2234
        %v2236 = vsel %vm568, %v2232, 0.0
        %2237 = vadd.xlane.f32.xlu0 %v2236
        %v2238 = vpop.xlane.xlu0 %2237
        %v2241 = vlaneseq
        %v2242 = vshrl.u32 %v2241, 7
        %v2243 = vsub.s32 %v560, %v2242
        %v2244 = vrot.slane %v2235, %v2243
        %v2245 = vlaneseq
        %v2246 = vshrl.u32 %v2245, 7
        %v2247 = vsub.s32 %v560, %v2246
        %v2248 = vrot.slane %v2238, %v2247
        %v2249 = vsel %vm703, %v2248, %v2244
        %v2251 = vsel %vm565, %v2249, -1e+30
        %v2252 = vsel %vm707, %v2251, -inf
        %2253 = vmax.xlane.f32.xlu0 %v2252
        %v2254 = vpop.xlane.xlu0 %2253
        %v2255 = vsub.f32 %v2251, %v2254
        %v2256 = vmul.f32 %v2255, 1.442695
        %v2257 = vpow.pop %v2256
        %v2258 = vsel %vm707, %v2257, 0.0
        %2259 = vadd.xlane.f32.xlu0 %v2258
        %v2260 = vpop.xlane.xlu0 %2259
        %v2261 = vrcp.pop %v2260
        %v2262 = vmul.f32 %v2257, %v2261
        %v2263 = vlaneseq
        %v2264 = vshrl.u32 %v2263, 7
        %v2265 = vsub.s32 0, %v2264
        %v2266 = vrot.slane %v2262, %v2265
        %2268 = vbcast.lane.b32.xlu0 %v2266, 256
        %v2269 = vpop.permute.xlu0 %2268
        %v2270 = vlaneseq
        %v2271 = vshrl.u32 %v2270, 7
        %v2272 = vsub.s32 1, %v2271
        %v2273 = vrot.slane %v2262, %v2272
        %2275 = vbcast.lane.b32.xlu0 %v2273, 256
        %v2276 = vpop.permute.xlu0 %2275
        %v2277 = vmul.f32 %v2269, %v526
        %v2278 = vmul.f32 %v2276, %v527
        %v2279 = vsel %vm735, %v2277, 0.0
        %v2280 = vrot.slane %v2279, 4
        %v2281 = vadd.f32 %v2279, %v2280
        %v2282 = vrot.slane %v2281, 2
        %v2283 = vadd.f32 %v2281, %v2282
        %v2284 = vrot.slane %v2283, 1
        %v2285 = vadd.f32 %v2283, %v2284
        %v2286 = vsel %vm735, %v2278, 0.0
        %v2287 = vrot.slane %v2286, 4
        %v2288 = vadd.f32 %v2286, %v2287
        %v2289 = vrot.slane %v2288, 2
        %v2290 = vadd.f32 %v2288, %v2289
        %v2291 = vrot.slane %v2290, 1
        %v2292 = vadd.f32 %v2290, %v2291
        %s2293 = scalar_lea.vmem %s503, 6
        %v2294 = vld [vmem:[%s2293] sm:$0x3]
        %v2297 = vsel %vm703, %v2292, %v2285
        %v2298 = vsel %vm735, %v2297, 0
        %2300 = vmatprep.subr.mxu0 0.0
        %2301 = vmatpush1.msra.mxu0 0.0
        %2302 = vmatprep.subr.mxu0 0.0
        %2303 = vmatpush1.msra.mxu0 0.0
        %2304 = vmatprep.subr.mxu0 0.0
        %2305 = vmatpush1.msra.mxu0 0.0
        %2306 = vmatprep.subr.mxu0 0.0
        %2307 = vmatpush1.msra.mxu0 0.0
        %2308 = vmatprep.subr.mxu0 0.0
        %2309 = vmatpush1.msra.mxu0 0.0
        %2310 = vmatprep.subr.mxu0 0.0
        %2311 = vmatpush1.msra.mxu0 0.0
        %2312 = vmatprep.subr.mxu0 0.0
        %2313 = vmatpush1.msra.mxu0 0.0
        %2314 = vmatprep.subr.mxu0 0.0
        %2315 = vmatpush1.msra.mxu0 0.0
        %2316 = vmatprep.subr.mxu0 0.0
        %2317 = vmatpush1.msra.mxu0 %v542
        %2318 = vmatprep.subr.mxu0 0.0
        %2319 = vmatpush1.msra.mxu0 %v541
        %2320 = vmatprep.subr.mxu0 0.0
        %2321 = vmatpush1.msra.mxu0 %v540
        %2322 = vmatprep.subr.mxu0 0.0
        %2323 = vmatpush1.msra.mxu0 %v539
        %2324 = vmatprep.subr.mxu0 0.0
        %2325 = vmatpush1.msra.mxu0 %v538
        %2326 = vmatprep.subr.mxu0 0.0
        %2327 = vmatpush1.msra.mxu0 %v537
        %2328 = vmatprep.subr.mxu0 0.0
        %2329 = vmatpush1.msra.mxu0 %v536
        %2330 = vmatprep.subr.mxu0 0.0
        %2331 = vmatpush1.msra.mxu0 %v535
        %2332 = vmatprep.subr.mxu0 0.0
        %2333 = vmatpush2.msra.mxu0 0.0
        %2334 = vmatprep.subr.mxu0 0.0
        %2335 = vmatpush2.msra.mxu0 0.0
        %2336 = vmatprep.subr.mxu0 0.0
        %2337 = vmatpush2.msra.mxu0 0.0
        %2338 = vmatprep.subr.mxu0 0.0
        %2339 = vmatpush2.msra.mxu0 0.0
        %2340 = vmatprep.subr.mxu0 0.0
        %2341 = vmatpush2.msra.mxu0 0.0
        %2342 = vmatprep.subr.mxu0 0.0
        %2343 = vmatpush2.msra.mxu0 0.0
        %2344 = vmatprep.subr.mxu0 0.0
        %2345 = vmatpush2.msra.mxu0 0.0
        %2346 = vmatprep.subr.mxu0 0.0
        %2347 = vmatpush2.msra.mxu0 0.0
        %2348 = vmatprep.subr.mxu0 0.0
        %2349 = vmatpush2.msra.mxu0 0.0
        %2350 = vmatprep.subr.mxu0 0.0
        %2351 = vmatpush2.msra.mxu0 0.0
        %2352 = vmatprep.subr.mxu0 0.0
        %2353 = vmatpush2.msra.mxu0 0.0
        %2354 = vmatprep.subr.mxu0 0.0
        %2355 = vmatpush2.msra.mxu0 0.0
        %2356 = vmatprep.subr.mxu0 0.0
        %2357 = vmatpush2.msra.mxu0 0.0
        %2358 = vmatprep.subr.mxu0 0.0
        %2359 = vmatpush2.msra.mxu0 0.0
        %2360 = vmatprep.subr.mxu0 0.0
        %2361 = vmatpush2.msra.mxu0 0.0
        %2362 = vmatprep.subr.mxu0 0.0
        %2363 = vmatpush2.msra.mxu0 0.0
        %2364 = vmatprep.mubr.f32.mxu0 0.0
        %2365 = vmatmul.mubr.f32.gmra.mxu0 %v2298
        %v2366 = vpop.f32.mrf.mxu0
        %v2367 = vadd.f32 0.0, %v2366
        %v2368 = vpop.f32.mrf.mxu0
        %2369 = vdwg.mxu0
        %v2370 = vadd.f32 %v2294, %v2367
        %2371 = vmatprep.subr.mxu0 0.0
        %2372 = vmatpush1.msra.mxu0 0.0
        %2373 = vmatprep.subr.mxu0 0.0
        %2374 = vmatpush1.msra.mxu0 0.0
        %2375 = vmatprep.subr.mxu0 0.0
        %2376 = vmatpush1.msra.mxu0 0.0
        %2377 = vmatprep.subr.mxu0 0.0
        %2378 = vmatpush1.msra.mxu0 0.0
        %2379 = vmatprep.subr.mxu0 0.0
        %2380 = vmatpush1.msra.mxu0 0.0
        %2381 = vmatprep.subr.mxu0 0.0
        %2382 = vmatpush1.msra.mxu0 0.0
        %2383 = vmatprep.subr.mxu0 0.0
        %2384 = vmatpush1.msra.mxu0 0.0
        %2385 = vmatprep.subr.mxu0 0.0
        %2386 = vmatpush1.msra.mxu0 0.0
        %2387 = vmatprep.subr.mxu0 0.0
        %2388 = vmatpush1.msra.mxu0 0.0
        %2389 = vmatprep.subr.mxu0 0.0
        %2390 = vmatpush1.msra.mxu0 0.0
        %2391 = vmatprep.subr.mxu0 0.0
        %2392 = vmatpush1.msra.mxu0 0.0
        %2393 = vmatprep.subr.mxu0 0.0
        %2394 = vmatpush1.msra.mxu0 0.0
        %2395 = vmatprep.subr.mxu0 0.0
        %2396 = vmatpush1.msra.mxu0 %v546
        %2397 = vmatprep.subr.mxu0 0.0
        %2398 = vmatpush1.msra.mxu0 %v545
        %2399 = vmatprep.subr.mxu0 0.0
        %2400 = vmatpush1.msra.mxu0 %v544
        %2401 = vmatprep.subr.mxu0 0.0
        %2402 = vmatpush1.msra.mxu0 %v543
        %2403 = vmatprep.subr.mxu0 0.0
        %2404 = vmatpush2.msra.mxu0 0.0
        %2405 = vmatprep.subr.mxu0 0.0
        %2406 = vmatpush2.msra.mxu0 0.0
        %2407 = vmatprep.subr.mxu0 0.0
        %2408 = vmatpush2.msra.mxu0 0.0
        %2409 = vmatprep.subr.mxu0 0.0
        %2410 = vmatpush2.msra.mxu0 0.0
        %2411 = vmatprep.subr.mxu0 0.0
        %2412 = vmatpush2.msra.mxu0 0.0
        %2413 = vmatprep.subr.mxu0 0.0
        %2414 = vmatpush2.msra.mxu0 0.0
        %2415 = vmatprep.subr.mxu0 0.0
        %2416 = vmatpush2.msra.mxu0 0.0
        %2417 = vmatprep.subr.mxu0 0.0
        %2418 = vmatpush2.msra.mxu0 0.0
        %2419 = vmatprep.subr.mxu0 0.0
        %2420 = vmatpush2.msra.mxu0 0.0
        %2421 = vmatprep.subr.mxu0 0.0
        %2422 = vmatpush2.msra.mxu0 0.0
        %2423 = vmatprep.subr.mxu0 0.0
        %2424 = vmatpush2.msra.mxu0 0.0
        %2425 = vmatprep.subr.mxu0 0.0
        %2426 = vmatpush2.msra.mxu0 0.0
        %2427 = vmatprep.subr.mxu0 0.0
        %2428 = vmatpush2.msra.mxu0 0.0
        %2429 = vmatprep.subr.mxu0 0.0
        %2430 = vmatpush2.msra.mxu0 0.0
        %2431 = vmatprep.subr.mxu0 0.0
        %2432 = vmatpush2.msra.mxu0 0.0
        %2433 = vmatprep.subr.mxu0 0.0
        %2434 = vmatpush2.msra.mxu0 0.0
        %2435 = vmatprep.mubr.f32.mxu0 0.0
        %2436 = vmatmul.mubr.f32.gmra.mxu0 %v2122
        %v2437 = vpop.f32.mrf.mxu0
        %v2438 = vadd.f32 0.0, %v2437
        %v2439 = vpop.f32.mrf.mxu0
        %2440 = vdwg.mxu0
        %v2441 = vadd.f32 %v2370, %v2438
        %v2442 = vxor.u32 %v2441, 2147483648
        %v2443 = vmul.f32 %v2442, 1.442695
        %v2444 = vpow.pop %v2443
        %v2445 = vadd.f32 %v2444, 1.0
        %v2446 = vrcp.pop %v2445
        %v2447 = vmul.f32 1.0, %v2446
        %v2448 = vtanh.pop %v2441
        %v2449 = vmul.f32 %v2447, %v2118
        %2451 = vrot.lane.b32.xlu0 %v2448, 64
        %v2452 = vpop.permute.xlu0 %2451
        %v2454 = vmul.f32 %v2447, %v2452
        %2456 = vrot.lane.b32.xlu0 %v2454, 32
        %v2457 = vpop.permute.xlu0 %2456
        %v2459 = vadd.f32 %v2449, %v2457
        %v2460 = vtanh.pop %v2459
        %2462 = vrot.lane.b32.xlu0 %v2460, 64
        %v2463 = vpop.permute.xlu0 %2462
        %v2465 = vmul.f32 %v2447, %v2463
        %s2466 = scalar_lea.vmem %s509, 6
        %v2467 = vld [vmem:[%s2466] sm:$0x3]
        %2469 = vrot.lane.b32.xlu0 %v2465, 32
        %v2470 = vpop.permute.xlu0 %2469
        %v2471 = vsel %vm568, %v2470, 0
        %2473 = vmatprep.subr.mxu0 0.0
        %2474 = vmatpush1.msra.mxu0 0.0
        %2475 = vmatprep.subr.mxu0 0.0
        %2476 = vmatpush1.msra.mxu0 0.0
        %2477 = vmatprep.subr.mxu0 0.0
        %2478 = vmatpush1.msra.mxu0 0.0
        %2479 = vmatprep.subr.mxu0 0.0
        %2480 = vmatpush1.msra.mxu0 0.0
        %2481 = vmatprep.subr.mxu0 0.0
        %2482 = vmatpush1.msra.mxu0 0.0
        %2483 = vmatprep.subr.mxu0 0.0
        %2484 = vmatpush1.msra.mxu0 0.0
        %2485 = vmatprep.subr.mxu0 0.0
        %2486 = vmatpush1.msra.mxu0 0.0
        %2487 = vmatprep.subr.mxu0 0.0
        %2488 = vmatpush1.msra.mxu0 0.0
        %2489 = vmatprep.subr.mxu0 0.0
        %2490 = vmatpush1.msra.mxu0 0.0
        %2491 = vmatprep.subr.mxu0 0.0
        %2492 = vmatpush1.msra.mxu0 0.0
        %2493 = vmatprep.subr.mxu0 0.0
        %2494 = vmatpush1.msra.mxu0 0.0
        %2495 = vmatprep.subr.mxu0 0.0
        %2496 = vmatpush1.msra.mxu0 0.0
        %2497 = vmatprep.subr.mxu0 0.0
        %2498 = vmatpush1.msra.mxu0 %v550
        %2499 = vmatprep.subr.mxu0 0.0
        %2500 = vmatpush1.msra.mxu0 %v549
        %2501 = vmatprep.subr.mxu0 0.0
        %2502 = vmatpush1.msra.mxu0 %v548
        %2503 = vmatprep.subr.mxu0 0.0
        %2504 = vmatpush1.msra.mxu0 %v547
        %2505 = vmatprep.subr.mxu0 0.0
        %2506 = vmatpush2.msra.mxu0 0.0
        %2507 = vmatprep.subr.mxu0 0.0
        %2508 = vmatpush2.msra.mxu0 0.0
        %2509 = vmatprep.subr.mxu0 0.0
        %2510 = vmatpush2.msra.mxu0 0.0
        %2511 = vmatprep.subr.mxu0 0.0
        %2512 = vmatpush2.msra.mxu0 0.0
        %2513 = vmatprep.subr.mxu0 0.0
        %2514 = vmatpush2.msra.mxu0 0.0
        %2515 = vmatprep.subr.mxu0 0.0
        %2516 = vmatpush2.msra.mxu0 0.0
        %2517 = vmatprep.subr.mxu0 0.0
        %2518 = vmatpush2.msra.mxu0 0.0
        %2519 = vmatprep.subr.mxu0 0.0
        %2520 = vmatpush2.msra.mxu0 0.0
        %2521 = vmatprep.subr.mxu0 0.0
        %2522 = vmatpush2.msra.mxu0 0.0
        %2523 = vmatprep.subr.mxu0 0.0
        %2524 = vmatpush2.msra.mxu0 0.0
        %2525 = vmatprep.subr.mxu0 0.0
        %2526 = vmatpush2.msra.mxu0 0.0
        %2527 = vmatprep.subr.mxu0 0.0
        %2528 = vmatpush2.msra.mxu0 0.0
        %2529 = vmatprep.subr.mxu0 0.0
        %2530 = vmatpush2.msra.mxu0 0.0
        %2531 = vmatprep.subr.mxu0 0.0
        %2532 = vmatpush2.msra.mxu0 0.0
        %2533 = vmatprep.subr.mxu0 0.0
        %2534 = vmatpush2.msra.mxu0 0.0
        %2535 = vmatprep.subr.mxu0 0.0
        %2536 = vmatpush2.msra.mxu0 0.0
        %2537 = vmatprep.mubr.f32.mxu0 0.0
        %2538 = vmatmul.mubr.f32.gmra.mxu0 %v2471
        %v2539 = vpop.f32.mrf.mxu0
        %v2540 = vadd.f32 0.0, %v2539
        %v2541 = vpop.f32.mrf.mxu0
        %2542 = vdwg.mxu0
        %v2543 = vadd.f32 %v2467, %v2540
        %2544 = vmatprep.subr.mxu0 0.0
        %2545 = vmatpush1.msra.mxu0 0.0
        %2546 = vmatprep.subr.mxu0 0.0
        %2547 = vmatpush1.msra.mxu0 0.0
        %2548 = vmatprep.subr.mxu0 0.0
        %2549 = vmatpush1.msra.mxu0 0.0
        %2550 = vmatprep.subr.mxu0 0.0
        %2551 = vmatpush1.msra.mxu0 0.0
        %2552 = vmatprep.subr.mxu0 0.0
        %2553 = vmatpush1.msra.mxu0 0.0
        %2554 = vmatprep.subr.mxu0 0.0
        %2555 = vmatpush1.msra.mxu0 0.0
        %2556 = vmatprep.subr.mxu0 0.0
        %2557 = vmatpush1.msra.mxu0 0.0
        %2558 = vmatprep.subr.mxu0 0.0
        %2559 = vmatpush1.msra.mxu0 0.0
        %2560 = vmatprep.subr.mxu0 0.0
        %2561 = vmatpush1.msra.mxu0 %v558
        %2562 = vmatprep.subr.mxu0 0.0
        %2563 = vmatpush1.msra.mxu0 %v557
        %2564 = vmatprep.subr.mxu0 0.0
        %2565 = vmatpush1.msra.mxu0 %v556
        %2566 = vmatprep.subr.mxu0 0.0
        %2567 = vmatpush1.msra.mxu0 %v555
        %2568 = vmatprep.subr.mxu0 0.0
        %2569 = vmatpush1.msra.mxu0 %v554
        %2570 = vmatprep.subr.mxu0 0.0
        %2571 = vmatpush1.msra.mxu0 %v553
        %2572 = vmatprep.subr.mxu0 0.0
        %2573 = vmatpush1.msra.mxu0 %v552
        %2574 = vmatprep.subr.mxu0 0.0
        %2575 = vmatpush1.msra.mxu0 %v551
        %2576 = vmatprep.subr.mxu0 0.0
        %2577 = vmatpush2.msra.mxu0 0.0
        %2578 = vmatprep.subr.mxu0 0.0
        %2579 = vmatpush2.msra.mxu0 0.0
        %2580 = vmatprep.subr.mxu0 0.0
        %2581 = vmatpush2.msra.mxu0 0.0
        %2582 = vmatprep.subr.mxu0 0.0
        %2583 = vmatpush2.msra.mxu0 0.0
        %2584 = vmatprep.subr.mxu0 0.0
        %2585 = vmatpush2.msra.mxu0 0.0
        %2586 = vmatprep.subr.mxu0 0.0
        %2587 = vmatpush2.msra.mxu0 0.0
        %2588 = vmatprep.subr.mxu0 0.0
        %2589 = vmatpush2.msra.mxu0 0.0
        %2590 = vmatprep.subr.mxu0 0.0
        %2591 = vmatpush2.msra.mxu0 0.0
        %2592 = vmatprep.subr.mxu0 0.0
        %2593 = vmatpush2.msra.mxu0 0.0
        %2594 = vmatprep.subr.mxu0 0.0
        %2595 = vmatpush2.msra.mxu0 0.0
        %2596 = vmatprep.subr.mxu0 0.0
        %2597 = vmatpush2.msra.mxu0 0.0
        %2598 = vmatprep.subr.mxu0 0.0
        %2599 = vmatpush2.msra.mxu0 0.0
        %2600 = vmatprep.subr.mxu0 0.0
        %2601 = vmatpush2.msra.mxu0 0.0
        %2602 = vmatprep.subr.mxu0 0.0
        %2603 = vmatpush2.msra.mxu0 0.0
        %2604 = vmatprep.subr.mxu0 0.0
        %2605 = vmatpush2.msra.mxu0 0.0
        %2606 = vmatprep.subr.mxu0 0.0
        %2607 = vmatpush2.msra.mxu0 0.0
        %2608 = vmatprep.mubr.f32.mxu0 0.0
        %2609 = vmatmul.mubr.f32.gmra.mxu0 %v2298
        %v2610 = vpop.f32.mrf.mxu0
        %v2611 = vadd.f32 0.0, %v2610
        %v2612 = vpop.f32.mrf.mxu0
        %2613 = vdwg.mxu0
        %v2614 = vadd.f32 %v2543, %v2611
        %s2615 = scalar_lea.vmem %s515, 6
        %2616 = vst.msk [vmem:[%s2615] sm:$0x3] %vm1074, %v2614
        %s2617 = sadd.s32 %s1076, 3
        %p2618 = scmp.lt.s32.totalorder %s2617, 6
        %s2619 = scalar_select %p2618, 1, 0
        %s2620 = scvt.s32.f32 %s2619
        %v2621 = vstv %s2620
        %v2622 = vmul.f32 %v2621, %v2465
        %s2623 = ssub.f32 1.0, %s2620
        %v2624 = vstv %s2623
        %v2625 = vmul.f32 %v2624, %v2115
        %v2626 = vadd.f32 %v2622, %v2625
        %v2627 = vmul.f32 %v2621, %v2459
        %v2628 = vmul.f32 %v2624, %v2118
        %v2629 = vadd.f32 %v2627, %v2628
        %2631 = vrot.lane.b32.xlu0 %v2626, 32
        %v2632 = vpop.permute.xlu0 %2631
        %2634 = vst.msk [vmem:[#allocation2] sm:$0x3] %vm1074, %v2632
        %2636 = vrot.lane.b32.xlu0 %v2629, 96
        %v2637 = vpop.permute.xlu0 %2636
        %2639 = vst.msk [vmem:[#allocation4] sm:$0x3] %vm1074, %v2637
        %s2640 = smul.u32 4, %s29
        %p2641 = scmp.lt.s32.totalorder %s2640, 7
        %s2642 = scalar_select %p2641, %s2640, 7
        %s2643 = smul.addr %s2642, 2
        %s2644 = scalar_lea.vmem %s13, %s2643
        // Predicated region
        $region77: #{decoder_forward.1} parent=71 // pred_check
          %p2645 = pneg %p330
        $region78: #{decoder_forward.1} parent=71 // pred_check_branch
          %2647 = sbr.rel (%p2645) target = $region80
        $region79: #{decoder_forward.1} parent=71 // pred_region
          %s2648 = smul.u32 4, %s29
        $region80: #{decoder_forward.1} parent=71 // pred_fallthru
          _
        // Predicated region
        $region81: #{decoder_forward.1} parent=71 // pred_check
          %p2649 = pneg %p351
        $region82: #{decoder_forward.1} parent=71 // pred_check_branch
          %2651 = sbr.rel (%p2649) target = $region84
        $region83: #{decoder_forward.1} parent=71 // pred_region
          %s2653 = ssub.s32 32, 32
          %2654 = vsyncadd [#allocation3], %s2653
          %s2656 = sshll.u32 [#allocation2], 4
          %s2657 = int_to_ptr.vmem [resolvable:$true] %s2656
          %2659 = dma.vmem_to_hbm [thread:$0]  %s2657, 32, %s14, [#allocation3]
        $region84: #{decoder_forward.1} parent=71 // pred_fallthru
          _
        // Predicated region
        $region85: #{decoder_forward.1} parent=71 // pred_check
          %p2660 = pneg %p372
        $region86: #{decoder_forward.1} parent=71 // pred_check_branch
          %2662 = sbr.rel (%p2660) target = $region88
        $region87: #{decoder_forward.1} parent=71 // pred_region
          %s2664 = ssub.s32 32, 32
          %2665 = vsyncadd [#allocation5], %s2664
          %s2667 = sshll.u32 [#allocation4], 4
          %s2668 = int_to_ptr.vmem [resolvable:$true] %s2667
          %2670 = dma.vmem_to_hbm [thread:$0]  %s2668, 32, %s15, [#allocation5]
        $region88: #{decoder_forward.1} parent=71 // pred_fallthru
          _
        // Predicated region
        $region89: #{decoder_forward.1} parent=71 // pred_check
          %p2671 = pneg %p351
        $region90: #{decoder_forward.1} parent=71 // pred_check_branch
          %2673 = sbr.rel (%p2671) target = $region92
        $region91: #{decoder_forward.1} parent=71 // pred_region
          %2674 = dma.done [#allocation3], 32
        $region92: #{decoder_forward.1} parent=71 // pred_fallthru
          _
        // Predicated region
        $region93: #{decoder_forward.1} parent=71 // pred_check
          %p2675 = pneg %p372
        $region94: #{decoder_forward.1} parent=71 // pred_check_branch
          %2677 = sbr.rel (%p2675) target = $region96
        $region95: #{decoder_forward.1} parent=71 // pred_region
          %2678 = dma.done [#allocation5], 32
        $region96: #{decoder_forward.1} parent=71 // pred_fallthru
          _
      $region72: #{decoder_forward.1} parent=5 // pred_fallthru
        _
      %p2679 = scmp.le.s32.totalorder 2, %s24
      // Predicated region
      $region97: #{decoder_forward.1} parent=5 // pred_check
        %p2680 = pneg %p2679
      $region98: #{decoder_forward.1} parent=5 // pred_check_branch
        %2682 = sbr.rel (%p2680) target = $region100
      $region99: #{decoder_forward.1} parent=5 // pred_region
        %s2683 = ssub.s32 %s24, 2
        // Predicated region
        $region101: #{decoder_forward.1} parent=99 // pred_check
          %p2684 = pneg %p336
        $region102: #{decoder_forward.1} parent=99 // pred_check_branch
          %2686 = sbr.rel (%p2684) target = $region104
        $region103: #{decoder_forward.1} parent=99 // pred_region
          %s2687 = smul.u32 4, %s30
          %p2688 = scmp.lt.s32.totalorder %s2687, 7
          %s2689 = scalar_select %p2688, %s2687, 7
          %s2690 = smul.addr %s2689, 2
          %s2691 = scalar_lea.vmem %s13, %s2690
        $region104: #{decoder_forward.1} parent=99 // pred_fallthru
          _
      $region100: #{decoder_forward.1} parent=5 // pred_fallthru
        _
    $region6: #{decoder_forward.1} parent=1 // loop_footer
      %s28 = sadd.s32 1, %s24
    $region7: #{decoder_forward.1} parent=1 // loop_footer_branch
      %23 = sbr.rel target = $region3
    $region8: #{decoder_forward.1} parent=1 // loop_exit
      _
    %2692 = vsyncpa [#allocation3], 1
    %s2693 = scalar_lea.sflag [#allocation3], 1
    %2694 = vsyncpa %s2693, 1
    %2695 = vsyncpa [#allocation5], 1

</llo_original>
